<compile_context>
chip_gen: v5e
topology: v5e:2x2
jax: 0.10.0
libtpu: 0.0.40
codegen_flags: <defaults>
</compile_context>

<pallas_src>
import jax
import jax.numpy as jnp
from jax import lax
from jax.experimental import pallas as pl
from jax.experimental.pallas import tpu as pltpu


def _round_up(a, b):
    return (a + b - 1) // b * b


# ----------------------------------------------------------------------------
# Fused Pallas kernel
# ----------------------------------------------------------------------------
def _lenet_kernel(x_ref, w1_ref, s1_ref, t1_ref, w2_ref, s2_ref, t2_ref,
                  wf1_ref, b1_ref, wf2_ref, b2_ref, out_ref):
    f32, bf16 = jnp.float32, jnp.bfloat16
    bt = x_ref.shape[0]                         # batch tile

    # ---- conv1: one MXU matmul.  K = (kh, img col) = 5*128 (aligned pieces),
    #      N lane = 128*p + 10*wp + c1  with output column j1 = 2*wp + p.
    lhs1 = jnp.concatenate(
        [x_ref[:, kh:kh + 32, :].astype(bf16) for kh in range(5)], axis=-1)
    a1 = jnp.dot(lhs1.reshape(bt * 32, 640), w1_ref[...],
                 preferred_element_type=f32).reshape(bt, 32, 256)

    # 2x2 max-pool (h: sublane shift; w: parity halves sit 128 lanes apart so
    # it is a plain vreg max) -> ReLU -> BN1 (folded, eval mode).  All f32.
    hmax = jnp.maximum(a1[:, 0:24, :], a1[:, 1:25, :])            # (BT, 24, 256)
    wmax = jnp.maximum(hmax[:, :, 0:128], hmax[:, :, 128:256])    # (BT, 24, 128)
    y1 = jnp.maximum(wmax, 0.0) * s1_ref[...] + t1_ref[...]       # (BT, 24, 128)

    # ---- conv2: one MXU matmul.  K = (kh, 10*wp + c1) = 5*128,
    #      N lane = 128*q + 20*wq + c2 with output column j2 = 2*wq + q.
    lhs2 = jnp.concatenate(
        [y1[:, 2 * kh:2 * kh + 16, :].astype(bf16) for kh in range(5)], axis=-1)
    a2 = jnp.dot(lhs2.reshape(bt * 16, 640), w2_ref[...],
                 preferred_element_type=f32).reshape(bt, 16, 256)

    hmax2 = jnp.maximum(a2[:, 0:14, :], a2[:, 2:16, :])           # (BT, 14, 256)
    wmax2 = jnp.maximum(hmax2[:, :, 0:128], hmax2[:, :, 128:256])
    y2 = jnp.maximum(wmax2, 0.0) * s2_ref[...] + t2_ref[...]      # (BT, 14, 128)

    # ---- fc head: fc1 -> relu -> fc2 -> relu -> log_softmax (128-lane dense).
    flat = jnp.concatenate([y2[:, 4 * u, :] for u in range(4)],
                           axis=-1).astype(bf16)                  # (BT, 512)
    h1 = jnp.maximum(jnp.dot(flat, wf1_ref[...], preferred_element_type=f32)
                     + b1_ref[...], 0.0)                          # (BT, 128) f32
    logits = jnp.maximum(
        jnp.dot(h1.astype(bf16), wf2_ref[...], preferred_element_type=f32)
        + b2_ref[...], 0.0)                                       # (BT, 128) f32

    # log_softmax over the 10 real classes.  Padded lanes are exactly 0 and all
    # real logits are >= 0 (post-ReLU, as in the PyTorch module), so the max
    # over 128 lanes equals the real max and the 118 padded exp(0 - m) terms
    # can be subtracted analytically.
    n_pad_lanes = float(out_ref.shape[-1] - 10)
    m = jnp.max(logits, axis=-1, keepdims=True)
    total = jnp.sum(jnp.exp(logits - m), axis=-1, keepdims=True)
    lse = jnp.log(total - n_pad_lanes * jnp.exp(-m))
    out_ref[...] = logits - m - lse        # lanes >= 10 are junk, sliced outside


# ----------------------------------------------------------------------------
# One-time parameter preparation (hoisted out of the per-call forward)
# ----------------------------------------------------------------------------
def prepare_params(params, eps=1e-5):
    f32, bf16 = jnp.float32, jnp.bfloat16
    w1 = params["conv1_w"].astype(f32)          # (10, 1, 5, 5)   [c1, 1, kh, kw]
    w2 = params["conv2_w"].astype(f32)          # (20, 10, 5, 5)  [c2, c1, kh, kw]

    # conv1 Toeplitz (640, 256): row = 128*kh + img_col, col = 128*p + 10*wp + c1
    col = jnp.arange(28)
    j1 = jnp.arange(24)
    kw1 = col[:, None] - j1[None, :]
    g1 = w1[:, 0][:, :, jnp.clip(kw1, 0, 4)] * ((kw1 >= 0) & (kw1 <= 4))[None, None]
    g1 = jnp.transpose(g1, (1, 2, 3, 0))                       # (kh, col, j1, c1)
    g1 = jnp.transpose(g1.reshape(5, 28, 12, 2, 10), (0, 1, 3, 2, 4))
    w1big = jnp.zeros((5, 128, 2, 12, 10), f32).at[:, :28].set(g1)
    w1big = jnp.pad(w1big.reshape(5, 128, 2, 120), ((0, 0), (0, 0), (0, 0), (0, 8)))
    w1big = w1big.reshape(640, 256).astype(bf16)

    # conv2 Toeplitz (640, 256): row = 128*kh + 10*wp + c1, col = 128*q + 20*wq + c2
    wp = jnp.arange(12)
    j2 = jnp.arange(8)
    kw2 = wp[:, None] - j2[None, :]
    g2 = w2[:, :, :, jnp.clip(kw2, 0, 4)] * ((kw2 >= 0) & (kw2 <= 4))[None, None, None]
    g2 = jnp.transpose(g2, (2, 3, 1, 4, 0))                    # (kh, wp, c1, j2, c2)
    g2 = jnp.transpose(g2.reshape(5, 12, 10, 4, 2, 20), (0, 1, 2, 4, 3, 5))
    g2 = jnp.pad(g2.reshape(5, 120, 2, 80), ((0, 0), (0, 8), (0, 0), (0, 48)))
    w2big = g2.reshape(640, 256).astype(bf16)

    # folded eval-mode BN params, tiled over the packed (wp, c) lane layout;
    # zeros at padded lanes keep those lanes exactly 0 after the affine.
    def fold(g_, b_, m_, v_):
        s = (g_.astype(f32) / jnp.sqrt(v_.astype(f32) + eps))
        return s, b_.astype(f32) - m_.astype(f32) * s

    s1, t1 = fold(params["bn1_g"], params["bn1_b"], params["bn1_m"], params["bn1_v"])
    s2, t2 = fold(params["bn2_g"], params["bn2_b"], params["bn2_m"], params["bn2_v"])
    s1t = jnp.pad(jnp.tile(s1, 12), (0, 8))[None, :]           # (1, 128)
    t1t = jnp.pad(jnp.tile(t1, 12), (0, 8))[None, :]
    s2t = jnp.pad(jnp.tile(s2, 4), (0, 48))[None, :]           # (1, 128)
    t2t = jnp.pad(jnp.tile(t2, 4), (0, 48))[None, :]

    # fc1 weight permuted to the kernel flatten order (row = 128*hq + 20*wq + c2),
    # zero rows at padded lanes, outputs padded to 128 lanes; fc2 -> (128, 128).
    fc1 = params["fc1_w"].astype(f32).reshape(50, 20, 4, 4)    # (o, c2, hq, wq)
    wf1 = jnp.zeros((4, 4, 20, 128), f32).at[..., :50].set(
        jnp.transpose(fc1, (2, 3, 1, 0)))
    wf1 = jnp.pad(wf1.reshape(4, 80, 128), ((0, 0), (0, 48), (0, 0)))
    wf1 = wf1.reshape(512, 128).astype(bf16)
    b1 = jnp.pad(params["fc1_b"].astype(f32), (0, 78))[None, :]        # (1, 128)
    wf2 = jnp.zeros((128, 128), f32).at[:50, :10].set(
        params["fc2_w"].astype(f32).T).astype(bf16)
    b2 = jnp.pad(params["fc2_b"].astype(f32), (0, 118))[None, :]       # (1, 128)

    return dict(w1big=w1big, s1t=s1t, t1t=t1t, w2big=w2big, s2t=s2t, t2t=t2t,
                wf1=wf1, b1=b1, wf2=wf2, b2=b2)


# ----------------------------------------------------------------------------
# Wrapper: batch-tiled 1-D grid, single fused pallas_call
# ----------------------------------------------------------------------------
def lenet_forward(x, pp, *, batch_tile=128, interpret=False):
    """x: (N, 1, 28, 28) float.  Returns (N, 10) float32 log-probs.

    batch_tile: images per grid step.  Sweep 64-256 on v5e/v6e; keep <= 128 on
    v7x (64 MiB physical VMEM).  The tile is clamped so the grid has >= 2 steps
    whenever the batch allows it (v7x shards the parallel axis across 2 TCs).
    """
    n = x.shape[0]
    bt = min(batch_tile, _round_up(max(n // 2, 1), 8))
    n_pad = _round_up(n, bt)
    # Squeeze channel; zero-pad batch -> n_pad, height 28 -> 40, width 28 -> 128
    # so conv1's Toeplitz LHS pieces are 128-lane aligned and the input DMA is
    # lane-dense.  Input stays f32; LHS pieces are cast to bf16 at the dot.
    xp = jnp.pad(x[:, 0], ((0, n_pad - n), (0, 12), (0, 100)))

    const2 = lambda i: (0, 0)
    out = pl.pallas_call(
        _lenet_kernel,
        out_shape=jax.ShapeDtypeStruct((n_pad, 128), jnp.float32),
        grid_spec=pltpu.PrefetchScalarGridSpec(
            num_scalar_prefetch=0,
            grid=(n_pad // bt,),
            in_specs=[
                pl.BlockSpec((bt, 40, 128), lambda i: (i, 0, 0)),  # images
                pl.BlockSpec((640, 256), const2),                  # w1big (bf16)
                pl.BlockSpec((1, 128), const2),                    # s1t
                pl.BlockSpec((1, 128), const2),                    # t1t
                pl.BlockSpec((640, 256), const2),                  # w2big (bf16)
                pl.BlockSpec((1, 128), const2),                    # s2t
                pl.BlockSpec((1, 128), const2),                    # t2t
                pl.BlockSpec((512, 128), const2),                  # wf1 (bf16)
                pl.BlockSpec((1, 128), const2),                    # b1
                pl.BlockSpec((128, 128), const2),                  # wf2 (bf16)
                pl.BlockSpec((1, 128), const2),                    # b2
            ],
            out_specs=pl.BlockSpec((bt, 128), lambda i: (i, 0)),
        ),
        compiler_params=pltpu.CompilerParams(
            dimension_semantics=("parallel",),
            vmem_limit_bytes=48 * 1024 * 1024,
        ),
        interpret=interpret,
    )(xp, pp["w1big"], pp["s1t"], pp["t1t"], pp["w2big"], pp["s2t"], pp["t2t"],
      pp["wf1"], pp["b1"], pp["wf2"], pp["b2"])
    return out[:n, :10]


# ----------------------------------------------------------------------------
# Pure-JAX reference (for correctness check)
# ----------------------------------------------------------------------------
def lenet_reference(x, params):
    def conv(z, w):
        return lax.conv_general_dilated(
            z, w, (1, 1), "VALID",
            dimension_numbers=("NCHW", "OIHW", "NCHW"))

    def pool(z):
        return lax.reduce_window(z, -jnp.inf, lax.max,
                                 (1, 1, 2, 2), (1, 1, 2, 2), "VALID")

    def bn(z, g, b, m, v, eps=1e-5):
        s = g / jnp.sqrt(v + eps)
        return z * s[None, :, None, None] + (b - m * s)[None, :, None, None]

    y = jnp.maximum(pool(conv(x, params["conv1_w"])), 0.0)
    y = bn(y, params["bn1_g"], params["bn1_b"], params["bn1_m"], params["bn1_v"])
    y = jnp.maximum(pool(conv(y, params["conv2_w"])), 0.0)
    y = bn(y, params["bn2_g"], params["bn2_b"], params["bn2_m"], params["bn2_v"])
    y = y.reshape(y.shape[0], 320)
    y = jnp.maximum(y @ params["fc1_w"].T + params["fc1_b"], 0.0)
    y = jnp.maximum(y @ params["fc2_w"].T + params["fc2_b"], 0.0)
    return jax.nn.log_softmax(y, axis=1)


# ----------------------------------------------------------------------------
if __name__ == "__main__":
    key = jax.random.PRNGKey(0)
    ks = jax.random.split(key, 17)

    # LeNet on 28x28 single-channel input (so flatten == 320 features)
    x = jax.random.normal(ks[0], (2, 1, 28, 28), jnp.float32)

    params = {
        "conv1_w": 0.10 * jax.random.normal(ks[1], (10, 1, 5, 5), jnp.float32),
        "conv2_w": 0.05 * jax.random.normal(ks[2], (20, 10, 5, 5), jnp.float32),
        "fc1_w":   0.05 * jax.random.normal(ks[3], (50, 320), jnp.float32),
        "fc1_b":   0.01 * jax.random.normal(ks[4], (50,), jnp.float32),
        "fc2_w":   0.10 * jax.random.normal(ks[5], (10, 50), jnp.float32),
        "fc2_b":   0.01 * jax.random.normal(ks[6], (10,), jnp.float32),
        # BatchNorm eval-mode params (synthetic deterministic running stats)
        "bn1_g": 1.0 + 0.1 * jax.random.normal(ks[7], (10,), jnp.float32),
        "bn1_b": 0.1 * jax.random.normal(ks[8], (10,), jnp.float32),
        "bn1_m": 0.1 * jax.random.normal(ks[9], (10,), jnp.float32),
        "bn1_v": 1.0 + 0.1 * jnp.abs(jax.random.normal(ks[10], (10,), jnp.float32)),
        "bn2_g": 1.0 + 0.1 * jax.random.normal(ks[11], (20,), jnp.float32),
        "bn2_b": 0.1 * jax.random.normal(ks[12], (20,), jnp.float32),
        "bn2_m": 0.1 * jax.random.normal(ks[13], (20,), jnp.float32),
        "bn2_v": 1.0 + 0.1 * jnp.abs(jax.random.normal(ks[14], (20,), jnp.float32)),
    }

    # Hoisted, one-time parameter preparation (Toeplitz weights, BN folding,
    # fc permutation/padding, bf16 casts).
    pp = jax.tree_util.tree_map(jax.block_until_ready, prepare_params(params))

    # Small-batch check (single grid step).
    out = jax.block_until_ready(jax.jit(lenet_forward)(x, pp))
    ref = lenet_reference(x, params)
    assert out.shape == (2, 10), out.shape
    assert bool(jnp.all(jnp.isfinite(out)))
    max_err = float(jnp.max(jnp.abs(out - ref)))
    assert max_err < 3e-2, f"mismatch vs reference: {max_err}"   # bf16 MXU operands
    row_sums = jnp.sum(jnp.exp(out), axis=1)
    assert bool(jnp.all(jnp.abs(row_sums - 1.0) < 1e-4))

    # Multi-step grid + batch-padding path (bt=8 -> 3 parallel grid steps).
    xb = jax.random.normal(ks[16], (20, 1, 28, 28), jnp.float32)
    outb = jax.block_until_ready(
        jax.jit(lambda a, p: lenet_forward(a, p, batch_tile=8))(xb, pp))
    refb = lenet_reference(xb, params)
    assert outb.shape == (20, 10), outb.shape
    errb = float(jnp.max(jnp.abs(outb - refb)))
    assert errb < 3e-2, f"multi-tile mismatch vs reference: {errb}"

    print("KERNEL_OK")
</pallas_src>

<mosaic_0001>
module attributes {stable_mosaic.version = 11 : i64} {
  func.func @_lenet_kernel(%arg0: i32, %arg1: memref<8x40x128xf32, #tpu.memory_space<vmem>>, %arg2: memref<640x256xbf16, #tpu.memory_space<vmem>>, %arg3: memref<1x128xf32, #tpu.memory_space<vmem>>, %arg4: memref<1x128xf32, #tpu.memory_space<vmem>>, %arg5: memref<640x256xbf16, #tpu.memory_space<vmem>>, %arg6: memref<1x128xf32, #tpu.memory_space<vmem>>, %arg7: memref<1x128xf32, #tpu.memory_space<vmem>>, %arg8: memref<512x128xbf16, #tpu.memory_space<vmem>>, %arg9: memref<1x128xf32, #tpu.memory_space<vmem>>, %arg10: memref<128x128xbf16, #tpu.memory_space<vmem>>, %arg11: memref<1x128xf32, #tpu.memory_space<vmem>>, %arg12: memref<8x128xf32, #tpu.memory_space<vmem>>) attributes {dimension_semantics = [#tpu.dimension_semantics<parallel>], iteration_bounds = array<i64: 1>, scalar_prefetch = 0 : i64, scratch_operands = 0 : i64, tpu.core_type = #tpu.core_type<tc>, window_params = [{transform_indices = @transform_0, window_bounds = array<i64: 8, 40, 128>}, {pipeline_mode = #tpu.pipeline_mode<synchronous>, transform_indices = @transform_1, window_bounds = array<i64: 640, 256>}, {pipeline_mode = #tpu.pipeline_mode<synchronous>, transform_indices = @transform_2, window_bounds = array<i64: 1, 128>}, {pipeline_mode = #tpu.pipeline_mode<synchronous>, transform_indices = @transform_3, window_bounds = array<i64: 1, 128>}, {pipeline_mode = #tpu.pipeline_mode<synchronous>, transform_indices = @transform_4, window_bounds = array<i64: 640, 256>}, {pipeline_mode = #tpu.pipeline_mode<synchronous>, transform_indices = @transform_5, window_bounds = array<i64: 1, 128>}, {pipeline_mode = #tpu.pipeline_mode<synchronous>, transform_indices = @transform_6, window_bounds = array<i64: 1, 128>}, {pipeline_mode = #tpu.pipeline_mode<synchronous>, transform_indices = @transform_7, window_bounds = array<i64: 512, 128>}, {pipeline_mode = #tpu.pipeline_mode<synchronous>, transform_indices = @transform_8, window_bounds = array<i64: 1, 128>}, {pipeline_mode = #tpu.pipeline_mode<synchronous>, transform_indices = @transform_9, window_bounds = array<i64: 128, 128>}, {pipeline_mode = #tpu.pipeline_mode<synchronous>, transform_indices = @transform_10, window_bounds = array<i64: 1, 128>}, {transform_indices = @transform_11, window_bounds = array<i64: 8, 128>}]} {
    %c0 = arith.constant 0 : index
    %c0_0 = arith.constant 0 : index
    %c0_1 = arith.constant 0 : index
    %0 = vector.load %arg1[%c0, %c0_0, %c0_1] : memref<8x40x128xf32, #tpu.memory_space<vmem>>, vector<8x32x128xf32>
    %1 = arith.truncf %0 : vector<8x32x128xf32> to vector<8x32x128xbf16>
    %c0_2 = arith.constant 0 : index
    %c1 = arith.constant 1 : index
    %c0_3 = arith.constant 0 : index
    %2 = vector.load %arg1[%c0_2, %c1, %c0_3] : memref<8x40x128xf32, #tpu.memory_space<vmem>>, vector<8x32x128xf32>
    %3 = arith.truncf %2 : vector<8x32x128xf32> to vector<8x32x128xbf16>
    %c0_4 = arith.constant 0 : index
    %c2 = arith.constant 2 : index
    %c0_5 = arith.constant 0 : index
    %4 = vector.load %arg1[%c0_4, %c2, %c0_5] : memref<8x40x128xf32, #tpu.memory_space<vmem>>, vector<8x32x128xf32>
    %5 = arith.truncf %4 : vector<8x32x128xf32> to vector<8x32x128xbf16>
    %c0_6 = arith.constant 0 : index
    %c3 = arith.constant 3 : index
    %c0_7 = arith.constant 0 : index
    %6 = vector.load %arg1[%c0_6, %c3, %c0_7] : memref<8x40x128xf32, #tpu.memory_space<vmem>>, vector<8x32x128xf32>
    %7 = arith.truncf %6 : vector<8x32x128xf32> to vector<8x32x128xbf16>
    %c0_8 = arith.constant 0 : index
    %c4 = arith.constant 4 : index
    %c0_9 = arith.constant 0 : index
    %8 = vector.load %arg1[%c0_8, %c4, %c0_9] : memref<8x40x128xf32, #tpu.memory_space<vmem>>, vector<8x32x128xf32>
    %9 = arith.truncf %8 : vector<8x32x128xf32> to vector<8x32x128xbf16>
    %10 = tpu.concatenate %1, %3, %5, %7, %9 in 2 : vector<8x32x128xbf16>, vector<8x32x128xbf16>, vector<8x32x128xbf16>, vector<8x32x128xbf16>, vector<8x32x128xbf16> -> vector<8x32x640xbf16>
    %11 = vector.shape_cast %10 : vector<8x32x640xbf16> to vector<256x640xbf16>
    %c0_10 = arith.constant 0 : index
    %c0_11 = arith.constant 0 : index
    %12 = vector.load %arg2[%c0_10, %c0_11] : memref<640x256xbf16, #tpu.memory_space<vmem>>, vector<640x256xbf16>
    %cst = arith.constant dense<0.000000e+00> : vector<256x256xf32>
    %13 = tpu.matmul %11, %12, %cst {dimension_numbers = #tpu.dot_dimension_numbers<[1], [0], [0], [1], [0, 0, 1, 1], [], []>} : vector<256x640xbf16>, vector<640x256xbf16>, vector<256x256xf32> -> vector<256x256xf32>
    %14 = vector.shape_cast %13 : vector<256x256xf32> to vector<8x32x256xf32>
    %15 = vector.extract_strided_slice %14 {offsets = [0, 0, 0], sizes = [8, 24, 256], strides = [1, 1, 1]} : vector<8x32x256xf32> to vector<8x24x256xf32>
    %16 = vector.extract_strided_slice %14 {offsets = [0, 1, 0], sizes = [8, 24, 256], strides = [1, 1, 1]} : vector<8x32x256xf32> to vector<8x24x256xf32>
    %17 = arith.maximumf %15, %16 : vector<8x24x256xf32>
    %18 = vector.extract_strided_slice %17 {offsets = [0, 0, 0], sizes = [8, 24, 128], strides = [1, 1, 1]} : vector<8x24x256xf32> to vector<8x24x128xf32>
    %19 = vector.extract_strided_slice %17 {offsets = [0, 0, 128], sizes = [8, 24, 128], strides = [1, 1, 1]} : vector<8x24x256xf32> to vector<8x24x128xf32>
    %20 = arith.maximumf %18, %19 : vector<8x24x128xf32>
    %cst_12 = arith.constant 0.000000e+00 : f32
    %21 = vector.broadcast %cst_12 : f32 to vector<8x24x128xf32>
    %22 = arith.maximumf %20, %21 : vector<8x24x128xf32>
    %c0_13 = arith.constant 0 : index
    %c0_14 = arith.constant 0 : index
    %23 = vector.load %arg3[%c0_13, %c0_14] : memref<1x128xf32, #tpu.memory_space<vmem>>, vector<1x128xf32>
    %24 = vector.shape_cast %23 : vector<1x128xf32> to vector<1x1x128xf32>
    %25 = vector.broadcast %24 : vector<1x1x128xf32> to vector<8x24x128xf32>
    %26 = arith.mulf %22, %25 : vector<8x24x128xf32>
    %c0_15 = arith.constant 0 : index
    %c0_16 = arith.constant 0 : index
    %27 = vector.load %arg4[%c0_15, %c0_16] : memref<1x128xf32, #tpu.memory_space<vmem>>, vector<1x128xf32>
    %28 = vector.shape_cast %27 : vector<1x128xf32> to vector<1x1x128xf32>
    %29 = vector.broadcast %28 : vector<1x1x128xf32> to vector<8x24x128xf32>
    %30 = arith.addf %26, %29 : vector<8x24x128xf32>
    %31 = vector.extract_strided_slice %30 {offsets = [0, 0, 0], sizes = [8, 16, 128], strides = [1, 1, 1]} : vector<8x24x128xf32> to vector<8x16x128xf32>
    %32 = arith.truncf %31 : vector<8x16x128xf32> to vector<8x16x128xbf16>
    %33 = vector.extract_strided_slice %30 {offsets = [0, 2, 0], sizes = [8, 16, 128], strides = [1, 1, 1]} : vector<8x24x128xf32> to vector<8x16x128xf32>
    %34 = arith.truncf %33 : vector<8x16x128xf32> to vector<8x16x128xbf16>
    %35 = vector.extract_strided_slice %30 {offsets = [0, 4, 0], sizes = [8, 16, 128], strides = [1, 1, 1]} : vector<8x24x128xf32> to vector<8x16x128xf32>
    %36 = arith.truncf %35 : vector<8x16x128xf32> to vector<8x16x128xbf16>
    %37 = vector.extract_strided_slice %30 {offsets = [0, 6, 0], sizes = [8, 16, 128], strides = [1, 1, 1]} : vector<8x24x128xf32> to vector<8x16x128xf32>
    %38 = arith.truncf %37 : vector<8x16x128xf32> to vector<8x16x128xbf16>
    %39 = vector.extract_strided_slice %30 {offsets = [0, 8, 0], sizes = [8, 16, 128], strides = [1, 1, 1]} : vector<8x24x128xf32> to vector<8x16x128xf32>
    %40 = arith.truncf %39 : vector<8x16x128xf32> to vector<8x16x128xbf16>
    %41 = tpu.concatenate %32, %34, %36, %38, %40 in 2 : vector<8x16x128xbf16>, vector<8x16x128xbf16>, vector<8x16x128xbf16>, vector<8x16x128xbf16>, vector<8x16x128xbf16> -> vector<8x16x640xbf16>
    %42 = vector.shape_cast %41 : vector<8x16x640xbf16> to vector<128x640xbf16>
    %c0_17 = arith.constant 0 : index
    %c0_18 = arith.constant 0 : index
    %43 = vector.load %arg5[%c0_17, %c0_18] : memref<640x256xbf16, #tpu.memory_space<vmem>>, vector<640x256xbf16>
    %cst_19 = arith.constant dense<0.000000e+00> : vector<128x256xf32>
    %44 = tpu.matmul %42, %43, %cst_19 {dimension_numbers = #tpu.dot_dimension_numbers<[1], [0], [0], [1], [0, 0, 1, 1], [], []>} : vector<128x640xbf16>, vector<640x256xbf16>, vector<128x256xf32> -> vector<128x256xf32>
    %45 = vector.shape_cast %44 : vector<128x256xf32> to vector<8x16x256xf32>
    %46 = vector.extract_strided_slice %45 {offsets = [0, 0, 0], sizes = [8, 14, 256], strides = [1, 1, 1]} : vector<8x16x256xf32> to vector<8x14x256xf32>
    %47 = vector.extract_strided_slice %45 {offsets = [0, 2, 0], sizes = [8, 14, 256], strides = [1, 1, 1]} : vector<8x16x256xf32> to vector<8x14x256xf32>
    %48 = arith.maximumf %46, %47 : vector<8x14x256xf32>
    %49 = vector.extract_strided_slice %48 {offsets = [0, 0, 0], sizes = [8, 14, 128], strides = [1, 1, 1]} : vector<8x14x256xf32> to vector<8x14x128xf32>
    %50 = vector.extract_strided_slice %48 {offsets = [0, 0, 128], sizes = [8, 14, 128], strides = [1, 1, 1]} : vector<8x14x256xf32> to vector<8x14x128xf32>
    %51 = arith.maximumf %49, %50 : vector<8x14x128xf32>
    %cst_20 = arith.constant 0.000000e+00 : f32
    %52 = vector.broadcast %cst_20 : f32 to vector<8x14x128xf32>
    %53 = arith.maximumf %51, %52 : vector<8x14x128xf32>
    %c0_21 = arith.constant 0 : index
    %c0_22 = arith.constant 0 : index
    %54 = vector.load %arg6[%c0_21, %c0_22] : memref<1x128xf32, #tpu.memory_space<vmem>>, vector<1x128xf32>
    %55 = vector.shape_cast %54 : vector<1x128xf32> to vector<1x1x128xf32>
    %56 = vector.broadcast %55 : vector<1x1x128xf32> to vector<8x14x128xf32>
    %57 = arith.mulf %53, %56 : vector<8x14x128xf32>
    %c0_23 = arith.constant 0 : index
    %c0_24 = arith.constant 0 : index
    %58 = vector.load %arg7[%c0_23, %c0_24] : memref<1x128xf32, #tpu.memory_space<vmem>>, vector<1x128xf32>
    %59 = vector.shape_cast %58 : vector<1x128xf32> to vector<1x1x128xf32>
    %60 = vector.broadcast %59 : vector<1x1x128xf32> to vector<8x14x128xf32>
    %61 = arith.addf %57, %60 : vector<8x14x128xf32>
    %62 = vector.extract_strided_slice %61 {offsets = [0, 0, 0], sizes = [8, 1, 128], strides = [1, 1, 1]} : vector<8x14x128xf32> to vector<8x1x128xf32>
    %63 = vector.shape_cast %62 : vector<8x1x128xf32> to vector<8x128xf32>
    %64 = vector.extract_strided_slice %61 {offsets = [0, 4, 0], sizes = [8, 1, 128], strides = [1, 1, 1]} : vector<8x14x128xf32> to vector<8x1x128xf32>
    %65 = vector.shape_cast %64 : vector<8x1x128xf32> to vector<8x128xf32>
    %66 = vector.extract_strided_slice %61 {offsets = [0, 8, 0], sizes = [8, 1, 128], strides = [1, 1, 1]} : vector<8x14x128xf32> to vector<8x1x128xf32>
    %67 = vector.shape_cast %66 : vector<8x1x128xf32> to vector<8x128xf32>
    %68 = vector.extract_strided_slice %61 {offsets = [0, 12, 0], sizes = [8, 1, 128], strides = [1, 1, 1]} : vector<8x14x128xf32> to vector<8x1x128xf32>
    %69 = vector.shape_cast %68 : vector<8x1x128xf32> to vector<8x128xf32>
    %70 = tpu.concatenate %63, %65, %67, %69 in 1 : vector<8x128xf32>, vector<8x128xf32>, vector<8x128xf32>, vector<8x128xf32> -> vector<8x512xf32>
    %71 = arith.truncf %70 : vector<8x512xf32> to vector<8x512xbf16>
    %c0_25 = arith.constant 0 : index
    %c0_26 = arith.constant 0 : index
    %72 = vector.load %arg8[%c0_25, %c0_26] : memref<512x128xbf16, #tpu.memory_space<vmem>>, vector<512x128xbf16>
    %cst_27 = arith.constant dense<0.000000e+00> : vector<8x128xf32>
    %73 = tpu.matmul %71, %72, %cst_27 {dimension_numbers = #tpu.dot_dimension_numbers<[1], [0], [0], [1], [0, 0, 1, 1], [], []>} : vector<8x512xbf16>, vector<512x128xbf16>, vector<8x128xf32> -> vector<8x128xf32>
    %c0_28 = arith.constant 0 : index
    %c0_29 = arith.constant 0 : index
    %74 = vector.load %arg9[%c0_28, %c0_29] : memref<1x128xf32, #tpu.memory_space<vmem>>, vector<1x128xf32>
    %75 = vector.broadcast %74 : vector<1x128xf32> to vector<8x128xf32>
    %76 = arith.addf %73, %75 : vector<8x128xf32>
    %cst_30 = arith.constant 0.000000e+00 : f32
    %77 = vector.broadcast %cst_30 : f32 to vector<8x128xf32>
    %78 = arith.maximumf %76, %77 : vector<8x128xf32>
    %79 = arith.truncf %78 : vector<8x128xf32> to vector<8x128xbf16>
    %c0_31 = arith.constant 0 : index
    %c0_32 = arith.constant 0 : index
    %80 = vector.load %arg10[%c0_31, %c0_32] : memref<128x128xbf16, #tpu.memory_space<vmem>>, vector<128x128xbf16>
    %cst_33 = arith.constant dense<0.000000e+00> : vector<8x128xf32>
    %81 = tpu.matmul %79, %80, %cst_33 {dimension_numbers = #tpu.dot_dimension_numbers<[1], [0], [0], [1], [0, 0, 1, 1], [], []>} : vector<8x128xbf16>, vector<128x128xbf16>, vector<8x128xf32> -> vector<8x128xf32>
    %c0_34 = arith.constant 0 : index
    %c0_35 = arith.constant 0 : index
    %82 = vector.load %arg11[%c0_34, %c0_35] : memref<1x128xf32, #tpu.memory_space<vmem>>, vector<1x128xf32>
    %83 = vector.broadcast %82 : vector<1x128xf32> to vector<8x128xf32>
    %84 = arith.addf %81, %83 : vector<8x128xf32>
    %cst_36 = arith.constant 0.000000e+00 : f32
    %85 = vector.broadcast %cst_36 : f32 to vector<8x128xf32>
    %86 = arith.maximumf %84, %85 : vector<8x128xf32>
    %cst_37 = arith.constant dense<0xFF800000> : vector<8xf32>
    %87 = vector.multi_reduction <maximumf>, %86, %cst_37 [1] : vector<8x128xf32> to vector<8xf32>
    %88 = vector.shape_cast %87 : vector<8xf32> to vector<8x1xf32>
    %89 = vector.broadcast %88 : vector<8x1xf32> to vector<8x128xf32>
    %90 = arith.subf %86, %89 : vector<8x128xf32>
    %91 = math.exp %90 : vector<8x128xf32>
    %cst_38 = arith.constant dense<0.000000e+00> : vector<8xf32>
    %92 = vector.multi_reduction <add>, %91, %cst_38 [1] : vector<8x128xf32> to vector<8xf32>
    %93 = vector.shape_cast %92 : vector<8xf32> to vector<8x1xf32>
    %cst_39 = arith.constant 0.000000e+00 : f32
    %94 = vector.broadcast %cst_39 : f32 to vector<8x1xf32>
    %95 = arith.subf %94, %88 : vector<8x1xf32>
    %96 = math.exp %95 : vector<8x1xf32>
    %cst_40 = arith.constant 1.180000e+02 : f32
    %97 = vector.broadcast %cst_40 : f32 to vector<8x1xf32>
    %98 = arith.mulf %97, %96 : vector<8x1xf32>
    %99 = arith.subf %93, %98 : vector<8x1xf32>
    %100 = math.log %99 : vector<8x1xf32>
    %101 = vector.broadcast %88 : vector<8x1xf32> to vector<8x128xf32>
    %102 = arith.subf %86, %101 : vector<8x128xf32>
    %103 = vector.broadcast %100 : vector<8x1xf32> to vector<8x128xf32>
    %104 = arith.subf %102, %103 : vector<8x128xf32>
    %c0_41 = arith.constant 0 : index
    %c0_42 = arith.constant 0 : index
    %105 = vector.load %arg12[%c0_41, %c0_42] : memref<8x128xf32, #tpu.memory_space<vmem>>, vector<8x128xf32>
    tpu.vector_store %arg12[%c0_41, %c0_42], %104 {strides = array<i32>} : memref<8x128xf32, #tpu.memory_space<vmem>>, vector<8x128xf32>,
    return
  }
  func.func @transform_0(%arg0: i32) -> (i32, i32, i32) {
    %c0_i32 = arith.constant 0 : i32
    %c0_i32_0 = arith.constant 0 : i32
    %c0_i32_1 = arith.constant 0 : i32
    return %arg0, %c0_i32, %c0_i32_0 : i32, i32, i32
  }
  func.func @transform_1(%arg0: i32) -> (i32, i32) {
    %c0_i32 = arith.constant 0 : i32
    %c0_i32_0 = arith.constant 0 : i32
    %c0_i32_1 = arith.constant 0 : i32
    return %c0_i32, %c0_i32_0 : i32, i32
  }
  func.func @transform_2(%arg0: i32) -> (i32, i32) {
    %c0_i32 = arith.constant 0 : i32
    %c0_i32_0 = arith.constant 0 : i32
    %c0_i32_1 = arith.constant 0 : i32
    return %c0_i32, %c0_i32_0 : i32, i32
  }
  func.func @transform_3(%arg0: i32) -> (i32, i32) {
    %c0_i32 = arith.constant 0 : i32
    %c0_i32_0 = arith.constant 0 : i32
    %c0_i32_1 = arith.constant 0 : i32
    return %c0_i32, %c0_i32_0 : i32, i32
  }
  func.func @transform_4(%arg0: i32) -> (i32, i32) {
    %c0_i32 = arith.constant 0 : i32
    %c0_i32_0 = arith.constant 0 : i32
    %c0_i32_1 = arith.constant 0 : i32
    return %c0_i32, %c0_i32_0 : i32, i32
  }
  func.func @transform_5(%arg0: i32) -> (i32, i32) {
    %c0_i32 = arith.constant 0 : i32
    %c0_i32_0 = arith.constant 0 : i32
    %c0_i32_1 = arith.constant 0 : i32
    return %c0_i32, %c0_i32_0 : i32, i32
  }
  func.func @transform_6(%arg0: i32) -> (i32, i32) {
    %c0_i32 = arith.constant 0 : i32
    %c0_i32_0 = arith.constant 0 : i32
    %c0_i32_1 = arith.constant 0 : i32
    return %c0_i32, %c0_i32_0 : i32, i32
  }
  func.func @transform_7(%arg0: i32) -> (i32, i32) {
    %c0_i32 = arith.constant 0 : i32
    %c0_i32_0 = arith.constant 0 : i32
    %c0_i32_1 = arith.constant 0 : i32
    return %c0_i32, %c0_i32_0 : i32, i32
  }
  func.func @transform_8(%arg0: i32) -> (i32, i32) {
    %c0_i32 = arith.constant 0 : i32
    %c0_i32_0 = arith.constant 0 : i32
    %c0_i32_1 = arith.constant 0 : i32
    return %c0_i32, %c0_i32_0 : i32, i32
  }
  func.func @transform_9(%arg0: i32) -> (i32, i32) {
    %c0_i32 = arith.constant 0 : i32
    %c0_i32_0 = arith.constant 0 : i32
    %c0_i32_1 = arith.constant 0 : i32
    return %c0_i32, %c0_i32_0 : i32, i32
  }
  func.func @transform_10(%arg0: i32) -> (i32, i32) {
    %c0_i32 = arith.constant 0 : i32
    %c0_i32_0 = arith.constant 0 : i32
    %c0_i32_1 = arith.constant 0 : i32
    return %c0_i32, %c0_i32_0 : i32, i32
  }
  func.func @transform_11(%arg0: i32) -> (i32, i32) {
    %c0_i32 = arith.constant 0 : i32
    %c0_i32_0 = arith.constant 0 : i32
    return %arg0, %c0_i32 : i32, i32
  }
}

</mosaic_0001>

<llo_original>
// kernel: lenet_forward.1
$region0: #{lenet_forward.1}
  #allocation0 [shape = 'u32[]', space=smem, size = 0x4, offset = 0x4, fixed_abs, tag = 'smem constant byte address 0x4 - core index']
  #allocation1 [shape = 'u32[72,128]{1,0:T(1,128)}', space=vmem, size = 0x9000, scoped, tag = 'internal scratch']
  %s0 = inlined_call_operand.vmem [shape: f32[8,40,128], index: 0, kind: input, shape index: {}]
  %s1 = inlined_call_operand.hbm [shape: bf16[640,256], index: 1, kind: input, shape index: {}]
  %s2 = inlined_call_operand.vmem [shape: f32[1,128], index: 2, kind: input, shape index: {}]
  %s3 = inlined_call_operand.vmem [shape: f32[1,128], index: 3, kind: input, shape index: {}]
  %s4 = inlined_call_operand.hbm [shape: bf16[640,256], index: 4, kind: input, shape index: {}]
  %s5 = inlined_call_operand.vmem [shape: f32[1,128], index: 5, kind: input, shape index: {}]
  %s6 = inlined_call_operand.vmem [shape: f32[1,128], index: 6, kind: input, shape index: {}]
  %s7 = inlined_call_operand.vmem [shape: bf16[512,128], index: 7, kind: input, shape index: {}]
  %s8 = inlined_call_operand.vmem [shape: f32[1,128], index: 8, kind: input, shape index: {}]
  %s9 = inlined_call_operand.vmem [shape: bf16[128,128], index: 9, kind: input, shape index: {}]
  %s10 = inlined_call_operand.vmem [shape: f32[1,128], index: 10, kind: input, shape index: {}]
  %s11 = inlined_call_operand.vmem [shape: f32[8,128], index: 11, kind: output, shape index: {}]
  %s12 = sld [smem:[#allocation0]]
  $region62: #{lenet_forward.1} parent=0
    _
  %s14 = ssub.s32 1, %s12
  %s15 = scalar_select 0, %s14, %s12
  $region1: #{lenet_forward.1} parent=0
    #allocation2 [shape = 'u8[327680]{0}', space=vmem, size = 0x50000, scoped, tag = 'input window, operand 1, single buffered']
    #allocation3 [shape = 's32[1]{0}', space=sflag, size = 0x4, scoped, tag = 'scoped memory for lenet_forward.1']
    #allocation4 [shape = 'u8[327680]{0}', space=vmem, size = 0x50000, scoped, tag = 'input window, operand 4, single buffered']
    #allocation5 [shape = 's32[1]{0}', space=sflag, size = 0x4, scoped, tag = 'scoped memory for lenet_forward.1']
    %16 = vsyncpa [#allocation3], 0
    %17 = vsyncpa [#allocation5], 0
    // Predicated region
    $region2: #{lenet_forward.1} parent=1 // pred_check
      _
    $region3: #{lenet_forward.1} parent=1 // pred_check_branch
      %19 = sbr.rel (0) target = $region5
    $region4: #{lenet_forward.1} parent=1 // pred_region
      _
    $region5: #{lenet_forward.1} parent=1 // pred_fallthru
      _
    // Predicated region
    $region6: #{lenet_forward.1} parent=1 // pred_check
      _
    $region7: #{lenet_forward.1} parent=1 // pred_check_branch
      %21 = sbr.rel (0) target = $region9
    $region8: #{lenet_forward.1} parent=1 // pred_region
      %23 = vsyncadd [#allocation3], 0
      %s24 = sshll.u32 %s1, 4
      %s25 = int_to_ptr.hbm [resolvable:$true] %s24
      %s26 = sshll.u32 [#allocation2], 4
      %s27 = int_to_ptr.vmem [resolvable:$true] %s26
      %32 = dma.hbm_to_vmem [thread:$0]  %s25, 10240, %s27, [#allocation3], 128, 128, 8
    $region9: #{lenet_forward.1} parent=1 // pred_fallthru
      _
    // Predicated region
    $region10: #{lenet_forward.1} parent=1 // pred_check
      _
    $region11: #{lenet_forward.1} parent=1 // pred_check_branch
      %34 = sbr.rel (0) target = $region13
    $region12: #{lenet_forward.1} parent=1 // pred_region
      _
    $region13: #{lenet_forward.1} parent=1 // pred_fallthru
      _
    // Predicated region
    $region14: #{lenet_forward.1} parent=1 // pred_check
      _
    $region15: #{lenet_forward.1} parent=1 // pred_check_branch
      %36 = sbr.rel (0) target = $region17
    $region16: #{lenet_forward.1} parent=1 // pred_region
      _
    $region17: #{lenet_forward.1} parent=1 // pred_fallthru
      _
    // Predicated region
    $region18: #{lenet_forward.1} parent=1 // pred_check
      _
    $region19: #{lenet_forward.1} parent=1 // pred_check_branch
      %38 = sbr.rel (0) target = $region21
    $region20: #{lenet_forward.1} parent=1 // pred_region
      %40 = vsyncadd [#allocation5], 0
      %s41 = sshll.u32 %s4, 4
      %s42 = int_to_ptr.hbm [resolvable:$true] %s41
      %s43 = sshll.u32 [#allocation4], 4
      %s44 = int_to_ptr.vmem [resolvable:$true] %s43
      %49 = dma.hbm_to_vmem [thread:$0]  %s42, 10240, %s44, [#allocation5], 128, 128, 8
    $region21: #{lenet_forward.1} parent=1 // pred_fallthru
      _
    // Predicated region
    $region22: #{lenet_forward.1} parent=1 // pred_check
      _
    $region23: #{lenet_forward.1} parent=1 // pred_check_branch
      %51 = sbr.rel (0) target = $region25
    $region24: #{lenet_forward.1} parent=1 // pred_region
      _
    $region25: #{lenet_forward.1} parent=1 // pred_fallthru
      _
    // Predicated region
    $region26: #{lenet_forward.1} parent=1 // pred_check
      _
    $region27: #{lenet_forward.1} parent=1 // pred_check_branch
      %53 = sbr.rel (0) target = $region29
    $region28: #{lenet_forward.1} parent=1 // pred_region
      _
    $region29: #{lenet_forward.1} parent=1 // pred_fallthru
      _
    // Predicated region
    $region30: #{lenet_forward.1} parent=1 // pred_check
      _
    $region31: #{lenet_forward.1} parent=1 // pred_check_branch
      %55 = sbr.rel (0) target = $region33
    $region32: #{lenet_forward.1} parent=1 // pred_region
      _
    $region33: #{lenet_forward.1} parent=1 // pred_fallthru
      _
    // Predicated region
    $region34: #{lenet_forward.1} parent=1 // pred_check
      _
    $region35: #{lenet_forward.1} parent=1 // pred_check_branch
      %57 = sbr.rel (0) target = $region37
    $region36: #{lenet_forward.1} parent=1 // pred_region
      _
    $region37: #{lenet_forward.1} parent=1 // pred_fallthru
      _
    // Predicated region
    $region38: #{lenet_forward.1} parent=1 // pred_check
      _
    $region39: #{lenet_forward.1} parent=1 // pred_check_branch
      %59 = sbr.rel (0) target = $region41
    $region40: #{lenet_forward.1} parent=1 // pred_region
      _
    $region41: #{lenet_forward.1} parent=1 // pred_fallthru
      _
    // Predicated region
    $region42: #{lenet_forward.1} parent=1 // pred_check
      _
    $region43: #{lenet_forward.1} parent=1 // pred_check_branch
      %61 = sbr.rel (0) target = $region45
    $region44: #{lenet_forward.1} parent=1 // pred_region
      _
    $region45: #{lenet_forward.1} parent=1 // pred_fallthru
      _
    // Predicated region
    $region46: #{lenet_forward.1} parent=1 // pred_check
      _
    $region47: #{lenet_forward.1} parent=1 // pred_check_branch
      %63 = sbr.rel (0) target = $region49
    $region48: #{lenet_forward.1} parent=1 // pred_region
      %65 = dma.done [#allocation3], 10240
    $region49: #{lenet_forward.1} parent=1 // pred_fallthru
      _
    // Predicated region
    $region50: #{lenet_forward.1} parent=1 // pred_check
      _
    $region51: #{lenet_forward.1} parent=1 // pred_check_branch
      %67 = sbr.rel (0) target = $region53
    $region52: #{lenet_forward.1} parent=1 // pred_region
      %69 = dma.done [#allocation5], 10240
    $region53: #{lenet_forward.1} parent=1 // pred_fallthru
      _
    %v70 = vld [vmem:[%s0] sm:$0xff]
    %v71 = vld [vmem:[%s0 + $0x8] sm:$0xff]
    %v72 = vld [vmem:[%s0 + $0x10] sm:$0xff]
    %v73 = vld [vmem:[%s0 + $0x18] sm:$0xff]
    %v74 = vld [vmem:[%s0 + $0x28] sm:$0xff]
    %v75 = vld [vmem:[%s0 + $0x30] sm:$0xff]
    %v76 = vld [vmem:[%s0 + $0x38] sm:$0xff]
    %v77 = vld [vmem:[%s0 + $0x40] sm:$0xff]
    %v78 = vld [vmem:[%s0 + $0x50] sm:$0xff]
    %v79 = vld [vmem:[%s0 + $0x58] sm:$0xff]
    %v80 = vld [vmem:[%s0 + $0x60] sm:$0xff]
    %v81 = vld [vmem:[%s0 + $0x68] sm:$0xff]
    %v82 = vld [vmem:[%s0 + $0x78] sm:$0xff]
    %v83 = vld [vmem:[%s0 + $0x80] sm:$0xff]
    %v84 = vld [vmem:[%s0 + $0x88] sm:$0xff]
    %v85 = vld [vmem:[%s0 + $0x90] sm:$0xff]
    %v86 = vld [vmem:[%s0 + $0xa0] sm:$0xff]
    %v87 = vld [vmem:[%s0 + $0xa8] sm:$0xff]
    %v88 = vld [vmem:[%s0 + $0xb0] sm:$0xff]
    %v89 = vld [vmem:[%s0 + $0xb8] sm:$0xff]
    %v90 = vld [vmem:[%s0 + $0xc8] sm:$0xff]
    %v91 = vld [vmem:[%s0 + $0xd0] sm:$0xff]
    %v92 = vld [vmem:[%s0 + $0xd8] sm:$0xff]
    %v93 = vld [vmem:[%s0 + $0xe0] sm:$0xff]
    %v94 = vld [vmem:[%s0 + $0xf0] sm:$0xff]
    %v95 = vld [vmem:[%s0 + $0xf8] sm:$0xff]
    %v96 = vld [vmem:[%s0 + $0x100] sm:$0xff]
    %v97 = vld [vmem:[%s0 + $0x108] sm:$0xff]
    %v98 = vld [vmem:[%s0 + $0x118] sm:$0xff]
    %v99 = vld [vmem:[%s0 + $0x120] sm:$0xff]
    %v100 = vld [vmem:[%s0 + $0x128] sm:$0xff]
    %v101 = vld [vmem:[%s0 + $0x130] sm:$0xff]
    %v102 = vpack.c.bf16 %v70, %v70
    %v103 = vpack.c.bf16 %v71, %v71
    %v104 = vpack.c.bf16 %v72, %v72
    %v105 = vpack.c.bf16 %v73, %v73
    %v106 = vpack.c.bf16 %v74, %v74
    %v107 = vpack.c.bf16 %v75, %v75
    %v108 = vpack.c.bf16 %v76, %v76
    %v109 = vpack.c.bf16 %v77, %v77
    %v110 = vpack.c.bf16 %v78, %v78
    %v111 = vpack.c.bf16 %v79, %v79
    %v112 = vpack.c.bf16 %v80, %v80
    %v113 = vpack.c.bf16 %v81, %v81
    %v114 = vpack.c.bf16 %v82, %v82
    %v115 = vpack.c.bf16 %v83, %v83
    %v116 = vpack.c.bf16 %v84, %v84
    %v117 = vpack.c.bf16 %v85, %v85
    %v118 = vpack.c.bf16 %v86, %v86
    %v119 = vpack.c.bf16 %v87, %v87
    %v120 = vpack.c.bf16 %v88, %v88
    %v121 = vpack.c.bf16 %v89, %v89
    %v122 = vpack.c.bf16 %v90, %v90
    %v123 = vpack.c.bf16 %v91, %v91
    %v124 = vpack.c.bf16 %v92, %v92
    %v125 = vpack.c.bf16 %v93, %v93
    %v126 = vpack.c.bf16 %v94, %v94
    %v127 = vpack.c.bf16 %v95, %v95
    %v128 = vpack.c.bf16 %v96, %v96
    %v129 = vpack.c.bf16 %v97, %v97
    %v130 = vpack.c.bf16 %v98, %v98
    %v131 = vpack.c.bf16 %v99, %v99
    %v132 = vpack.c.bf16 %v100, %v100
    %v133 = vpack.c.bf16 %v101, %v101
    %v134 = vld [vmem:[%s0 + $0x1] sm:$0xff]
    %v135 = vld [vmem:[%s0 + $0x9] sm:$0xff]
    %v136 = vld [vmem:[%s0 + $0x11] sm:$0xff]
    %v137 = vld [vmem:[%s0 + $0x19] sm:$0xff]
    %v138 = vld [vmem:[%s0 + $0x29] sm:$0xff]
    %v139 = vld [vmem:[%s0 + $0x31] sm:$0xff]
    %v140 = vld [vmem:[%s0 + $0x39] sm:$0xff]
    %v141 = vld [vmem:[%s0 + $0x41] sm:$0xff]
    %v142 = vld [vmem:[%s0 + $0x51] sm:$0xff]
    %v143 = vld [vmem:[%s0 + $0x59] sm:$0xff]
    %v144 = vld [vmem:[%s0 + $0x61] sm:$0xff]
    %v145 = vld [vmem:[%s0 + $0x69] sm:$0xff]
    %v146 = vld [vmem:[%s0 + $0x79] sm:$0xff]
    %v147 = vld [vmem:[%s0 + $0x81] sm:$0xff]
    %v148 = vld [vmem:[%s0 + $0x89] sm:$0xff]
    %v149 = vld [vmem:[%s0 + $0x91] sm:$0xff]
    %v150 = vld [vmem:[%s0 + $0xa1] sm:$0xff]
    %v151 = vld [vmem:[%s0 + $0xa9] sm:$0xff]
    %v152 = vld [vmem:[%s0 + $0xb1] sm:$0xff]
    %v153 = vld [vmem:[%s0 + $0xb9] sm:$0xff]
    %v154 = vld [vmem:[%s0 + $0xc9] sm:$0xff]
    %v155 = vld [vmem:[%s0 + $0xd1] sm:$0xff]
    %v156 = vld [vmem:[%s0 + $0xd9] sm:$0xff]
    %v157 = vld [vmem:[%s0 + $0xe1] sm:$0xff]
    %v158 = vld [vmem:[%s0 + $0xf1] sm:$0xff]
    %v159 = vld [vmem:[%s0 + $0xf9] sm:$0xff]
    %v160 = vld [vmem:[%s0 + $0x101] sm:$0xff]
    %v161 = vld [vmem:[%s0 + $0x109] sm:$0xff]
    %v162 = vld [vmem:[%s0 + $0x119] sm:$0xff]
    %v163 = vld [vmem:[%s0 + $0x121] sm:$0xff]
    %v164 = vld [vmem:[%s0 + $0x129] sm:$0xff]
    %v165 = vld [vmem:[%s0 + $0x131] sm:$0xff]
    %v166 = vpack.c.bf16 %v134, %v134
    %v167 = vpack.c.bf16 %v135, %v135
    %v168 = vpack.c.bf16 %v136, %v136
    %v169 = vpack.c.bf16 %v137, %v137
    %v170 = vpack.c.bf16 %v138, %v138
    %v171 = vpack.c.bf16 %v139, %v139
    %v172 = vpack.c.bf16 %v140, %v140
    %v173 = vpack.c.bf16 %v141, %v141
    %v174 = vpack.c.bf16 %v142, %v142
    %v175 = vpack.c.bf16 %v143, %v143
    %v176 = vpack.c.bf16 %v144, %v144
    %v177 = vpack.c.bf16 %v145, %v145
    %v178 = vpack.c.bf16 %v146, %v146
    %v179 = vpack.c.bf16 %v147, %v147
    %v180 = vpack.c.bf16 %v148, %v148
    %v181 = vpack.c.bf16 %v149, %v149
    %v182 = vpack.c.bf16 %v150, %v150
    %v183 = vpack.c.bf16 %v151, %v151
    %v184 = vpack.c.bf16 %v152, %v152
    %v185 = vpack.c.bf16 %v153, %v153
    %v186 = vpack.c.bf16 %v154, %v154
    %v187 = vpack.c.bf16 %v155, %v155
    %v188 = vpack.c.bf16 %v156, %v156
    %v189 = vpack.c.bf16 %v157, %v157
    %v190 = vpack.c.bf16 %v158, %v158
    %v191 = vpack.c.bf16 %v159, %v159
    %v192 = vpack.c.bf16 %v160, %v160
    %v193 = vpack.c.bf16 %v161, %v161
    %v194 = vpack.c.bf16 %v162, %v162
    %v195 = vpack.c.bf16 %v163, %v163
    %v196 = vpack.c.bf16 %v164, %v164
    %v197 = vpack.c.bf16 %v165, %v165
    %v198 = vld [vmem:[%s0 + $0x2] sm:$0xff]
    %v199 = vld [vmem:[%s0 + $0xa] sm:$0xff]
    %v200 = vld [vmem:[%s0 + $0x12] sm:$0xff]
    %v201 = vld [vmem:[%s0 + $0x1a] sm:$0xff]
    %v202 = vld [vmem:[%s0 + $0x2a] sm:$0xff]
    %v203 = vld [vmem:[%s0 + $0x32] sm:$0xff]
    %v204 = vld [vmem:[%s0 + $0x3a] sm:$0xff]
    %v205 = vld [vmem:[%s0 + $0x42] sm:$0xff]
    %v206 = vld [vmem:[%s0 + $0x52] sm:$0xff]
    %v207 = vld [vmem:[%s0 + $0x5a] sm:$0xff]
    %v208 = vld [vmem:[%s0 + $0x62] sm:$0xff]
    %v209 = vld [vmem:[%s0 + $0x6a] sm:$0xff]
    %v210 = vld [vmem:[%s0 + $0x7a] sm:$0xff]
    %v211 = vld [vmem:[%s0 + $0x82] sm:$0xff]
    %v212 = vld [vmem:[%s0 + $0x8a] sm:$0xff]
    %v213 = vld [vmem:[%s0 + $0x92] sm:$0xff]
    %v214 = vld [vmem:[%s0 + $0xa2] sm:$0xff]
    %v215 = vld [vmem:[%s0 + $0xaa] sm:$0xff]
    %v216 = vld [vmem:[%s0 + $0xb2] sm:$0xff]
    %v217 = vld [vmem:[%s0 + $0xba] sm:$0xff]
    %v218 = vld [vmem:[%s0 + $0xca] sm:$0xff]
    %v219 = vld [vmem:[%s0 + $0xd2] sm:$0xff]
    %v220 = vld [vmem:[%s0 + $0xda] sm:$0xff]
    %v221 = vld [vmem:[%s0 + $0xe2] sm:$0xff]
    %v222 = vld [vmem:[%s0 + $0xf2] sm:$0xff]
    %v223 = vld [vmem:[%s0 + $0xfa] sm:$0xff]
    %v224 = vld [vmem:[%s0 + $0x102] sm:$0xff]
    %v225 = vld [vmem:[%s0 + $0x10a] sm:$0xff]
    %v226 = vld [vmem:[%s0 + $0x11a] sm:$0xff]
    %v227 = vld [vmem:[%s0 + $0x122] sm:$0xff]
    %v228 = vld [vmem:[%s0 + $0x12a] sm:$0xff]
    %v229 = vld [vmem:[%s0 + $0x132] sm:$0xff]
    %v230 = vpack.c.bf16 %v198, %v198
    %v231 = vpack.c.bf16 %v199, %v199
    %v232 = vpack.c.bf16 %v200, %v200
    %v233 = vpack.c.bf16 %v201, %v201
    %v234 = vpack.c.bf16 %v202, %v202
    %v235 = vpack.c.bf16 %v203, %v203
    %v236 = vpack.c.bf16 %v204, %v204
    %v237 = vpack.c.bf16 %v205, %v205
    %v238 = vpack.c.bf16 %v206, %v206
    %v239 = vpack.c.bf16 %v207, %v207
    %v240 = vpack.c.bf16 %v208, %v208
    %v241 = vpack.c.bf16 %v209, %v209
    %v242 = vpack.c.bf16 %v210, %v210
    %v243 = vpack.c.bf16 %v211, %v211
    %v244 = vpack.c.bf16 %v212, %v212
    %v245 = vpack.c.bf16 %v213, %v213
    %v246 = vpack.c.bf16 %v214, %v214
    %v247 = vpack.c.bf16 %v215, %v215
    %v248 = vpack.c.bf16 %v216, %v216
    %v249 = vpack.c.bf16 %v217, %v217
    %v250 = vpack.c.bf16 %v218, %v218
    %v251 = vpack.c.bf16 %v219, %v219
    %v252 = vpack.c.bf16 %v220, %v220
    %v253 = vpack.c.bf16 %v221, %v221
    %v254 = vpack.c.bf16 %v222, %v222
    %v255 = vpack.c.bf16 %v223, %v223
    %v256 = vpack.c.bf16 %v224, %v224
    %v257 = vpack.c.bf16 %v225, %v225
    %v258 = vpack.c.bf16 %v226, %v226
    %v259 = vpack.c.bf16 %v227, %v227
    %v260 = vpack.c.bf16 %v228, %v228
    %v261 = vpack.c.bf16 %v229, %v229
    %v262 = vld [vmem:[%s0 + $0x3] sm:$0xff]
    %v263 = vld [vmem:[%s0 + $0xb] sm:$0xff]
    %v264 = vld [vmem:[%s0 + $0x13] sm:$0xff]
    %v265 = vld [vmem:[%s0 + $0x1b] sm:$0xff]
    %v266 = vld [vmem:[%s0 + $0x2b] sm:$0xff]
    %v267 = vld [vmem:[%s0 + $0x33] sm:$0xff]
    %v268 = vld [vmem:[%s0 + $0x3b] sm:$0xff]
    %v269 = vld [vmem:[%s0 + $0x43] sm:$0xff]
    %v270 = vld [vmem:[%s0 + $0x53] sm:$0xff]
    %v271 = vld [vmem:[%s0 + $0x5b] sm:$0xff]
    %v272 = vld [vmem:[%s0 + $0x63] sm:$0xff]
    %v273 = vld [vmem:[%s0 + $0x6b] sm:$0xff]
    %v274 = vld [vmem:[%s0 + $0x7b] sm:$0xff]
    %v275 = vld [vmem:[%s0 + $0x83] sm:$0xff]
    %v276 = vld [vmem:[%s0 + $0x8b] sm:$0xff]
    %v277 = vld [vmem:[%s0 + $0x93] sm:$0xff]
    %v278 = vld [vmem:[%s0 + $0xa3] sm:$0xff]
    %v279 = vld [vmem:[%s0 + $0xab] sm:$0xff]
    %v280 = vld [vmem:[%s0 + $0xb3] sm:$0xff]
    %v281 = vld [vmem:[%s0 + $0xbb] sm:$0xff]
    %v282 = vld [vmem:[%s0 + $0xcb] sm:$0xff]
    %v283 = vld [vmem:[%s0 + $0xd3] sm:$0xff]
    %v284 = vld [vmem:[%s0 + $0xdb] sm:$0xff]
    %v285 = vld [vmem:[%s0 + $0xe3] sm:$0xff]
    %v286 = vld [vmem:[%s0 + $0xf3] sm:$0xff]
    %v287 = vld [vmem:[%s0 + $0xfb] sm:$0xff]
    %v288 = vld [vmem:[%s0 + $0x103] sm:$0xff]
    %v289 = vld [vmem:[%s0 + $0x10b] sm:$0xff]
    %v290 = vld [vmem:[%s0 + $0x11b] sm:$0xff]
    %v291 = vld [vmem:[%s0 + $0x123] sm:$0xff]
    %v292 = vld [vmem:[%s0 + $0x12b] sm:$0xff]
    %v293 = vld [vmem:[%s0 + $0x133] sm:$0xff]
    %v294 = vpack.c.bf16 %v262, %v262
    %v295 = vpack.c.bf16 %v263, %v263
    %v296 = vpack.c.bf16 %v264, %v264
    %v297 = vpack.c.bf16 %v265, %v265
    %v298 = vpack.c.bf16 %v266, %v266
    %v299 = vpack.c.bf16 %v267, %v267
    %v300 = vpack.c.bf16 %v268, %v268
    %v301 = vpack.c.bf16 %v269, %v269
    %v302 = vpack.c.bf16 %v270, %v270
    %v303 = vpack.c.bf16 %v271, %v271
    %v304 = vpack.c.bf16 %v272, %v272
    %v305 = vpack.c.bf16 %v273, %v273
    %v306 = vpack.c.bf16 %v274, %v274
    %v307 = vpack.c.bf16 %v275, %v275
    %v308 = vpack.c.bf16 %v276, %v276
    %v309 = vpack.c.bf16 %v277, %v277
    %v310 = vpack.c.bf16 %v278, %v278
    %v311 = vpack.c.bf16 %v279, %v279
    %v312 = vpack.c.bf16 %v280, %v280
    %v313 = vpack.c.bf16 %v281, %v281
    %v314 = vpack.c.bf16 %v282, %v282
    %v315 = vpack.c.bf16 %v283, %v283
    %v316 = vpack.c.bf16 %v284, %v284
    %v317 = vpack.c.bf16 %v285, %v285
    %v318 = vpack.c.bf16 %v286, %v286
    %v319 = vpack.c.bf16 %v287, %v287
    %v320 = vpack.c.bf16 %v288, %v288
    %v321 = vpack.c.bf16 %v289, %v289
    %v322 = vpack.c.bf16 %v290, %v290
    %v323 = vpack.c.bf16 %v291, %v291
    %v324 = vpack.c.bf16 %v292, %v292
    %v325 = vpack.c.bf16 %v293, %v293
    %v326 = vld [vmem:[%s0 + $0x4] sm:$0xff]
    %v327 = vld [vmem:[%s0 + $0xc] sm:$0xff]
    %v328 = vld [vmem:[%s0 + $0x14] sm:$0xff]
    %v329 = vld [vmem:[%s0 + $0x1c] sm:$0xff]
    %v330 = vld [vmem:[%s0 + $0x2c] sm:$0xff]
    %v331 = vld [vmem:[%s0 + $0x34] sm:$0xff]
    %v332 = vld [vmem:[%s0 + $0x3c] sm:$0xff]
    %v333 = vld [vmem:[%s0 + $0x44] sm:$0xff]
    %v334 = vld [vmem:[%s0 + $0x54] sm:$0xff]
    %v335 = vld [vmem:[%s0 + $0x5c] sm:$0xff]
    %v336 = vld [vmem:[%s0 + $0x64] sm:$0xff]
    %v337 = vld [vmem:[%s0 + $0x6c] sm:$0xff]
    %v338 = vld [vmem:[%s0 + $0x7c] sm:$0xff]
    %v339 = vld [vmem:[%s0 + $0x84] sm:$0xff]
    %v340 = vld [vmem:[%s0 + $0x8c] sm:$0xff]
    %v341 = vld [vmem:[%s0 + $0x94] sm:$0xff]
    %v342 = vld [vmem:[%s0 + $0xa4] sm:$0xff]
    %v343 = vld [vmem:[%s0 + $0xac] sm:$0xff]
    %v344 = vld [vmem:[%s0 + $0xb4] sm:$0xff]
    %v345 = vld [vmem:[%s0 + $0xbc] sm:$0xff]
    %v346 = vld [vmem:[%s0 + $0xcc] sm:$0xff]
    %v347 = vld [vmem:[%s0 + $0xd4] sm:$0xff]
    %v348 = vld [vmem:[%s0 + $0xdc] sm:$0xff]
    %v349 = vld [vmem:[%s0 + $0xe4] sm:$0xff]
    %v350 = vld [vmem:[%s0 + $0xf4] sm:$0xff]
    %v351 = vld [vmem:[%s0 + $0xfc] sm:$0xff]
    %v352 = vld [vmem:[%s0 + $0x104] sm:$0xff]
    %v353 = vld [vmem:[%s0 + $0x10c] sm:$0xff]
    %v354 = vld [vmem:[%s0 + $0x11c] sm:$0xff]
    %v355 = vld [vmem:[%s0 + $0x124] sm:$0xff]
    %v356 = vld [vmem:[%s0 + $0x12c] sm:$0xff]
    %v357 = vld [vmem:[%s0 + $0x134] sm:$0xff]
    %v358 = vpack.c.bf16 %v326, %v326
    %v359 = vpack.c.bf16 %v327, %v327
    %v360 = vpack.c.bf16 %v328, %v328
    %v361 = vpack.c.bf16 %v329, %v329
    %v362 = vpack.c.bf16 %v330, %v330
    %v363 = vpack.c.bf16 %v331, %v331
    %v364 = vpack.c.bf16 %v332, %v332
    %v365 = vpack.c.bf16 %v333, %v333
    %v366 = vpack.c.bf16 %v334, %v334
    %v367 = vpack.c.bf16 %v335, %v335
    %v368 = vpack.c.bf16 %v336, %v336
    %v369 = vpack.c.bf16 %v337, %v337
    %v370 = vpack.c.bf16 %v338, %v338
    %v371 = vpack.c.bf16 %v339, %v339
    %v372 = vpack.c.bf16 %v340, %v340
    %v373 = vpack.c.bf16 %v341, %v341
    %v374 = vpack.c.bf16 %v342, %v342
    %v375 = vpack.c.bf16 %v343, %v343
    %v376 = vpack.c.bf16 %v344, %v344
    %v377 = vpack.c.bf16 %v345, %v345
    %v378 = vpack.c.bf16 %v346, %v346
    %v379 = vpack.c.bf16 %v347, %v347
    %v380 = vpack.c.bf16 %v348, %v348
    %v381 = vpack.c.bf16 %v349, %v349
    %v382 = vpack.c.bf16 %v350, %v350
    %v383 = vpack.c.bf16 %v351, %v351
    %v384 = vpack.c.bf16 %v352, %v352
    %v385 = vpack.c.bf16 %v353, %v353
    %v386 = vpack.c.bf16 %v354, %v354
    %v387 = vpack.c.bf16 %v355, %v355
    %v388 = vpack.c.bf16 %v356, %v356
    %v389 = vpack.c.bf16 %v357, %v357
    %v422 = vunpack.c.l.b16 %v102
    %v423 = vunpack.c.l.b16 %v103
    %v424 = vunpack.c.l.b16 %v104
    %v425 = vunpack.c.l.b16 %v105
    %v426 = vunpack.c.l.b16 %v106
    %v427 = vunpack.c.l.b16 %v107
    %v428 = vunpack.c.l.b16 %v108
    %v429 = vunpack.c.l.b16 %v109
    %v430 = vunpack.c.l.b16 %v110
    %v431 = vunpack.c.l.b16 %v111
    %v432 = vunpack.c.l.b16 %v112
    %v433 = vunpack.c.l.b16 %v113
    %v434 = vunpack.c.l.b16 %v114
    %v435 = vunpack.c.l.b16 %v115
    %v436 = vunpack.c.l.b16 %v116
    %v437 = vunpack.c.l.b16 %v117
    %v438 = vunpack.c.l.b16 %v118
    %v439 = vunpack.c.l.b16 %v119
    %v440 = vunpack.c.l.b16 %v120
    %v441 = vunpack.c.l.b16 %v121
    %v442 = vunpack.c.l.b16 %v122
    %v443 = vunpack.c.l.b16 %v123
    %v444 = vunpack.c.l.b16 %v124
    %v445 = vunpack.c.l.b16 %v125
    %v446 = vunpack.c.l.b16 %v126
    %v447 = vunpack.c.l.b16 %v127
    %v448 = vunpack.c.l.b16 %v128
    %v449 = vunpack.c.l.b16 %v129
    %v450 = vunpack.c.l.b16 %v130
    %v451 = vunpack.c.l.b16 %v131
    %v452 = vunpack.c.l.b16 %v132
    %v453 = vunpack.c.l.b16 %v133
    %v454 = vpack.c.b16 %v423, %v422
    %v455 = vpack.c.b16 %v425, %v424
    %v456 = vpack.c.b16 %v427, %v426
    %v457 = vpack.c.b16 %v429, %v428
    %v458 = vpack.c.b16 %v431, %v430
    %v459 = vpack.c.b16 %v433, %v432
    %v460 = vpack.c.b16 %v435, %v434
    %v461 = vpack.c.b16 %v437, %v436
    %v462 = vpack.c.b16 %v439, %v438
    %v463 = vpack.c.b16 %v441, %v440
    %v464 = vpack.c.b16 %v443, %v442
    %v465 = vpack.c.b16 %v445, %v444
    %v466 = vpack.c.b16 %v447, %v446
    %v467 = vpack.c.b16 %v449, %v448
    %v468 = vpack.c.b16 %v451, %v450
    %v469 = vpack.c.b16 %v453, %v452
    %v518 = vunpack.c.l.b16 %v166
    %v519 = vunpack.c.l.b16 %v167
    %v520 = vunpack.c.l.b16 %v168
    %v521 = vunpack.c.l.b16 %v169
    %v522 = vunpack.c.l.b16 %v170
    %v523 = vunpack.c.l.b16 %v171
    %v524 = vunpack.c.l.b16 %v172
    %v525 = vunpack.c.l.b16 %v173
    %v526 = vunpack.c.l.b16 %v174
    %v527 = vunpack.c.l.b16 %v175
    %v528 = vunpack.c.l.b16 %v176
    %v529 = vunpack.c.l.b16 %v177
    %v530 = vunpack.c.l.b16 %v178
    %v531 = vunpack.c.l.b16 %v179
    %v532 = vunpack.c.l.b16 %v180
    %v533 = vunpack.c.l.b16 %v181
    %v534 = vunpack.c.l.b16 %v182
    %v535 = vunpack.c.l.b16 %v183
    %v536 = vunpack.c.l.b16 %v184
    %v537 = vunpack.c.l.b16 %v185
    %v538 = vunpack.c.l.b16 %v186
    %v539 = vunpack.c.l.b16 %v187
    %v540 = vunpack.c.l.b16 %v188
    %v541 = vunpack.c.l.b16 %v189
    %v542 = vunpack.c.l.b16 %v190
    %v543 = vunpack.c.l.b16 %v191
    %v544 = vunpack.c.l.b16 %v192
    %v545 = vunpack.c.l.b16 %v193
    %v546 = vunpack.c.l.b16 %v194
    %v547 = vunpack.c.l.b16 %v195
    %v548 = vunpack.c.l.b16 %v196
    %v549 = vunpack.c.l.b16 %v197
    %v550 = vpack.c.b16 %v519, %v518
    %v551 = vpack.c.b16 %v521, %v520
    %v552 = vpack.c.b16 %v523, %v522
    %v553 = vpack.c.b16 %v525, %v524
    %v554 = vpack.c.b16 %v527, %v526
    %v555 = vpack.c.b16 %v529, %v528
    %v556 = vpack.c.b16 %v531, %v530
    %v557 = vpack.c.b16 %v533, %v532
    %v558 = vpack.c.b16 %v535, %v534
    %v559 = vpack.c.b16 %v537, %v536
    %v560 = vpack.c.b16 %v539, %v538
    %v561 = vpack.c.b16 %v541, %v540
    %v562 = vpack.c.b16 %v543, %v542
    %v563 = vpack.c.b16 %v545, %v544
    %v564 = vpack.c.b16 %v547, %v546
    %v565 = vpack.c.b16 %v549, %v548
    %v614 = vunpack.c.l.b16 %v230
    %v615 = vunpack.c.l.b16 %v231
    %v616 = vunpack.c.l.b16 %v232
    %v617 = vunpack.c.l.b16 %v233
    %v618 = vunpack.c.l.b16 %v234
    %v619 = vunpack.c.l.b16 %v235
    %v620 = vunpack.c.l.b16 %v236
    %v621 = vunpack.c.l.b16 %v237
    %v622 = vunpack.c.l.b16 %v238
    %v623 = vunpack.c.l.b16 %v239
    %v624 = vunpack.c.l.b16 %v240
    %v625 = vunpack.c.l.b16 %v241
    %v626 = vunpack.c.l.b16 %v242
    %v627 = vunpack.c.l.b16 %v243
    %v628 = vunpack.c.l.b16 %v244
    %v629 = vunpack.c.l.b16 %v245
    %v630 = vunpack.c.l.b16 %v246
    %v631 = vunpack.c.l.b16 %v247
    %v632 = vunpack.c.l.b16 %v248
    %v633 = vunpack.c.l.b16 %v249
    %v634 = vunpack.c.l.b16 %v250
    %v635 = vunpack.c.l.b16 %v251
    %v636 = vunpack.c.l.b16 %v252
    %v637 = vunpack.c.l.b16 %v253
    %v638 = vunpack.c.l.b16 %v254
    %v639 = vunpack.c.l.b16 %v255
    %v640 = vunpack.c.l.b16 %v256
    %v641 = vunpack.c.l.b16 %v257
    %v642 = vunpack.c.l.b16 %v258
    %v643 = vunpack.c.l.b16 %v259
    %v644 = vunpack.c.l.b16 %v260
    %v645 = vunpack.c.l.b16 %v261
    %v646 = vpack.c.b16 %v615, %v614
    %v647 = vpack.c.b16 %v617, %v616
    %v648 = vpack.c.b16 %v619, %v618
    %v649 = vpack.c.b16 %v621, %v620
    %v650 = vpack.c.b16 %v623, %v622
    %v651 = vpack.c.b16 %v625, %v624
    %v652 = vpack.c.b16 %v627, %v626
    %v653 = vpack.c.b16 %v629, %v628
    %v654 = vpack.c.b16 %v631, %v630
    %v655 = vpack.c.b16 %v633, %v632
    %v656 = vpack.c.b16 %v635, %v634
    %v657 = vpack.c.b16 %v637, %v636
    %v658 = vpack.c.b16 %v639, %v638
    %v659 = vpack.c.b16 %v641, %v640
    %v660 = vpack.c.b16 %v643, %v642
    %v661 = vpack.c.b16 %v645, %v644
    %v710 = vunpack.c.l.b16 %v294
    %v711 = vunpack.c.l.b16 %v295
    %v712 = vunpack.c.l.b16 %v296
    %v713 = vunpack.c.l.b16 %v297
    %v714 = vunpack.c.l.b16 %v298
    %v715 = vunpack.c.l.b16 %v299
    %v716 = vunpack.c.l.b16 %v300
    %v717 = vunpack.c.l.b16 %v301
    %v718 = vunpack.c.l.b16 %v302
    %v719 = vunpack.c.l.b16 %v303
    %v720 = vunpack.c.l.b16 %v304
    %v721 = vunpack.c.l.b16 %v305
    %v722 = vunpack.c.l.b16 %v306
    %v723 = vunpack.c.l.b16 %v307
    %v724 = vunpack.c.l.b16 %v308
    %v725 = vunpack.c.l.b16 %v309
    %v726 = vunpack.c.l.b16 %v310
    %v727 = vunpack.c.l.b16 %v311
    %v728 = vunpack.c.l.b16 %v312
    %v729 = vunpack.c.l.b16 %v313
    %v730 = vunpack.c.l.b16 %v314
    %v731 = vunpack.c.l.b16 %v315
    %v732 = vunpack.c.l.b16 %v316
    %v733 = vunpack.c.l.b16 %v317
    %v734 = vunpack.c.l.b16 %v318
    %v735 = vunpack.c.l.b16 %v319
    %v736 = vunpack.c.l.b16 %v320
    %v737 = vunpack.c.l.b16 %v321
    %v738 = vunpack.c.l.b16 %v322
    %v739 = vunpack.c.l.b16 %v323
    %v740 = vunpack.c.l.b16 %v324
    %v741 = vunpack.c.l.b16 %v325
    %v742 = vpack.c.b16 %v711, %v710
    %v743 = vpack.c.b16 %v713, %v712
    %v744 = vpack.c.b16 %v715, %v714
    %v745 = vpack.c.b16 %v717, %v716
    %v746 = vpack.c.b16 %v719, %v718
    %v747 = vpack.c.b16 %v721, %v720
    %v748 = vpack.c.b16 %v723, %v722
    %v749 = vpack.c.b16 %v725, %v724
    %v750 = vpack.c.b16 %v727, %v726
    %v751 = vpack.c.b16 %v729, %v728
    %v752 = vpack.c.b16 %v731, %v730
    %v753 = vpack.c.b16 %v733, %v732
    %v754 = vpack.c.b16 %v735, %v734
    %v755 = vpack.c.b16 %v737, %v736
    %v756 = vpack.c.b16 %v739, %v738
    %v757 = vpack.c.b16 %v741, %v740
    %v806 = vunpack.c.l.b16 %v358
    %v807 = vunpack.c.l.b16 %v359
    %v808 = vunpack.c.l.b16 %v360
    %v809 = vunpack.c.l.b16 %v361
    %v810 = vunpack.c.l.b16 %v362
    %v811 = vunpack.c.l.b16 %v363
    %v812 = vunpack.c.l.b16 %v364
    %v813 = vunpack.c.l.b16 %v365
    %v814 = vunpack.c.l.b16 %v366
    %v815 = vunpack.c.l.b16 %v367
    %v816 = vunpack.c.l.b16 %v368
    %v817 = vunpack.c.l.b16 %v369
    %v818 = vunpack.c.l.b16 %v370
    %v819 = vunpack.c.l.b16 %v371
    %v820 = vunpack.c.l.b16 %v372
    %v821 = vunpack.c.l.b16 %v373
    %v822 = vunpack.c.l.b16 %v374
    %v823 = vunpack.c.l.b16 %v375
    %v824 = vunpack.c.l.b16 %v376
    %v825 = vunpack.c.l.b16 %v377
    %v826 = vunpack.c.l.b16 %v378
    %v827 = vunpack.c.l.b16 %v379
    %v828 = vunpack.c.l.b16 %v380
    %v829 = vunpack.c.l.b16 %v381
    %v830 = vunpack.c.l.b16 %v382
    %v831 = vunpack.c.l.b16 %v383
    %v832 = vunpack.c.l.b16 %v384
    %v833 = vunpack.c.l.b16 %v385
    %v834 = vunpack.c.l.b16 %v386
    %v835 = vunpack.c.l.b16 %v387
    %v836 = vunpack.c.l.b16 %v388
    %v837 = vunpack.c.l.b16 %v389
    %v838 = vpack.c.b16 %v807, %v806
    %v839 = vpack.c.b16 %v809, %v808
    %v840 = vpack.c.b16 %v811, %v810
    %v841 = vpack.c.b16 %v813, %v812
    %v842 = vpack.c.b16 %v815, %v814
    %v843 = vpack.c.b16 %v817, %v816
    %v844 = vpack.c.b16 %v819, %v818
    %v845 = vpack.c.b16 %v821, %v820
    %v846 = vpack.c.b16 %v823, %v822
    %v847 = vpack.c.b16 %v825, %v824
    %v848 = vpack.c.b16 %v827, %v826
    %v849 = vpack.c.b16 %v829, %v828
    %v850 = vpack.c.b16 %v831, %v830
    %v851 = vpack.c.b16 %v833, %v832
    %v852 = vpack.c.b16 %v835, %v834
    %v853 = vpack.c.b16 %v837, %v836
    %v870 = vld [vmem:[#allocation2] sm:$0xff]
    %v871 = vld [vmem:[#allocation2 + $0x8] sm:$0xff]
    %v872 = vld [vmem:[#allocation2 + $0x10] sm:$0xff]
    %v873 = vld [vmem:[#allocation2 + $0x18] sm:$0xff]
    %v874 = vld [vmem:[#allocation2 + $0x20] sm:$0xff]
    %v875 = vld [vmem:[#allocation2 + $0x28] sm:$0xff]
    %v876 = vld [vmem:[#allocation2 + $0x30] sm:$0xff]
    %v877 = vld [vmem:[#allocation2 + $0x38] sm:$0xff]
    %v878 = vld [vmem:[#allocation2 + $0x40] sm:$0xff]
    %v879 = vld [vmem:[#allocation2 + $0x48] sm:$0xff]
    %v880 = vld [vmem:[#allocation2 + $0x50] sm:$0xff]
    %v881 = vld [vmem:[#allocation2 + $0x58] sm:$0xff]
    %v882 = vld [vmem:[#allocation2 + $0x60] sm:$0xff]
    %v883 = vld [vmem:[#allocation2 + $0x68] sm:$0xff]
    %v884 = vld [vmem:[#allocation2 + $0x70] sm:$0xff]
    %v885 = vld [vmem:[#allocation2 + $0x78] sm:$0xff]
    %v886 = vld [vmem:[#allocation2 + $0x80] sm:$0xff]
    %v887 = vld [vmem:[#allocation2 + $0x88] sm:$0xff]
    %v888 = vld [vmem:[#allocation2 + $0x90] sm:$0xff]
    %v889 = vld [vmem:[#allocation2 + $0x98] sm:$0xff]
    %v890 = vld [vmem:[#allocation2 + $0xa0] sm:$0xff]
    %v891 = vld [vmem:[#allocation2 + $0xa8] sm:$0xff]
    %v892 = vld [vmem:[#allocation2 + $0xb0] sm:$0xff]
    %v893 = vld [vmem:[#allocation2 + $0xb8] sm:$0xff]
    %v894 = vld [vmem:[#allocation2 + $0xc0] sm:$0xff]
    %v895 = vld [vmem:[#allocation2 + $0xc8] sm:$0xff]
    %v896 = vld [vmem:[#allocation2 + $0xd0] sm:$0xff]
    %v897 = vld [vmem:[#allocation2 + $0xd8] sm:$0xff]
    %v898 = vld [vmem:[#allocation2 + $0xe0] sm:$0xff]
    %v899 = vld [vmem:[#allocation2 + $0xe8] sm:$0xff]
    %v900 = vld [vmem:[#allocation2 + $0xf0] sm:$0xff]
    %v901 = vld [vmem:[#allocation2 + $0xf8] sm:$0xff]
    %v902 = vld [vmem:[#allocation2 + $0x100] sm:$0xff]
    %v903 = vld [vmem:[#allocation2 + $0x108] sm:$0xff]
    %v904 = vld [vmem:[#allocation2 + $0x110] sm:$0xff]
    %v905 = vld [vmem:[#allocation2 + $0x118] sm:$0xff]
    %v906 = vld [vmem:[#allocation2 + $0x120] sm:$0xff]
    %v907 = vld [vmem:[#allocation2 + $0x128] sm:$0xff]
    %v908 = vld [vmem:[#allocation2 + $0x130] sm:$0xff]
    %v909 = vld [vmem:[#allocation2 + $0x138] sm:$0xff]
    %v910 = vld [vmem:[#allocation2 + $0x140] sm:$0xff]
    %v911 = vld [vmem:[#allocation2 + $0x148] sm:$0xff]
    %v912 = vld [vmem:[#allocation2 + $0x150] sm:$0xff]
    %v913 = vld [vmem:[#allocation2 + $0x158] sm:$0xff]
    %v914 = vld [vmem:[#allocation2 + $0x160] sm:$0xff]
    %v915 = vld [vmem:[#allocation2 + $0x168] sm:$0xff]
    %v916 = vld [vmem:[#allocation2 + $0x170] sm:$0xff]
    %v917 = vld [vmem:[#allocation2 + $0x178] sm:$0xff]
    %v918 = vld [vmem:[#allocation2 + $0x180] sm:$0xff]
    %v919 = vld [vmem:[#allocation2 + $0x188] sm:$0xff]
    %v920 = vld [vmem:[#allocation2 + $0x190] sm:$0xff]
    %v921 = vld [vmem:[#allocation2 + $0x198] sm:$0xff]
    %v922 = vld [vmem:[#allocation2 + $0x1a0] sm:$0xff]
    %v923 = vld [vmem:[#allocation2 + $0x1a8] sm:$0xff]
    %v924 = vld [vmem:[#allocation2 + $0x1b0] sm:$0xff]
    %v925 = vld [vmem:[#allocation2 + $0x1b8] sm:$0xff]
    %v926 = vld [vmem:[#allocation2 + $0x1c0] sm:$0xff]
    %v927 = vld [vmem:[#allocation2 + $0x1c8] sm:$0xff]
    %v928 = vld [vmem:[#allocation2 + $0x1d0] sm:$0xff]
    %v929 = vld [vmem:[#allocation2 + $0x1d8] sm:$0xff]
    %v930 = vld [vmem:[#allocation2 + $0x1e0] sm:$0xff]
    %v931 = vld [vmem:[#allocation2 + $0x1e8] sm:$0xff]
    %v932 = vld [vmem:[#allocation2 + $0x1f0] sm:$0xff]
    %v933 = vld [vmem:[#allocation2 + $0x1f8] sm:$0xff]
    %v934 = vld [vmem:[#allocation2 + $0x200] sm:$0xff]
    %v935 = vld [vmem:[#allocation2 + $0x208] sm:$0xff]
    %v936 = vld [vmem:[#allocation2 + $0x210] sm:$0xff]
    %v937 = vld [vmem:[#allocation2 + $0x218] sm:$0xff]
    %v938 = vld [vmem:[#allocation2 + $0x220] sm:$0xff]
    %v939 = vld [vmem:[#allocation2 + $0x228] sm:$0xff]
    %v940 = vld [vmem:[#allocation2 + $0x230] sm:$0xff]
    %v941 = vld [vmem:[#allocation2 + $0x238] sm:$0xff]
    %v942 = vld [vmem:[#allocation2 + $0x240] sm:$0xff]
    %v943 = vld [vmem:[#allocation2 + $0x248] sm:$0xff]
    %v944 = vld [vmem:[#allocation2 + $0x250] sm:$0xff]
    %v945 = vld [vmem:[#allocation2 + $0x258] sm:$0xff]
    %v946 = vld [vmem:[#allocation2 + $0x260] sm:$0xff]
    %v947 = vld [vmem:[#allocation2 + $0x268] sm:$0xff]
    %v948 = vld [vmem:[#allocation2 + $0x270] sm:$0xff]
    %v949 = vld [vmem:[#allocation2 + $0x278] sm:$0xff]
    %v1030 = vunpack.c.l.b16 %v870
    %v1031 = vunpack.c.h.b16 %v870
    %v1032 = vunpack.c.l.b16 %v871
    %v1033 = vunpack.c.h.b16 %v871
    %v1034 = vunpack.c.l.b16 %v872
    %v1035 = vunpack.c.h.b16 %v872
    %v1036 = vunpack.c.l.b16 %v873
    %v1037 = vunpack.c.h.b16 %v873
    %v1038 = vunpack.c.l.b16 %v874
    %v1039 = vunpack.c.h.b16 %v874
    %v1040 = vunpack.c.l.b16 %v875
    %v1041 = vunpack.c.h.b16 %v875
    %v1042 = vunpack.c.l.b16 %v876
    %v1043 = vunpack.c.h.b16 %v876
    %v1044 = vunpack.c.l.b16 %v877
    %v1045 = vunpack.c.h.b16 %v877
    %v1046 = vunpack.c.l.b16 %v878
    %v1047 = vunpack.c.h.b16 %v878
    %v1048 = vunpack.c.l.b16 %v879
    %v1049 = vunpack.c.h.b16 %v879
    %v1050 = vunpack.c.l.b16 %v880
    %v1051 = vunpack.c.h.b16 %v880
    %v1052 = vunpack.c.l.b16 %v881
    %v1053 = vunpack.c.h.b16 %v881
    %v1054 = vunpack.c.l.b16 %v882
    %v1055 = vunpack.c.h.b16 %v882
    %v1056 = vunpack.c.l.b16 %v883
    %v1057 = vunpack.c.h.b16 %v883
    %v1058 = vunpack.c.l.b16 %v884
    %v1059 = vunpack.c.h.b16 %v884
    %v1060 = vunpack.c.l.b16 %v885
    %v1061 = vunpack.c.h.b16 %v885
    %v1062 = vunpack.c.l.b16 %v886
    %v1063 = vunpack.c.h.b16 %v886
    %v1064 = vunpack.c.l.b16 %v887
    %v1065 = vunpack.c.h.b16 %v887
    %v1066 = vunpack.c.l.b16 %v888
    %v1067 = vunpack.c.h.b16 %v888
    %v1068 = vunpack.c.l.b16 %v889
    %v1069 = vunpack.c.h.b16 %v889
    %v1070 = vunpack.c.l.b16 %v890
    %v1071 = vunpack.c.h.b16 %v890
    %v1072 = vunpack.c.l.b16 %v891
    %v1073 = vunpack.c.h.b16 %v891
    %v1074 = vunpack.c.l.b16 %v892
    %v1075 = vunpack.c.h.b16 %v892
    %v1076 = vunpack.c.l.b16 %v893
    %v1077 = vunpack.c.h.b16 %v893
    %v1078 = vunpack.c.l.b16 %v894
    %v1079 = vunpack.c.h.b16 %v894
    %v1080 = vunpack.c.l.b16 %v895
    %v1081 = vunpack.c.h.b16 %v895
    %v1082 = vunpack.c.l.b16 %v896
    %v1083 = vunpack.c.h.b16 %v896
    %v1084 = vunpack.c.l.b16 %v897
    %v1085 = vunpack.c.h.b16 %v897
    %v1086 = vunpack.c.l.b16 %v898
    %v1087 = vunpack.c.h.b16 %v898
    %v1088 = vunpack.c.l.b16 %v899
    %v1089 = vunpack.c.h.b16 %v899
    %v1090 = vunpack.c.l.b16 %v900
    %v1091 = vunpack.c.h.b16 %v900
    %v1092 = vunpack.c.l.b16 %v901
    %v1093 = vunpack.c.h.b16 %v901
    %v1094 = vunpack.c.l.b16 %v902
    %v1095 = vunpack.c.h.b16 %v902
    %v1096 = vunpack.c.l.b16 %v903
    %v1097 = vunpack.c.h.b16 %v903
    %v1098 = vunpack.c.l.b16 %v904
    %v1099 = vunpack.c.h.b16 %v904
    %v1100 = vunpack.c.l.b16 %v905
    %v1101 = vunpack.c.h.b16 %v905
    %v1102 = vunpack.c.l.b16 %v906
    %v1103 = vunpack.c.h.b16 %v906
    %v1104 = vunpack.c.l.b16 %v907
    %v1105 = vunpack.c.h.b16 %v907
    %v1106 = vunpack.c.l.b16 %v908
    %v1107 = vunpack.c.h.b16 %v908
    %v1108 = vunpack.c.l.b16 %v909
    %v1109 = vunpack.c.h.b16 %v909
    %v1110 = vunpack.c.l.b16 %v910
    %v1111 = vunpack.c.h.b16 %v910
    %v1112 = vunpack.c.l.b16 %v911
    %v1113 = vunpack.c.h.b16 %v911
    %v1114 = vunpack.c.l.b16 %v912
    %v1115 = vunpack.c.h.b16 %v912
    %v1116 = vunpack.c.l.b16 %v913
    %v1117 = vunpack.c.h.b16 %v913
    %v1118 = vunpack.c.l.b16 %v914
    %v1119 = vunpack.c.h.b16 %v914
    %v1120 = vunpack.c.l.b16 %v915
    %v1121 = vunpack.c.h.b16 %v915
    %v1122 = vunpack.c.l.b16 %v916
    %v1123 = vunpack.c.h.b16 %v916
    %v1124 = vunpack.c.l.b16 %v917
    %v1125 = vunpack.c.h.b16 %v917
    %v1126 = vunpack.c.l.b16 %v918
    %v1127 = vunpack.c.h.b16 %v918
    %v1128 = vunpack.c.l.b16 %v919
    %v1129 = vunpack.c.h.b16 %v919
    %v1130 = vunpack.c.l.b16 %v920
    %v1131 = vunpack.c.h.b16 %v920
    %v1132 = vunpack.c.l.b16 %v921
    %v1133 = vunpack.c.h.b16 %v921
    %v1134 = vunpack.c.l.b16 %v922
    %v1135 = vunpack.c.h.b16 %v922
    %v1136 = vunpack.c.l.b16 %v923
    %v1137 = vunpack.c.h.b16 %v923
    %v1138 = vunpack.c.l.b16 %v924
    %v1139 = vunpack.c.h.b16 %v924
    %v1140 = vunpack.c.l.b16 %v925
    %v1141 = vunpack.c.h.b16 %v925
    %v1142 = vunpack.c.l.b16 %v926
    %v1143 = vunpack.c.h.b16 %v926
    %v1144 = vunpack.c.l.b16 %v927
    %v1145 = vunpack.c.h.b16 %v927
    %v1146 = vunpack.c.l.b16 %v928
    %v1147 = vunpack.c.h.b16 %v928
    %v1148 = vunpack.c.l.b16 %v929
    %v1149 = vunpack.c.h.b16 %v929
    %v1150 = vunpack.c.l.b16 %v930
    %v1151 = vunpack.c.h.b16 %v930
    %v1152 = vunpack.c.l.b16 %v931
    %v1153 = vunpack.c.h.b16 %v931
    %v1154 = vunpack.c.l.b16 %v932
    %v1155 = vunpack.c.h.b16 %v932
    %v1156 = vunpack.c.l.b16 %v933
    %v1157 = vunpack.c.h.b16 %v933
    %v1158 = vunpack.c.l.b16 %v934
    %v1159 = vunpack.c.h.b16 %v934
    %v1160 = vunpack.c.l.b16 %v935
    %v1161 = vunpack.c.h.b16 %v935
    %v1162 = vunpack.c.l.b16 %v936
    %v1163 = vunpack.c.h.b16 %v936
    %v1164 = vunpack.c.l.b16 %v937
    %v1165 = vunpack.c.h.b16 %v937
    %v1166 = vunpack.c.l.b16 %v938
    %v1167 = vunpack.c.h.b16 %v938
    %v1168 = vunpack.c.l.b16 %v939
    %v1169 = vunpack.c.h.b16 %v939
    %v1170 = vunpack.c.l.b16 %v940
    %v1171 = vunpack.c.h.b16 %v940
    %v1172 = vunpack.c.l.b16 %v941
    %v1173 = vunpack.c.h.b16 %v941
    %v1174 = vunpack.c.l.b16 %v942
    %v1175 = vunpack.c.h.b16 %v942
    %v1176 = vunpack.c.l.b16 %v943
    %v1177 = vunpack.c.h.b16 %v943
    %v1178 = vunpack.c.l.b16 %v944
    %v1179 = vunpack.c.h.b16 %v944
    %v1180 = vunpack.c.l.b16 %v945
    %v1181 = vunpack.c.h.b16 %v945
    %v1182 = vunpack.c.l.b16 %v946
    %v1183 = vunpack.c.h.b16 %v946
    %v1184 = vunpack.c.l.b16 %v947
    %v1185 = vunpack.c.h.b16 %v947
    %v1186 = vunpack.c.l.b16 %v948
    %v1187 = vunpack.c.h.b16 %v948
    %v1188 = vunpack.c.l.b16 %v949
    %v1189 = vunpack.c.h.b16 %v949
    %v1190 = vpack.c.b16 %v1032, %v1030
    %v1191 = vpack.c.b16 %v1033, %v1031
    %v1192 = vpack.c.b16 %v1036, %v1034
    %v1193 = vpack.c.b16 %v1037, %v1035
    %v1194 = vpack.c.b16 %v1040, %v1038
    %v1195 = vpack.c.b16 %v1041, %v1039
    %v1196 = vpack.c.b16 %v1044, %v1042
    %v1197 = vpack.c.b16 %v1045, %v1043
    %v1198 = vpack.c.b16 %v1048, %v1046
    %v1199 = vpack.c.b16 %v1049, %v1047
    %v1200 = vpack.c.b16 %v1052, %v1050
    %v1201 = vpack.c.b16 %v1053, %v1051
    %v1202 = vpack.c.b16 %v1056, %v1054
    %v1203 = vpack.c.b16 %v1057, %v1055
    %v1204 = vpack.c.b16 %v1060, %v1058
    %v1205 = vpack.c.b16 %v1061, %v1059
    %v1206 = vpack.c.b16 %v1064, %v1062
    %v1207 = vpack.c.b16 %v1065, %v1063
    %v1208 = vpack.c.b16 %v1068, %v1066
    %v1209 = vpack.c.b16 %v1069, %v1067
    %v1210 = vpack.c.b16 %v1072, %v1070
    %v1211 = vpack.c.b16 %v1073, %v1071
    %v1212 = vpack.c.b16 %v1076, %v1074
    %v1213 = vpack.c.b16 %v1077, %v1075
    %v1214 = vpack.c.b16 %v1080, %v1078
    %v1215 = vpack.c.b16 %v1081, %v1079
    %v1216 = vpack.c.b16 %v1084, %v1082
    %v1217 = vpack.c.b16 %v1085, %v1083
    %v1218 = vpack.c.b16 %v1088, %v1086
    %v1219 = vpack.c.b16 %v1089, %v1087
    %v1220 = vpack.c.b16 %v1092, %v1090
    %v1221 = vpack.c.b16 %v1093, %v1091
    %v1222 = vpack.c.b16 %v1096, %v1094
    %v1223 = vpack.c.b16 %v1097, %v1095
    %v1224 = vpack.c.b16 %v1100, %v1098
    %v1225 = vpack.c.b16 %v1101, %v1099
    %v1226 = vpack.c.b16 %v1104, %v1102
    %v1227 = vpack.c.b16 %v1105, %v1103
    %v1228 = vpack.c.b16 %v1108, %v1106
    %v1229 = vpack.c.b16 %v1109, %v1107
    %v1230 = vpack.c.b16 %v1112, %v1110
    %v1231 = vpack.c.b16 %v1113, %v1111
    %v1232 = vpack.c.b16 %v1116, %v1114
    %v1233 = vpack.c.b16 %v1117, %v1115
    %v1234 = vpack.c.b16 %v1120, %v1118
    %v1235 = vpack.c.b16 %v1121, %v1119
    %v1236 = vpack.c.b16 %v1124, %v1122
    %v1237 = vpack.c.b16 %v1125, %v1123
    %v1238 = vpack.c.b16 %v1128, %v1126
    %v1239 = vpack.c.b16 %v1129, %v1127
    %v1240 = vpack.c.b16 %v1132, %v1130
    %v1241 = vpack.c.b16 %v1133, %v1131
    %v1242 = vpack.c.b16 %v1136, %v1134
    %v1243 = vpack.c.b16 %v1137, %v1135
    %v1244 = vpack.c.b16 %v1140, %v1138
    %v1245 = vpack.c.b16 %v1141, %v1139
    %v1246 = vpack.c.b16 %v1144, %v1142
    %v1247 = vpack.c.b16 %v1145, %v1143
    %v1248 = vpack.c.b16 %v1148, %v1146
    %v1249 = vpack.c.b16 %v1149, %v1147
    %v1250 = vpack.c.b16 %v1152, %v1150
    %v1251 = vpack.c.b16 %v1153, %v1151
    %v1252 = vpack.c.b16 %v1156, %v1154
    %v1253 = vpack.c.b16 %v1157, %v1155
    %v1254 = vpack.c.b16 %v1160, %v1158
    %v1255 = vpack.c.b16 %v1161, %v1159
    %v1256 = vpack.c.b16 %v1164, %v1162
    %v1257 = vpack.c.b16 %v1165, %v1163
    %v1258 = vpack.c.b16 %v1168, %v1166
    %v1259 = vpack.c.b16 %v1169, %v1167
    %v1260 = vpack.c.b16 %v1172, %v1170
    %v1261 = vpack.c.b16 %v1173, %v1171
    %v1262 = vpack.c.b16 %v1176, %v1174
    %v1263 = vpack.c.b16 %v1177, %v1175
    %v1264 = vpack.c.b16 %v1180, %v1178
    %v1265 = vpack.c.b16 %v1181, %v1179
    %v1266 = vpack.c.b16 %v1184, %v1182
    %v1267 = vpack.c.b16 %v1185, %v1183
    %v1268 = vpack.c.b16 %v1188, %v1186
    %v1269 = vpack.c.b16 %v1189, %v1187
    %1350 = vmatpush.bf16.msra.mxu0 %v1204
    %1351 = vmatpush.bf16.msra.mxu0 %v1202
    %1352 = vmatpush.bf16.msra.mxu0 %v1200
    %1353 = vmatpush.bf16.msra.mxu0 %v1198
    %1354 = vmatpush.bf16.msra.mxu0 %v1196
    %1355 = vmatpush.bf16.msra.mxu0 %v1194
    %1356 = vmatpush.bf16.msra.mxu0 %v1192
    %1357 = vmatpush.bf16.msra.mxu0 %v1190
    %1358 = vmatmul.bf16.gmra.mxu0 %v454
    %v1359 = vpop.f32.mrf.mxu0
    %v1360 = vadd.f32 0.0, %v1359
    %v1361 = vpop.f32.mrf.mxu0
    %v1362 = vadd.f32 0.0, %v1361
    %1363 = vmatmul.bf16.gmra.mxu0 %v455
    %v1364 = vpop.f32.mrf.mxu0
    %v1365 = vadd.f32 0.0, %v1364
    %v1366 = vpop.f32.mrf.mxu0
    %v1367 = vadd.f32 0.0, %v1366
    %1368 = vmatmul.bf16.gmra.mxu0 %v456
    %v1369 = vpop.f32.mrf.mxu0
    %v1370 = vadd.f32 0.0, %v1369
    %v1371 = vpop.f32.mrf.mxu0
    %v1372 = vadd.f32 0.0, %v1371
    %1373 = vmatmul.bf16.gmra.mxu0 %v457
    %v1374 = vpop.f32.mrf.mxu0
    %v1375 = vadd.f32 0.0, %v1374
    %v1376 = vpop.f32.mrf.mxu0
    %v1377 = vadd.f32 0.0, %v1376
    %1378 = vmatmul.bf16.gmra.mxu0 %v458
    %v1379 = vpop.f32.mrf.mxu0
    %v1380 = vadd.f32 0.0, %v1379
    %v1381 = vpop.f32.mrf.mxu0
    %v1382 = vadd.f32 0.0, %v1381
    %1383 = vmatmul.bf16.gmra.mxu0 %v459
    %v1384 = vpop.f32.mrf.mxu0
    %v1385 = vadd.f32 0.0, %v1384
    %v1386 = vpop.f32.mrf.mxu0
    %v1387 = vadd.f32 0.0, %v1386
    %1388 = vmatmul.bf16.gmra.mxu0 %v460
    %v1389 = vpop.f32.mrf.mxu0
    %v1390 = vadd.f32 0.0, %v1389
    %v1391 = vpop.f32.mrf.mxu0
    %v1392 = vadd.f32 0.0, %v1391
    %1393 = vmatmul.bf16.gmra.mxu0 %v461
    %v1394 = vpop.f32.mrf.mxu0
    %v1395 = vadd.f32 0.0, %v1394
    %v1396 = vpop.f32.mrf.mxu0
    %v1397 = vadd.f32 0.0, %v1396
    %1398 = vmatmul.bf16.gmra.mxu0 %v462
    %v1399 = vpop.f32.mrf.mxu0
    %v1400 = vadd.f32 0.0, %v1399
    %v1401 = vpop.f32.mrf.mxu0
    %v1402 = vadd.f32 0.0, %v1401
    %1403 = vmatmul.bf16.gmra.mxu0 %v463
    %v1404 = vpop.f32.mrf.mxu0
    %v1405 = vadd.f32 0.0, %v1404
    %v1406 = vpop.f32.mrf.mxu0
    %v1407 = vadd.f32 0.0, %v1406
    %1408 = vmatmul.bf16.gmra.mxu0 %v464
    %v1409 = vpop.f32.mrf.mxu0
    %v1410 = vadd.f32 0.0, %v1409
    %v1411 = vpop.f32.mrf.mxu0
    %v1412 = vadd.f32 0.0, %v1411
    %1413 = vmatmul.bf16.gmra.mxu0 %v465
    %v1414 = vpop.f32.mrf.mxu0
    %v1415 = vadd.f32 0.0, %v1414
    %v1416 = vpop.f32.mrf.mxu0
    %v1417 = vadd.f32 0.0, %v1416
    %1418 = vmatmul.bf16.gmra.mxu0 %v466
    %v1419 = vpop.f32.mrf.mxu0
    %v1420 = vadd.f32 0.0, %v1419
    %v1421 = vpop.f32.mrf.mxu0
    %v1422 = vadd.f32 0.0, %v1421
    %1423 = vmatmul.bf16.gmra.mxu0 %v467
    %v1424 = vpop.f32.mrf.mxu0
    %v1425 = vadd.f32 0.0, %v1424
    %v1426 = vpop.f32.mrf.mxu0
    %v1427 = vadd.f32 0.0, %v1426
    %1428 = vmatmul.bf16.gmra.mxu0 %v468
    %v1429 = vpop.f32.mrf.mxu0
    %v1430 = vadd.f32 0.0, %v1429
    %v1431 = vpop.f32.mrf.mxu0
    %v1432 = vadd.f32 0.0, %v1431
    %1433 = vmatmul.bf16.gmra.mxu0 %v469
    %v1434 = vpop.f32.mrf.mxu0
    %v1435 = vadd.f32 0.0, %v1434
    %v1436 = vpop.f32.mrf.mxu0
    %v1437 = vadd.f32 0.0, %v1436
    %1438 = vdwg.mxu0
    %1439 = vmatpush.bf16.msra.mxu0 %v1220
    %1440 = vmatpush.bf16.msra.mxu0 %v1218
    %1441 = vmatpush.bf16.msra.mxu0 %v1216
    %1442 = vmatpush.bf16.msra.mxu0 %v1214
    %1443 = vmatpush.bf16.msra.mxu0 %v1212
    %1444 = vmatpush.bf16.msra.mxu0 %v1210
    %1445 = vmatpush.bf16.msra.mxu0 %v1208
    %1446 = vmatpush.bf16.msra.mxu0 %v1206
    %1447 = vmatmul.bf16.gmra.mxu0 %v550
    %v1448 = vpop.f32.mrf.mxu0
    %v1449 = vadd.f32 %v1360, %v1448
    %v1450 = vpop.f32.mrf.mxu0
    %v1451 = vadd.f32 %v1362, %v1450
    %1452 = vmatmul.bf16.gmra.mxu0 %v551
    %v1453 = vpop.f32.mrf.mxu0
    %v1454 = vadd.f32 %v1365, %v1453
    %v1455 = vpop.f32.mrf.mxu0
    %v1456 = vadd.f32 %v1367, %v1455
    %1457 = vmatmul.bf16.gmra.mxu0 %v552
    %v1458 = vpop.f32.mrf.mxu0
    %v1459 = vadd.f32 %v1370, %v1458
    %v1460 = vpop.f32.mrf.mxu0
    %v1461 = vadd.f32 %v1372, %v1460
    %1462 = vmatmul.bf16.gmra.mxu0 %v553
    %v1463 = vpop.f32.mrf.mxu0
    %v1464 = vadd.f32 %v1375, %v1463
    %v1465 = vpop.f32.mrf.mxu0
    %v1466 = vadd.f32 %v1377, %v1465
    %1467 = vmatmul.bf16.gmra.mxu0 %v554
    %v1468 = vpop.f32.mrf.mxu0
    %v1469 = vadd.f32 %v1380, %v1468
    %v1470 = vpop.f32.mrf.mxu0
    %v1471 = vadd.f32 %v1382, %v1470
    %1472 = vmatmul.bf16.gmra.mxu0 %v555
    %v1473 = vpop.f32.mrf.mxu0
    %v1474 = vadd.f32 %v1385, %v1473
    %v1475 = vpop.f32.mrf.mxu0
    %v1476 = vadd.f32 %v1387, %v1475
    %1477 = vmatmul.bf16.gmra.mxu0 %v556
    %v1478 = vpop.f32.mrf.mxu0
    %v1479 = vadd.f32 %v1390, %v1478
    %v1480 = vpop.f32.mrf.mxu0
    %v1481 = vadd.f32 %v1392, %v1480
    %1482 = vmatmul.bf16.gmra.mxu0 %v557
    %v1483 = vpop.f32.mrf.mxu0
    %v1484 = vadd.f32 %v1395, %v1483
    %v1485 = vpop.f32.mrf.mxu0
    %v1486 = vadd.f32 %v1397, %v1485
    %1487 = vmatmul.bf16.gmra.mxu0 %v558
    %v1488 = vpop.f32.mrf.mxu0
    %v1489 = vadd.f32 %v1400, %v1488
    %v1490 = vpop.f32.mrf.mxu0
    %v1491 = vadd.f32 %v1402, %v1490
    %1492 = vmatmul.bf16.gmra.mxu0 %v559
    %v1493 = vpop.f32.mrf.mxu0
    %v1494 = vadd.f32 %v1405, %v1493
    %v1495 = vpop.f32.mrf.mxu0
    %v1496 = vadd.f32 %v1407, %v1495
    %1497 = vmatmul.bf16.gmra.mxu0 %v560
    %v1498 = vpop.f32.mrf.mxu0
    %v1499 = vadd.f32 %v1410, %v1498
    %v1500 = vpop.f32.mrf.mxu0
    %v1501 = vadd.f32 %v1412, %v1500
    %1502 = vmatmul.bf16.gmra.mxu0 %v561
    %v1503 = vpop.f32.mrf.mxu0
    %v1504 = vadd.f32 %v1415, %v1503
    %v1505 = vpop.f32.mrf.mxu0
    %v1506 = vadd.f32 %v1417, %v1505
    %1507 = vmatmul.bf16.gmra.mxu0 %v562
    %v1508 = vpop.f32.mrf.mxu0
    %v1509 = vadd.f32 %v1420, %v1508
    %v1510 = vpop.f32.mrf.mxu0
    %v1511 = vadd.f32 %v1422, %v1510
    %1512 = vmatmul.bf16.gmra.mxu0 %v563
    %v1513 = vpop.f32.mrf.mxu0
    %v1514 = vadd.f32 %v1425, %v1513
    %v1515 = vpop.f32.mrf.mxu0
    %v1516 = vadd.f32 %v1427, %v1515
    %1517 = vmatmul.bf16.gmra.mxu0 %v564
    %v1518 = vpop.f32.mrf.mxu0
    %v1519 = vadd.f32 %v1430, %v1518
    %v1520 = vpop.f32.mrf.mxu0
    %v1521 = vadd.f32 %v1432, %v1520
    %1522 = vmatmul.bf16.gmra.mxu0 %v565
    %v1523 = vpop.f32.mrf.mxu0
    %v1524 = vadd.f32 %v1435, %v1523
    %v1525 = vpop.f32.mrf.mxu0
    %v1526 = vadd.f32 %v1437, %v1525
    %1527 = vdwg.mxu0
    %1528 = vmatpush.bf16.msra.mxu0 %v1236
    %1529 = vmatpush.bf16.msra.mxu0 %v1234
    %1530 = vmatpush.bf16.msra.mxu0 %v1232
    %1531 = vmatpush.bf16.msra.mxu0 %v1230
    %1532 = vmatpush.bf16.msra.mxu0 %v1228
    %1533 = vmatpush.bf16.msra.mxu0 %v1226
    %1534 = vmatpush.bf16.msra.mxu0 %v1224
    %1535 = vmatpush.bf16.msra.mxu0 %v1222
    %1536 = vmatmul.bf16.gmra.mxu0 %v646
    %v1537 = vpop.f32.mrf.mxu0
    %v1538 = vadd.f32 %v1449, %v1537
    %v1539 = vpop.f32.mrf.mxu0
    %v1540 = vadd.f32 %v1451, %v1539
    %1541 = vmatmul.bf16.gmra.mxu0 %v647
    %v1542 = vpop.f32.mrf.mxu0
    %v1543 = vadd.f32 %v1454, %v1542
    %v1544 = vpop.f32.mrf.mxu0
    %v1545 = vadd.f32 %v1456, %v1544
    %1546 = vmatmul.bf16.gmra.mxu0 %v648
    %v1547 = vpop.f32.mrf.mxu0
    %v1548 = vadd.f32 %v1459, %v1547
    %v1549 = vpop.f32.mrf.mxu0
    %v1550 = vadd.f32 %v1461, %v1549
    %1551 = vmatmul.bf16.gmra.mxu0 %v649
    %v1552 = vpop.f32.mrf.mxu0
    %v1553 = vadd.f32 %v1464, %v1552
    %v1554 = vpop.f32.mrf.mxu0
    %v1555 = vadd.f32 %v1466, %v1554
    %1556 = vmatmul.bf16.gmra.mxu0 %v650
    %v1557 = vpop.f32.mrf.mxu0
    %v1558 = vadd.f32 %v1469, %v1557
    %v1559 = vpop.f32.mrf.mxu0
    %v1560 = vadd.f32 %v1471, %v1559
    %1561 = vmatmul.bf16.gmra.mxu0 %v651
    %v1562 = vpop.f32.mrf.mxu0
    %v1563 = vadd.f32 %v1474, %v1562
    %v1564 = vpop.f32.mrf.mxu0
    %v1565 = vadd.f32 %v1476, %v1564
    %1566 = vmatmul.bf16.gmra.mxu0 %v652
    %v1567 = vpop.f32.mrf.mxu0
    %v1568 = vadd.f32 %v1479, %v1567
    %v1569 = vpop.f32.mrf.mxu0
    %v1570 = vadd.f32 %v1481, %v1569
    %1571 = vmatmul.bf16.gmra.mxu0 %v653
    %v1572 = vpop.f32.mrf.mxu0
    %v1573 = vadd.f32 %v1484, %v1572
    %v1574 = vpop.f32.mrf.mxu0
    %v1575 = vadd.f32 %v1486, %v1574
    %1576 = vmatmul.bf16.gmra.mxu0 %v654
    %v1577 = vpop.f32.mrf.mxu0
    %v1578 = vadd.f32 %v1489, %v1577
    %v1579 = vpop.f32.mrf.mxu0
    %v1580 = vadd.f32 %v1491, %v1579
    %1581 = vmatmul.bf16.gmra.mxu0 %v655
    %v1582 = vpop.f32.mrf.mxu0
    %v1583 = vadd.f32 %v1494, %v1582
    %v1584 = vpop.f32.mrf.mxu0
    %v1585 = vadd.f32 %v1496, %v1584
    %1586 = vmatmul.bf16.gmra.mxu0 %v656
    %v1587 = vpop.f32.mrf.mxu0
    %v1588 = vadd.f32 %v1499, %v1587
    %v1589 = vpop.f32.mrf.mxu0
    %v1590 = vadd.f32 %v1501, %v1589
    %1591 = vmatmul.bf16.gmra.mxu0 %v657
    %v1592 = vpop.f32.mrf.mxu0
    %v1593 = vadd.f32 %v1504, %v1592
    %v1594 = vpop.f32.mrf.mxu0
    %v1595 = vadd.f32 %v1506, %v1594
    %1596 = vmatmul.bf16.gmra.mxu0 %v658
    %v1597 = vpop.f32.mrf.mxu0
    %v1598 = vadd.f32 %v1509, %v1597
    %v1599 = vpop.f32.mrf.mxu0
    %v1600 = vadd.f32 %v1511, %v1599
    %1601 = vmatmul.bf16.gmra.mxu0 %v659
    %v1602 = vpop.f32.mrf.mxu0
    %v1603 = vadd.f32 %v1514, %v1602
    %v1604 = vpop.f32.mrf.mxu0
    %v1605 = vadd.f32 %v1516, %v1604
    %1606 = vmatmul.bf16.gmra.mxu0 %v660
    %v1607 = vpop.f32.mrf.mxu0
    %v1608 = vadd.f32 %v1519, %v1607
    %v1609 = vpop.f32.mrf.mxu0
    %v1610 = vadd.f32 %v1521, %v1609
    %1611 = vmatmul.bf16.gmra.mxu0 %v661
    %v1612 = vpop.f32.mrf.mxu0
    %v1613 = vadd.f32 %v1524, %v1612
    %v1614 = vpop.f32.mrf.mxu0
    %v1615 = vadd.f32 %v1526, %v1614
    %1616 = vdwg.mxu0
    %1617 = vmatpush.bf16.msra.mxu0 %v1252
    %1618 = vmatpush.bf16.msra.mxu0 %v1250
    %1619 = vmatpush.bf16.msra.mxu0 %v1248
    %1620 = vmatpush.bf16.msra.mxu0 %v1246
    %1621 = vmatpush.bf16.msra.mxu0 %v1244
    %1622 = vmatpush.bf16.msra.mxu0 %v1242
    %1623 = vmatpush.bf16.msra.mxu0 %v1240
    %1624 = vmatpush.bf16.msra.mxu0 %v1238
    %1625 = vmatmul.bf16.gmra.mxu0 %v742
    %v1626 = vpop.f32.mrf.mxu0
    %v1627 = vadd.f32 %v1538, %v1626
    %v1628 = vpop.f32.mrf.mxu0
    %v1629 = vadd.f32 %v1540, %v1628
    %1630 = vmatmul.bf16.gmra.mxu0 %v743
    %v1631 = vpop.f32.mrf.mxu0
    %v1632 = vadd.f32 %v1543, %v1631
    %v1633 = vpop.f32.mrf.mxu0
    %v1634 = vadd.f32 %v1545, %v1633
    %1635 = vmatmul.bf16.gmra.mxu0 %v744
    %v1636 = vpop.f32.mrf.mxu0
    %v1637 = vadd.f32 %v1548, %v1636
    %v1638 = vpop.f32.mrf.mxu0
    %v1639 = vadd.f32 %v1550, %v1638
    %1640 = vmatmul.bf16.gmra.mxu0 %v745
    %v1641 = vpop.f32.mrf.mxu0
    %v1642 = vadd.f32 %v1553, %v1641
    %v1643 = vpop.f32.mrf.mxu0
    %v1644 = vadd.f32 %v1555, %v1643
    %1645 = vmatmul.bf16.gmra.mxu0 %v746
    %v1646 = vpop.f32.mrf.mxu0
    %v1647 = vadd.f32 %v1558, %v1646
    %v1648 = vpop.f32.mrf.mxu0
    %v1649 = vadd.f32 %v1560, %v1648
    %1650 = vmatmul.bf16.gmra.mxu0 %v747
    %v1651 = vpop.f32.mrf.mxu0
    %v1652 = vadd.f32 %v1563, %v1651
    %v1653 = vpop.f32.mrf.mxu0
    %v1654 = vadd.f32 %v1565, %v1653
    %1655 = vmatmul.bf16.gmra.mxu0 %v748
    %v1656 = vpop.f32.mrf.mxu0
    %v1657 = vadd.f32 %v1568, %v1656
    %v1658 = vpop.f32.mrf.mxu0
    %v1659 = vadd.f32 %v1570, %v1658
    %1660 = vmatmul.bf16.gmra.mxu0 %v749
    %v1661 = vpop.f32.mrf.mxu0
    %v1662 = vadd.f32 %v1573, %v1661
    %v1663 = vpop.f32.mrf.mxu0
    %v1664 = vadd.f32 %v1575, %v1663
    %1665 = vmatmul.bf16.gmra.mxu0 %v750
    %v1666 = vpop.f32.mrf.mxu0
    %v1667 = vadd.f32 %v1578, %v1666
    %v1668 = vpop.f32.mrf.mxu0
    %v1669 = vadd.f32 %v1580, %v1668
    %1670 = vmatmul.bf16.gmra.mxu0 %v751
    %v1671 = vpop.f32.mrf.mxu0
    %v1672 = vadd.f32 %v1583, %v1671
    %v1673 = vpop.f32.mrf.mxu0
    %v1674 = vadd.f32 %v1585, %v1673
    %1675 = vmatmul.bf16.gmra.mxu0 %v752
    %v1676 = vpop.f32.mrf.mxu0
    %v1677 = vadd.f32 %v1588, %v1676
    %v1678 = vpop.f32.mrf.mxu0
    %v1679 = vadd.f32 %v1590, %v1678
    %1680 = vmatmul.bf16.gmra.mxu0 %v753
    %v1681 = vpop.f32.mrf.mxu0
    %v1682 = vadd.f32 %v1593, %v1681
    %v1683 = vpop.f32.mrf.mxu0
    %v1684 = vadd.f32 %v1595, %v1683
    %1685 = vmatmul.bf16.gmra.mxu0 %v754
    %v1686 = vpop.f32.mrf.mxu0
    %v1687 = vadd.f32 %v1598, %v1686
    %v1688 = vpop.f32.mrf.mxu0
    %v1689 = vadd.f32 %v1600, %v1688
    %1690 = vmatmul.bf16.gmra.mxu0 %v755
    %v1691 = vpop.f32.mrf.mxu0
    %v1692 = vadd.f32 %v1603, %v1691
    %v1693 = vpop.f32.mrf.mxu0
    %v1694 = vadd.f32 %v1605, %v1693
    %1695 = vmatmul.bf16.gmra.mxu0 %v756
    %v1696 = vpop.f32.mrf.mxu0
    %v1697 = vadd.f32 %v1608, %v1696
    %v1698 = vpop.f32.mrf.mxu0
    %v1699 = vadd.f32 %v1610, %v1698
    %1700 = vmatmul.bf16.gmra.mxu0 %v757
    %v1701 = vpop.f32.mrf.mxu0
    %v1702 = vadd.f32 %v1613, %v1701
    %v1703 = vpop.f32.mrf.mxu0
    %v1704 = vadd.f32 %v1615, %v1703
    %1705 = vdwg.mxu0
    %1706 = vmatpush.bf16.msra.mxu0 %v1268
    %1707 = vmatpush.bf16.msra.mxu0 %v1266
    %1708 = vmatpush.bf16.msra.mxu0 %v1264
    %1709 = vmatpush.bf16.msra.mxu0 %v1262
    %1710 = vmatpush.bf16.msra.mxu0 %v1260
    %1711 = vmatpush.bf16.msra.mxu0 %v1258
    %1712 = vmatpush.bf16.msra.mxu0 %v1256
    %1713 = vmatpush.bf16.msra.mxu0 %v1254
    %1714 = vmatmul.bf16.gmra.mxu0 %v838
    %v1715 = vpop.f32.mrf.mxu0
    %v1716 = vadd.f32 %v1627, %v1715
    %v1717 = vpop.f32.mrf.mxu0
    %v1718 = vadd.f32 %v1629, %v1717
    %1719 = vmatmul.bf16.gmra.mxu0 %v839
    %v1720 = vpop.f32.mrf.mxu0
    %v1721 = vadd.f32 %v1632, %v1720
    %v1722 = vpop.f32.mrf.mxu0
    %v1723 = vadd.f32 %v1634, %v1722
    %1724 = vmatmul.bf16.gmra.mxu0 %v840
    %v1725 = vpop.f32.mrf.mxu0
    %v1726 = vadd.f32 %v1637, %v1725
    %v1727 = vpop.f32.mrf.mxu0
    %v1728 = vadd.f32 %v1639, %v1727
    %1729 = vmatmul.bf16.gmra.mxu0 %v841
    %v1730 = vpop.f32.mrf.mxu0
    %v1731 = vadd.f32 %v1642, %v1730
    %v1732 = vpop.f32.mrf.mxu0
    %v1733 = vadd.f32 %v1644, %v1732
    %1734 = vmatmul.bf16.gmra.mxu0 %v842
    %v1735 = vpop.f32.mrf.mxu0
    %v1736 = vadd.f32 %v1647, %v1735
    %v1737 = vpop.f32.mrf.mxu0
    %v1738 = vadd.f32 %v1649, %v1737
    %1739 = vmatmul.bf16.gmra.mxu0 %v843
    %v1740 = vpop.f32.mrf.mxu0
    %v1741 = vadd.f32 %v1652, %v1740
    %v1742 = vpop.f32.mrf.mxu0
    %v1743 = vadd.f32 %v1654, %v1742
    %1744 = vmatmul.bf16.gmra.mxu0 %v844
    %v1745 = vpop.f32.mrf.mxu0
    %v1746 = vadd.f32 %v1657, %v1745
    %v1747 = vpop.f32.mrf.mxu0
    %v1748 = vadd.f32 %v1659, %v1747
    %1749 = vmatmul.bf16.gmra.mxu0 %v845
    %v1750 = vpop.f32.mrf.mxu0
    %v1751 = vadd.f32 %v1662, %v1750
    %v1752 = vpop.f32.mrf.mxu0
    %v1753 = vadd.f32 %v1664, %v1752
    %1754 = vmatmul.bf16.gmra.mxu0 %v846
    %v1755 = vpop.f32.mrf.mxu0
    %v1756 = vadd.f32 %v1667, %v1755
    %v1757 = vpop.f32.mrf.mxu0
    %v1758 = vadd.f32 %v1669, %v1757
    %1759 = vmatmul.bf16.gmra.mxu0 %v847
    %v1760 = vpop.f32.mrf.mxu0
    %v1761 = vadd.f32 %v1672, %v1760
    %v1762 = vpop.f32.mrf.mxu0
    %v1763 = vadd.f32 %v1674, %v1762
    %1764 = vmatmul.bf16.gmra.mxu0 %v848
    %v1765 = vpop.f32.mrf.mxu0
    %v1766 = vadd.f32 %v1677, %v1765
    %v1767 = vpop.f32.mrf.mxu0
    %v1768 = vadd.f32 %v1679, %v1767
    %1769 = vmatmul.bf16.gmra.mxu0 %v849
    %v1770 = vpop.f32.mrf.mxu0
    %v1771 = vadd.f32 %v1682, %v1770
    %v1772 = vpop.f32.mrf.mxu0
    %v1773 = vadd.f32 %v1684, %v1772
    %1774 = vmatmul.bf16.gmra.mxu0 %v850
    %v1775 = vpop.f32.mrf.mxu0
    %v1776 = vadd.f32 %v1687, %v1775
    %v1777 = vpop.f32.mrf.mxu0
    %v1778 = vadd.f32 %v1689, %v1777
    %1779 = vmatmul.bf16.gmra.mxu0 %v851
    %v1780 = vpop.f32.mrf.mxu0
    %v1781 = vadd.f32 %v1692, %v1780
    %v1782 = vpop.f32.mrf.mxu0
    %v1783 = vadd.f32 %v1694, %v1782
    %1784 = vmatmul.bf16.gmra.mxu0 %v852
    %v1785 = vpop.f32.mrf.mxu0
    %v1786 = vadd.f32 %v1697, %v1785
    %v1787 = vpop.f32.mrf.mxu0
    %v1788 = vadd.f32 %v1699, %v1787
    %1789 = vmatmul.bf16.gmra.mxu0 %v853
    %v1790 = vpop.f32.mrf.mxu0
    %v1791 = vadd.f32 %v1702, %v1790
    %v1792 = vpop.f32.mrf.mxu0
    %v1793 = vadd.f32 %v1704, %v1792
    %1794 = vdwg.mxu0
    %1795 = vmatpush.bf16.msra.mxu0 %v1205
    %1796 = vmatpush.bf16.msra.mxu0 %v1203
    %1797 = vmatpush.bf16.msra.mxu0 %v1201
    %1798 = vmatpush.bf16.msra.mxu0 %v1199
    %1799 = vmatpush.bf16.msra.mxu0 %v1197
    %1800 = vmatpush.bf16.msra.mxu0 %v1195
    %1801 = vmatpush.bf16.msra.mxu0 %v1193
    %1802 = vmatpush.bf16.msra.mxu0 %v1191
    %1803 = vmatmul.bf16.gmra.mxu0 %v454
    %v1804 = vpop.f32.mrf.mxu0
    %v1805 = vadd.f32 0.0, %v1804
    %v1806 = vpop.f32.mrf.mxu0
    %v1807 = vadd.f32 0.0, %v1806
    %1808 = vmatmul.bf16.gmra.mxu0 %v455
    %v1809 = vpop.f32.mrf.mxu0
    %v1810 = vadd.f32 0.0, %v1809
    %v1811 = vpop.f32.mrf.mxu0
    %v1812 = vadd.f32 0.0, %v1811
    %1813 = vmatmul.bf16.gmra.mxu0 %v456
    %v1814 = vpop.f32.mrf.mxu0
    %v1815 = vadd.f32 0.0, %v1814
    %v1816 = vpop.f32.mrf.mxu0
    %v1817 = vadd.f32 0.0, %v1816
    %1818 = vmatmul.bf16.gmra.mxu0 %v457
    %v1819 = vpop.f32.mrf.mxu0
    %v1820 = vadd.f32 0.0, %v1819
    %v1821 = vpop.f32.mrf.mxu0
    %v1822 = vadd.f32 0.0, %v1821
    %1823 = vmatmul.bf16.gmra.mxu0 %v458
    %v1824 = vpop.f32.mrf.mxu0
    %v1825 = vadd.f32 0.0, %v1824
    %v1826 = vpop.f32.mrf.mxu0
    %v1827 = vadd.f32 0.0, %v1826
    %1828 = vmatmul.bf16.gmra.mxu0 %v459
    %v1829 = vpop.f32.mrf.mxu0
    %v1830 = vadd.f32 0.0, %v1829
    %v1831 = vpop.f32.mrf.mxu0
    %v1832 = vadd.f32 0.0, %v1831
    %1833 = vmatmul.bf16.gmra.mxu0 %v460
    %v1834 = vpop.f32.mrf.mxu0
    %v1835 = vadd.f32 0.0, %v1834
    %v1836 = vpop.f32.mrf.mxu0
    %v1837 = vadd.f32 0.0, %v1836
    %1838 = vmatmul.bf16.gmra.mxu0 %v461
    %v1839 = vpop.f32.mrf.mxu0
    %v1840 = vadd.f32 0.0, %v1839
    %v1841 = vpop.f32.mrf.mxu0
    %v1842 = vadd.f32 0.0, %v1841
    %1843 = vmatmul.bf16.gmra.mxu0 %v462
    %v1844 = vpop.f32.mrf.mxu0
    %v1845 = vadd.f32 0.0, %v1844
    %v1846 = vpop.f32.mrf.mxu0
    %v1847 = vadd.f32 0.0, %v1846
    %1848 = vmatmul.bf16.gmra.mxu0 %v463
    %v1849 = vpop.f32.mrf.mxu0
    %v1850 = vadd.f32 0.0, %v1849
    %v1851 = vpop.f32.mrf.mxu0
    %v1852 = vadd.f32 0.0, %v1851
    %1853 = vmatmul.bf16.gmra.mxu0 %v464
    %v1854 = vpop.f32.mrf.mxu0
    %v1855 = vadd.f32 0.0, %v1854
    %v1856 = vpop.f32.mrf.mxu0
    %v1857 = vadd.f32 0.0, %v1856
    %1858 = vmatmul.bf16.gmra.mxu0 %v465
    %v1859 = vpop.f32.mrf.mxu0
    %v1860 = vadd.f32 0.0, %v1859
    %v1861 = vpop.f32.mrf.mxu0
    %v1862 = vadd.f32 0.0, %v1861
    %1863 = vmatmul.bf16.gmra.mxu0 %v466
    %v1864 = vpop.f32.mrf.mxu0
    %v1865 = vadd.f32 0.0, %v1864
    %v1866 = vpop.f32.mrf.mxu0
    %v1867 = vadd.f32 0.0, %v1866
    %1868 = vmatmul.bf16.gmra.mxu0 %v467
    %v1869 = vpop.f32.mrf.mxu0
    %v1870 = vadd.f32 0.0, %v1869
    %v1871 = vpop.f32.mrf.mxu0
    %v1872 = vadd.f32 0.0, %v1871
    %1873 = vmatmul.bf16.gmra.mxu0 %v468
    %v1874 = vpop.f32.mrf.mxu0
    %v1875 = vadd.f32 0.0, %v1874
    %v1876 = vpop.f32.mrf.mxu0
    %v1877 = vadd.f32 0.0, %v1876
    %1878 = vmatmul.bf16.gmra.mxu0 %v469
    %v1879 = vpop.f32.mrf.mxu0
    %v1880 = vadd.f32 0.0, %v1879
    %v1881 = vpop.f32.mrf.mxu0
    %v1882 = vadd.f32 0.0, %v1881
    %1883 = vdwg.mxu0
    %1884 = vmatpush.bf16.msra.mxu0 %v1221
    %1885 = vmatpush.bf16.msra.mxu0 %v1219
    %1886 = vmatpush.bf16.msra.mxu0 %v1217
    %1887 = vmatpush.bf16.msra.mxu0 %v1215
    %1888 = vmatpush.bf16.msra.mxu0 %v1213
    %1889 = vmatpush.bf16.msra.mxu0 %v1211
    %1890 = vmatpush.bf16.msra.mxu0 %v1209
    %1891 = vmatpush.bf16.msra.mxu0 %v1207
    %1892 = vmatmul.bf16.gmra.mxu0 %v550
    %v1893 = vpop.f32.mrf.mxu0
    %v1894 = vadd.f32 %v1805, %v1893
    %v1895 = vpop.f32.mrf.mxu0
    %v1896 = vadd.f32 %v1807, %v1895
    %1897 = vmatmul.bf16.gmra.mxu0 %v551
    %v1898 = vpop.f32.mrf.mxu0
    %v1899 = vadd.f32 %v1810, %v1898
    %v1900 = vpop.f32.mrf.mxu0
    %v1901 = vadd.f32 %v1812, %v1900
    %1902 = vmatmul.bf16.gmra.mxu0 %v552
    %v1903 = vpop.f32.mrf.mxu0
    %v1904 = vadd.f32 %v1815, %v1903
    %v1905 = vpop.f32.mrf.mxu0
    %v1906 = vadd.f32 %v1817, %v1905
    %1907 = vmatmul.bf16.gmra.mxu0 %v553
    %v1908 = vpop.f32.mrf.mxu0
    %v1909 = vadd.f32 %v1820, %v1908
    %v1910 = vpop.f32.mrf.mxu0
    %v1911 = vadd.f32 %v1822, %v1910
    %1912 = vmatmul.bf16.gmra.mxu0 %v554
    %v1913 = vpop.f32.mrf.mxu0
    %v1914 = vadd.f32 %v1825, %v1913
    %v1915 = vpop.f32.mrf.mxu0
    %v1916 = vadd.f32 %v1827, %v1915
    %1917 = vmatmul.bf16.gmra.mxu0 %v555
    %v1918 = vpop.f32.mrf.mxu0
    %v1919 = vadd.f32 %v1830, %v1918
    %v1920 = vpop.f32.mrf.mxu0
    %v1921 = vadd.f32 %v1832, %v1920
    %1922 = vmatmul.bf16.gmra.mxu0 %v556
    %v1923 = vpop.f32.mrf.mxu0
    %v1924 = vadd.f32 %v1835, %v1923
    %v1925 = vpop.f32.mrf.mxu0
    %v1926 = vadd.f32 %v1837, %v1925
    %1927 = vmatmul.bf16.gmra.mxu0 %v557
    %v1928 = vpop.f32.mrf.mxu0
    %v1929 = vadd.f32 %v1840, %v1928
    %v1930 = vpop.f32.mrf.mxu0
    %v1931 = vadd.f32 %v1842, %v1930
    %1932 = vmatmul.bf16.gmra.mxu0 %v558
    %v1933 = vpop.f32.mrf.mxu0
    %v1934 = vadd.f32 %v1845, %v1933
    %v1935 = vpop.f32.mrf.mxu0
    %v1936 = vadd.f32 %v1847, %v1935
    %1937 = vmatmul.bf16.gmra.mxu0 %v559
    %v1938 = vpop.f32.mrf.mxu0
    %v1939 = vadd.f32 %v1850, %v1938
    %v1940 = vpop.f32.mrf.mxu0
    %v1941 = vadd.f32 %v1852, %v1940
    %1942 = vmatmul.bf16.gmra.mxu0 %v560
    %v1943 = vpop.f32.mrf.mxu0
    %v1944 = vadd.f32 %v1855, %v1943
    %v1945 = vpop.f32.mrf.mxu0
    %v1946 = vadd.f32 %v1857, %v1945
    %1947 = vmatmul.bf16.gmra.mxu0 %v561
    %v1948 = vpop.f32.mrf.mxu0
    %v1949 = vadd.f32 %v1860, %v1948
    %v1950 = vpop.f32.mrf.mxu0
    %v1951 = vadd.f32 %v1862, %v1950
    %1952 = vmatmul.bf16.gmra.mxu0 %v562
    %v1953 = vpop.f32.mrf.mxu0
    %v1954 = vadd.f32 %v1865, %v1953
    %v1955 = vpop.f32.mrf.mxu0
    %v1956 = vadd.f32 %v1867, %v1955
    %1957 = vmatmul.bf16.gmra.mxu0 %v563
    %v1958 = vpop.f32.mrf.mxu0
    %v1959 = vadd.f32 %v1870, %v1958
    %v1960 = vpop.f32.mrf.mxu0
    %v1961 = vadd.f32 %v1872, %v1960
    %1962 = vmatmul.bf16.gmra.mxu0 %v564
    %v1963 = vpop.f32.mrf.mxu0
    %v1964 = vadd.f32 %v1875, %v1963
    %v1965 = vpop.f32.mrf.mxu0
    %v1966 = vadd.f32 %v1877, %v1965
    %1967 = vmatmul.bf16.gmra.mxu0 %v565
    %v1968 = vpop.f32.mrf.mxu0
    %v1969 = vadd.f32 %v1880, %v1968
    %v1970 = vpop.f32.mrf.mxu0
    %v1971 = vadd.f32 %v1882, %v1970
    %1972 = vdwg.mxu0
    %1973 = vmatpush.bf16.msra.mxu0 %v1237
    %1974 = vmatpush.bf16.msra.mxu0 %v1235
    %1975 = vmatpush.bf16.msra.mxu0 %v1233
    %1976 = vmatpush.bf16.msra.mxu0 %v1231
    %1977 = vmatpush.bf16.msra.mxu0 %v1229
    %1978 = vmatpush.bf16.msra.mxu0 %v1227
    %1979 = vmatpush.bf16.msra.mxu0 %v1225
    %1980 = vmatpush.bf16.msra.mxu0 %v1223
    %1981 = vmatmul.bf16.gmra.mxu0 %v646
    %v1982 = vpop.f32.mrf.mxu0
    %v1983 = vadd.f32 %v1894, %v1982
    %v1984 = vpop.f32.mrf.mxu0
    %v1985 = vadd.f32 %v1896, %v1984
    %1986 = vmatmul.bf16.gmra.mxu0 %v647
    %v1987 = vpop.f32.mrf.mxu0
    %v1988 = vadd.f32 %v1899, %v1987
    %v1989 = vpop.f32.mrf.mxu0
    %v1990 = vadd.f32 %v1901, %v1989
    %1991 = vmatmul.bf16.gmra.mxu0 %v648
    %v1992 = vpop.f32.mrf.mxu0
    %v1993 = vadd.f32 %v1904, %v1992
    %v1994 = vpop.f32.mrf.mxu0
    %v1995 = vadd.f32 %v1906, %v1994
    %1996 = vmatmul.bf16.gmra.mxu0 %v649
    %v1997 = vpop.f32.mrf.mxu0
    %v1998 = vadd.f32 %v1909, %v1997
    %v1999 = vpop.f32.mrf.mxu0
    %v2000 = vadd.f32 %v1911, %v1999
    %2001 = vmatmul.bf16.gmra.mxu0 %v650
    %v2002 = vpop.f32.mrf.mxu0
    %v2003 = vadd.f32 %v1914, %v2002
    %v2004 = vpop.f32.mrf.mxu0
    %v2005 = vadd.f32 %v1916, %v2004
    %2006 = vmatmul.bf16.gmra.mxu0 %v651
    %v2007 = vpop.f32.mrf.mxu0
    %v2008 = vadd.f32 %v1919, %v2007
    %v2009 = vpop.f32.mrf.mxu0
    %v2010 = vadd.f32 %v1921, %v2009
    %2011 = vmatmul.bf16.gmra.mxu0 %v652
    %v2012 = vpop.f32.mrf.mxu0
    %v2013 = vadd.f32 %v1924, %v2012
    %v2014 = vpop.f32.mrf.mxu0
    %v2015 = vadd.f32 %v1926, %v2014
    %2016 = vmatmul.bf16.gmra.mxu0 %v653
    %v2017 = vpop.f32.mrf.mxu0
    %v2018 = vadd.f32 %v1929, %v2017
    %v2019 = vpop.f32.mrf.mxu0
    %v2020 = vadd.f32 %v1931, %v2019
    %2021 = vmatmul.bf16.gmra.mxu0 %v654
    %v2022 = vpop.f32.mrf.mxu0
    %v2023 = vadd.f32 %v1934, %v2022
    %v2024 = vpop.f32.mrf.mxu0
    %v2025 = vadd.f32 %v1936, %v2024
    %2026 = vmatmul.bf16.gmra.mxu0 %v655
    %v2027 = vpop.f32.mrf.mxu0
    %v2028 = vadd.f32 %v1939, %v2027
    %v2029 = vpop.f32.mrf.mxu0
    %v2030 = vadd.f32 %v1941, %v2029
    %2031 = vmatmul.bf16.gmra.mxu0 %v656
    %v2032 = vpop.f32.mrf.mxu0
    %v2033 = vadd.f32 %v1944, %v2032
    %v2034 = vpop.f32.mrf.mxu0
    %v2035 = vadd.f32 %v1946, %v2034
    %2036 = vmatmul.bf16.gmra.mxu0 %v657
    %v2037 = vpop.f32.mrf.mxu0
    %v2038 = vadd.f32 %v1949, %v2037
    %v2039 = vpop.f32.mrf.mxu0
    %v2040 = vadd.f32 %v1951, %v2039
    %2041 = vmatmul.bf16.gmra.mxu0 %v658
    %v2042 = vpop.f32.mrf.mxu0
    %v2043 = vadd.f32 %v1954, %v2042
    %v2044 = vpop.f32.mrf.mxu0
    %v2045 = vadd.f32 %v1956, %v2044
    %2046 = vmatmul.bf16.gmra.mxu0 %v659
    %v2047 = vpop.f32.mrf.mxu0
    %v2048 = vadd.f32 %v1959, %v2047
    %v2049 = vpop.f32.mrf.mxu0
    %v2050 = vadd.f32 %v1961, %v2049
    %2051 = vmatmul.bf16.gmra.mxu0 %v660
    %v2052 = vpop.f32.mrf.mxu0
    %v2053 = vadd.f32 %v1964, %v2052
    %v2054 = vpop.f32.mrf.mxu0
    %v2055 = vadd.f32 %v1966, %v2054
    %2056 = vmatmul.bf16.gmra.mxu0 %v661
    %v2057 = vpop.f32.mrf.mxu0
    %v2058 = vadd.f32 %v1969, %v2057
    %v2059 = vpop.f32.mrf.mxu0
    %v2060 = vadd.f32 %v1971, %v2059
    %2061 = vdwg.mxu0
    %2062 = vmatpush.bf16.msra.mxu0 %v1253
    %2063 = vmatpush.bf16.msra.mxu0 %v1251
    %2064 = vmatpush.bf16.msra.mxu0 %v1249
    %2065 = vmatpush.bf16.msra.mxu0 %v1247
    %2066 = vmatpush.bf16.msra.mxu0 %v1245
    %2067 = vmatpush.bf16.msra.mxu0 %v1243
    %2068 = vmatpush.bf16.msra.mxu0 %v1241
    %2069 = vmatpush.bf16.msra.mxu0 %v1239
    %2070 = vmatmul.bf16.gmra.mxu0 %v742
    %v2071 = vpop.f32.mrf.mxu0
    %v2072 = vadd.f32 %v1983, %v2071
    %v2073 = vpop.f32.mrf.mxu0
    %v2074 = vadd.f32 %v1985, %v2073
    %2075 = vmatmul.bf16.gmra.mxu0 %v743
    %v2076 = vpop.f32.mrf.mxu0
    %v2077 = vadd.f32 %v1988, %v2076
    %v2078 = vpop.f32.mrf.mxu0
    %v2079 = vadd.f32 %v1990, %v2078
    %2080 = vmatmul.bf16.gmra.mxu0 %v744
    %v2081 = vpop.f32.mrf.mxu0
    %v2082 = vadd.f32 %v1993, %v2081
    %v2083 = vpop.f32.mrf.mxu0
    %v2084 = vadd.f32 %v1995, %v2083
    %2085 = vmatmul.bf16.gmra.mxu0 %v745
    %v2086 = vpop.f32.mrf.mxu0
    %v2087 = vadd.f32 %v1998, %v2086
    %v2088 = vpop.f32.mrf.mxu0
    %v2089 = vadd.f32 %v2000, %v2088
    %2090 = vmatmul.bf16.gmra.mxu0 %v746
    %v2091 = vpop.f32.mrf.mxu0
    %v2092 = vadd.f32 %v2003, %v2091
    %v2093 = vpop.f32.mrf.mxu0
    %v2094 = vadd.f32 %v2005, %v2093
    %2095 = vmatmul.bf16.gmra.mxu0 %v747
    %v2096 = vpop.f32.mrf.mxu0
    %v2097 = vadd.f32 %v2008, %v2096
    %v2098 = vpop.f32.mrf.mxu0
    %v2099 = vadd.f32 %v2010, %v2098
    %2100 = vmatmul.bf16.gmra.mxu0 %v748
    %v2101 = vpop.f32.mrf.mxu0
    %v2102 = vadd.f32 %v2013, %v2101
    %v2103 = vpop.f32.mrf.mxu0
    %v2104 = vadd.f32 %v2015, %v2103
    %2105 = vmatmul.bf16.gmra.mxu0 %v749
    %v2106 = vpop.f32.mrf.mxu0
    %v2107 = vadd.f32 %v2018, %v2106
    %v2108 = vpop.f32.mrf.mxu0
    %v2109 = vadd.f32 %v2020, %v2108
    %2110 = vmatmul.bf16.gmra.mxu0 %v750
    %v2111 = vpop.f32.mrf.mxu0
    %v2112 = vadd.f32 %v2023, %v2111
    %v2113 = vpop.f32.mrf.mxu0
    %v2114 = vadd.f32 %v2025, %v2113
    %2115 = vmatmul.bf16.gmra.mxu0 %v751
    %v2116 = vpop.f32.mrf.mxu0
    %v2117 = vadd.f32 %v2028, %v2116
    %v2118 = vpop.f32.mrf.mxu0
    %v2119 = vadd.f32 %v2030, %v2118
    %2120 = vmatmul.bf16.gmra.mxu0 %v752
    %v2121 = vpop.f32.mrf.mxu0
    %v2122 = vadd.f32 %v2033, %v2121
    %v2123 = vpop.f32.mrf.mxu0
    %v2124 = vadd.f32 %v2035, %v2123
    %2125 = vmatmul.bf16.gmra.mxu0 %v753
    %v2126 = vpop.f32.mrf.mxu0
    %v2127 = vadd.f32 %v2038, %v2126
    %v2128 = vpop.f32.mrf.mxu0
    %v2129 = vadd.f32 %v2040, %v2128
    %2130 = vmatmul.bf16.gmra.mxu0 %v754
    %v2131 = vpop.f32.mrf.mxu0
    %v2132 = vadd.f32 %v2043, %v2131
    %v2133 = vpop.f32.mrf.mxu0
    %v2134 = vadd.f32 %v2045, %v2133
    %2135 = vmatmul.bf16.gmra.mxu0 %v755
    %v2136 = vpop.f32.mrf.mxu0
    %v2137 = vadd.f32 %v2048, %v2136
    %v2138 = vpop.f32.mrf.mxu0
    %v2139 = vadd.f32 %v2050, %v2138
    %2140 = vmatmul.bf16.gmra.mxu0 %v756
    %v2141 = vpop.f32.mrf.mxu0
    %v2142 = vadd.f32 %v2053, %v2141
    %v2143 = vpop.f32.mrf.mxu0
    %v2144 = vadd.f32 %v2055, %v2143
    %2145 = vmatmul.bf16.gmra.mxu0 %v757
    %v2146 = vpop.f32.mrf.mxu0
    %v2147 = vadd.f32 %v2058, %v2146
    %v2148 = vpop.f32.mrf.mxu0
    %v2149 = vadd.f32 %v2060, %v2148
    %2150 = vdwg.mxu0
    %2151 = vmatpush.bf16.msra.mxu0 %v1269
    %2152 = vmatpush.bf16.msra.mxu0 %v1267
    %2153 = vmatpush.bf16.msra.mxu0 %v1265
    %2154 = vmatpush.bf16.msra.mxu0 %v1263
    %2155 = vmatpush.bf16.msra.mxu0 %v1261
    %2156 = vmatpush.bf16.msra.mxu0 %v1259
    %2157 = vmatpush.bf16.msra.mxu0 %v1257
    %2158 = vmatpush.bf16.msra.mxu0 %v1255
    %2159 = vmatmul.bf16.gmra.mxu0 %v838
    %v2160 = vpop.f32.mrf.mxu0
    %v2161 = vadd.f32 %v2072, %v2160
    %v2162 = vpop.f32.mrf.mxu0
    %v2163 = vadd.f32 %v2074, %v2162
    %2164 = vmatmul.bf16.gmra.mxu0 %v839
    %v2165 = vpop.f32.mrf.mxu0
    %v2166 = vadd.f32 %v2077, %v2165
    %v2167 = vpop.f32.mrf.mxu0
    %v2168 = vadd.f32 %v2079, %v2167
    %2169 = vmatmul.bf16.gmra.mxu0 %v840
    %v2170 = vpop.f32.mrf.mxu0
    %v2171 = vadd.f32 %v2082, %v2170
    %v2172 = vpop.f32.mrf.mxu0
    %v2173 = vadd.f32 %v2084, %v2172
    %2174 = vmatmul.bf16.gmra.mxu0 %v841
    %v2175 = vpop.f32.mrf.mxu0
    %v2176 = vadd.f32 %v2087, %v2175
    %v2177 = vpop.f32.mrf.mxu0
    %v2178 = vadd.f32 %v2089, %v2177
    %2179 = vmatmul.bf16.gmra.mxu0 %v842
    %v2180 = vpop.f32.mrf.mxu0
    %v2181 = vadd.f32 %v2092, %v2180
    %v2182 = vpop.f32.mrf.mxu0
    %v2183 = vadd.f32 %v2094, %v2182
    %2184 = vmatmul.bf16.gmra.mxu0 %v843
    %v2185 = vpop.f32.mrf.mxu0
    %v2186 = vadd.f32 %v2097, %v2185
    %v2187 = vpop.f32.mrf.mxu0
    %v2188 = vadd.f32 %v2099, %v2187
    %2189 = vmatmul.bf16.gmra.mxu0 %v844
    %v2190 = vpop.f32.mrf.mxu0
    %v2191 = vadd.f32 %v2102, %v2190
    %v2192 = vpop.f32.mrf.mxu0
    %v2193 = vadd.f32 %v2104, %v2192
    %2194 = vmatmul.bf16.gmra.mxu0 %v845
    %v2195 = vpop.f32.mrf.mxu0
    %v2196 = vadd.f32 %v2107, %v2195
    %v2197 = vpop.f32.mrf.mxu0
    %v2198 = vadd.f32 %v2109, %v2197
    %2199 = vmatmul.bf16.gmra.mxu0 %v846
    %v2200 = vpop.f32.mrf.mxu0
    %v2201 = vadd.f32 %v2112, %v2200
    %v2202 = vpop.f32.mrf.mxu0
    %v2203 = vadd.f32 %v2114, %v2202
    %2204 = vmatmul.bf16.gmra.mxu0 %v847
    %v2205 = vpop.f32.mrf.mxu0
    %v2206 = vadd.f32 %v2117, %v2205
    %v2207 = vpop.f32.mrf.mxu0
    %v2208 = vadd.f32 %v2119, %v2207
    %2209 = vmatmul.bf16.gmra.mxu0 %v848
    %v2210 = vpop.f32.mrf.mxu0
    %v2211 = vadd.f32 %v2122, %v2210
    %v2212 = vpop.f32.mrf.mxu0
    %v2213 = vadd.f32 %v2124, %v2212
    %2214 = vmatmul.bf16.gmra.mxu0 %v849
    %v2215 = vpop.f32.mrf.mxu0
    %v2216 = vadd.f32 %v2127, %v2215
    %v2217 = vpop.f32.mrf.mxu0
    %v2218 = vadd.f32 %v2129, %v2217
    %2219 = vmatmul.bf16.gmra.mxu0 %v850
    %v2220 = vpop.f32.mrf.mxu0
    %v2221 = vadd.f32 %v2132, %v2220
    %v2222 = vpop.f32.mrf.mxu0
    %v2223 = vadd.f32 %v2134, %v2222
    %2224 = vmatmul.bf16.gmra.mxu0 %v851
    %v2225 = vpop.f32.mrf.mxu0
    %v2226 = vadd.f32 %v2137, %v2225
    %v2227 = vpop.f32.mrf.mxu0
    %v2228 = vadd.f32 %v2139, %v2227
    %2229 = vmatmul.bf16.gmra.mxu0 %v852
    %v2230 = vpop.f32.mrf.mxu0
    %v2231 = vadd.f32 %v2142, %v2230
    %v2232 = vpop.f32.mrf.mxu0
    %v2233 = vadd.f32 %v2144, %v2232
    %2234 = vmatmul.bf16.gmra.mxu0 %v853
    %v2235 = vpop.f32.mrf.mxu0
    %v2236 = vadd.f32 %v2147, %v2235
    %v2237 = vpop.f32.mrf.mxu0
    %v2238 = vadd.f32 %v2149, %v2237
    %2239 = vdwg.mxu0
    %vm2304 = vcmask 1046528
    %v2305 = vrot.slane %v1716, 1
    %v2306 = vrot.slane %v1718, 1
    %v2307 = vsel %vm2304, %v2305, %v2306
    %v2308 = vrot.slane %v2161, 1
    %v2309 = vrot.slane %v2163, 1
    %v2310 = vsel %vm2304, %v2308, %v2309
    %v2311 = vrot.slane %v1721, 1
    %v2312 = vsel %vm2304, %v2306, %v2311
    %v2313 = vrot.slane %v2166, 1
    %v2314 = vsel %vm2304, %v2309, %v2313
    %v2315 = vrot.slane %v1723, 1
    %v2316 = vsel %vm2304, %v2311, %v2315
    %v2317 = vrot.slane %v2168, 1
    %v2318 = vsel %vm2304, %v2313, %v2317
    %v2319 = vrot.slane %v1726, 1
    %v2320 = vrot.slane %v1728, 1
    %v2321 = vsel %vm2304, %v2319, %v2320
    %v2322 = vrot.slane %v2171, 1
    %v2323 = vrot.slane %v2173, 1
    %v2324 = vsel %vm2304, %v2322, %v2323
    %v2325 = vrot.slane %v1731, 1
    %v2326 = vsel %vm2304, %v2320, %v2325
    %v2327 = vrot.slane %v2176, 1
    %v2328 = vsel %vm2304, %v2323, %v2327
    %v2329 = vrot.slane %v1733, 1
    %v2330 = vsel %vm2304, %v2325, %v2329
    %v2331 = vrot.slane %v2178, 1
    %v2332 = vsel %vm2304, %v2327, %v2331
    %v2333 = vrot.slane %v1736, 1
    %v2334 = vrot.slane %v1738, 1
    %v2335 = vsel %vm2304, %v2333, %v2334
    %v2336 = vrot.slane %v2181, 1
    %v2337 = vrot.slane %v2183, 1
    %v2338 = vsel %vm2304, %v2336, %v2337
    %v2339 = vrot.slane %v1741, 1
    %v2340 = vsel %vm2304, %v2334, %v2339
    %v2341 = vrot.slane %v2186, 1
    %v2342 = vsel %vm2304, %v2337, %v2341
    %v2343 = vrot.slane %v1743, 1
    %v2344 = vsel %vm2304, %v2339, %v2343
    %v2345 = vrot.slane %v2188, 1
    %v2346 = vsel %vm2304, %v2341, %v2345
    %v2347 = vrot.slane %v1746, 1
    %v2348 = vrot.slane %v1748, 1
    %v2349 = vsel %vm2304, %v2347, %v2348
    %v2350 = vrot.slane %v2191, 1
    %v2351 = vrot.slane %v2193, 1
    %v2352 = vsel %vm2304, %v2350, %v2351
    %v2353 = vrot.slane %v1751, 1
    %v2354 = vsel %vm2304, %v2348, %v2353
    %v2355 = vrot.slane %v2196, 1
    %v2356 = vsel %vm2304, %v2351, %v2355
    %v2357 = vrot.slane %v1753, 1
    %v2358 = vsel %vm2304, %v2353, %v2357
    %v2359 = vrot.slane %v2198, 1
    %v2360 = vsel %vm2304, %v2355, %v2359
    %v2361 = vrot.slane %v1756, 1
    %v2362 = vrot.slane %v1758, 1
    %v2363 = vsel %vm2304, %v2361, %v2362
    %v2364 = vrot.slane %v2201, 1
    %v2365 = vrot.slane %v2203, 1
    %v2366 = vsel %vm2304, %v2364, %v2365
    %v2367 = vrot.slane %v1761, 1
    %v2368 = vsel %vm2304, %v2362, %v2367
    %v2369 = vrot.slane %v2206, 1
    %v2370 = vsel %vm2304, %v2365, %v2369
    %v2371 = vrot.slane %v1763, 1
    %v2372 = vsel %vm2304, %v2367, %v2371
    %v2373 = vrot.slane %v2208, 1
    %v2374 = vsel %vm2304, %v2369, %v2373
    %v2375 = vrot.slane %v1766, 1
    %v2376 = vrot.slane %v1768, 1
    %v2377 = vsel %vm2304, %v2375, %v2376
    %v2378 = vrot.slane %v2211, 1
    %v2379 = vrot.slane %v2213, 1
    %v2380 = vsel %vm2304, %v2378, %v2379
    %v2381 = vrot.slane %v1771, 1
    %v2382 = vsel %vm2304, %v2376, %v2381
    %v2383 = vrot.slane %v2216, 1
    %v2384 = vsel %vm2304, %v2379, %v2383
    %v2385 = vrot.slane %v1773, 1
    %v2386 = vsel %vm2304, %v2381, %v2385
    %v2387 = vrot.slane %v2218, 1
    %v2388 = vsel %vm2304, %v2383, %v2387
    %v2389 = vrot.slane %v1776, 1
    %v2390 = vrot.slane %v1778, 1
    %v2391 = vsel %vm2304, %v2389, %v2390
    %v2392 = vrot.slane %v2221, 1
    %v2393 = vrot.slane %v2223, 1
    %v2394 = vsel %vm2304, %v2392, %v2393
    %v2395 = vrot.slane %v1781, 1
    %v2396 = vsel %vm2304, %v2390, %v2395
    %v2397 = vrot.slane %v2226, 1
    %v2398 = vsel %vm2304, %v2393, %v2397
    %v2399 = vrot.slane %v1783, 1
    %v2400 = vsel %vm2304, %v2395, %v2399
    %v2401 = vrot.slane %v2228, 1
    %v2402 = vsel %vm2304, %v2397, %v2401
    %v2403 = vrot.slane %v1786, 1
    %v2404 = vrot.slane %v1788, 1
    %v2405 = vsel %vm2304, %v2403, %v2404
    %v2406 = vrot.slane %v2231, 1
    %v2407 = vrot.slane %v2233, 1
    %v2408 = vsel %vm2304, %v2406, %v2407
    %v2409 = vrot.slane %v1791, 1
    %v2410 = vsel %vm2304, %v2404, %v2409
    %v2411 = vrot.slane %v2236, 1
    %v2412 = vsel %vm2304, %v2407, %v2411
    %v2413 = vrot.slane %v1793, 1
    %v2414 = vsel %vm2304, %v2409, %v2413
    %v2415 = vrot.slane %v2238, 1
    %v2416 = vsel %vm2304, %v2411, %v2415
    %v2465 = vmax.f32 %v1716, %v2307
    %v2466 = vmax.f32 %v2161, %v2310
    %v2467 = vmax.f32 %v1718, %v2312
    %v2468 = vmax.f32 %v2163, %v2314
    %v2469 = vmax.f32 %v1721, %v2316
    %v2470 = vmax.f32 %v2166, %v2318
    %v2471 = vmax.f32 %v1726, %v2321
    %v2472 = vmax.f32 %v2171, %v2324
    %v2473 = vmax.f32 %v1728, %v2326
    %v2474 = vmax.f32 %v2173, %v2328
    %v2475 = vmax.f32 %v1731, %v2330
    %v2476 = vmax.f32 %v2176, %v2332
    %v2477 = vmax.f32 %v1736, %v2335
    %v2478 = vmax.f32 %v2181, %v2338
    %v2479 = vmax.f32 %v1738, %v2340
    %v2480 = vmax.f32 %v2183, %v2342
    %v2481 = vmax.f32 %v1741, %v2344
    %v2482 = vmax.f32 %v2186, %v2346
    %v2483 = vmax.f32 %v1746, %v2349
    %v2484 = vmax.f32 %v2191, %v2352
    %v2485 = vmax.f32 %v1748, %v2354
    %v2486 = vmax.f32 %v2193, %v2356
    %v2487 = vmax.f32 %v1751, %v2358
    %v2488 = vmax.f32 %v2196, %v2360
    %v2489 = vmax.f32 %v1756, %v2363
    %v2490 = vmax.f32 %v2201, %v2366
    %v2491 = vmax.f32 %v1758, %v2368
    %v2492 = vmax.f32 %v2203, %v2370
    %v2493 = vmax.f32 %v1761, %v2372
    %v2494 = vmax.f32 %v2206, %v2374
    %v2495 = vmax.f32 %v1766, %v2377
    %v2496 = vmax.f32 %v2211, %v2380
    %v2497 = vmax.f32 %v1768, %v2382
    %v2498 = vmax.f32 %v2213, %v2384
    %v2499 = vmax.f32 %v1771, %v2386
    %v2500 = vmax.f32 %v2216, %v2388
    %v2501 = vmax.f32 %v1776, %v2391
    %v2502 = vmax.f32 %v2221, %v2394
    %v2503 = vmax.f32 %v1778, %v2396
    %v2504 = vmax.f32 %v2223, %v2398
    %v2505 = vmax.f32 %v1781, %v2400
    %v2506 = vmax.f32 %v2226, %v2402
    %v2507 = vmax.f32 %v1786, %v2405
    %v2508 = vmax.f32 %v2231, %v2408
    %v2509 = vmax.f32 %v1788, %v2410
    %v2510 = vmax.f32 %v2233, %v2412
    %v2511 = vmax.f32 %v1791, %v2414
    %v2512 = vmax.f32 %v2236, %v2416
    %v2513 = vmax.f32 %v2465, %v2466
    %v2514 = vmax.f32 %v2467, %v2468
    %v2515 = vmax.f32 %v2469, %v2470
    %v2516 = vmax.f32 %v2471, %v2472
    %v2517 = vmax.f32 %v2473, %v2474
    %v2518 = vmax.f32 %v2475, %v2476
    %v2519 = vmax.f32 %v2477, %v2478
    %v2520 = vmax.f32 %v2479, %v2480
    %v2521 = vmax.f32 %v2481, %v2482
    %v2522 = vmax.f32 %v2483, %v2484
    %v2523 = vmax.f32 %v2485, %v2486
    %v2524 = vmax.f32 %v2487, %v2488
    %v2525 = vmax.f32 %v2489, %v2490
    %v2526 = vmax.f32 %v2491, %v2492
    %v2527 = vmax.f32 %v2493, %v2494
    %v2528 = vmax.f32 %v2495, %v2496
    %v2529 = vmax.f32 %v2497, %v2498
    %v2530 = vmax.f32 %v2499, %v2500
    %v2531 = vmax.f32 %v2501, %v2502
    %v2532 = vmax.f32 %v2503, %v2504
    %v2533 = vmax.f32 %v2505, %v2506
    %v2534 = vmax.f32 %v2507, %v2508
    %v2535 = vmax.f32 %v2509, %v2510
    %v2536 = vmax.f32 %v2511, %v2512
    %v2537 = vmax.f32 %v2513, 0.0
    %v2538 = vmax.f32 %v2514, 0.0
    %v2539 = vmax.f32 %v2515, 0.0
    %v2540 = vmax.f32 %v2516, 0.0
    %v2541 = vmax.f32 %v2517, 0.0
    %v2542 = vmax.f32 %v2518, 0.0
    %v2543 = vmax.f32 %v2519, 0.0
    %v2544 = vmax.f32 %v2520, 0.0
    %v2545 = vmax.f32 %v2521, 0.0
    %v2546 = vmax.f32 %v2522, 0.0
    %v2547 = vmax.f32 %v2523, 0.0
    %v2548 = vmax.f32 %v2524, 0.0
    %v2549 = vmax.f32 %v2525, 0.0
    %v2550 = vmax.f32 %v2526, 0.0
    %v2551 = vmax.f32 %v2527, 0.0
    %v2552 = vmax.f32 %v2528, 0.0
    %v2553 = vmax.f32 %v2529, 0.0
    %v2554 = vmax.f32 %v2530, 0.0
    %v2555 = vmax.f32 %v2531, 0.0
    %v2556 = vmax.f32 %v2532, 0.0
    %v2557 = vmax.f32 %v2533, 0.0
    %v2558 = vmax.f32 %v2534, 0.0
    %v2559 = vmax.f32 %v2535, 0.0
    %v2560 = vmax.f32 %v2536, 0.0
    %v2561 = vld [vmem:[%s2] sm:$0x1]
    %v2563 = vperm.slane %v2561, 0
    %v2565 = vmul.f32 %v2537, %v2563
    %v2566 = vmul.f32 %v2538, %v2563
    %v2567 = vmul.f32 %v2539, %v2563
    %v2568 = vmul.f32 %v2540, %v2563
    %v2569 = vmul.f32 %v2541, %v2563
    %v2570 = vmul.f32 %v2542, %v2563
    %v2571 = vmul.f32 %v2543, %v2563
    %v2572 = vmul.f32 %v2544, %v2563
    %v2573 = vmul.f32 %v2545, %v2563
    %v2574 = vmul.f32 %v2546, %v2563
    %v2575 = vmul.f32 %v2547, %v2563
    %v2576 = vmul.f32 %v2548, %v2563
    %v2577 = vmul.f32 %v2549, %v2563
    %v2578 = vmul.f32 %v2550, %v2563
    %v2579 = vmul.f32 %v2551, %v2563
    %v2580 = vmul.f32 %v2552, %v2563
    %v2581 = vmul.f32 %v2553, %v2563
    %v2582 = vmul.f32 %v2554, %v2563
    %v2583 = vmul.f32 %v2555, %v2563
    %v2584 = vmul.f32 %v2556, %v2563
    %v2585 = vmul.f32 %v2557, %v2563
    %v2586 = vmul.f32 %v2558, %v2563
    %v2587 = vmul.f32 %v2559, %v2563
    %v2588 = vmul.f32 %v2560, %v2563
    %v2589 = vld [vmem:[%s3] sm:$0x1]
    %v2591 = vperm.slane %v2589, 0
    %v2593 = vadd.f32 %v2565, %v2591
    %v2594 = vadd.f32 %v2566, %v2591
    %v2595 = vadd.f32 %v2567, %v2591
    %v2596 = vadd.f32 %v2568, %v2591
    %v2597 = vadd.f32 %v2569, %v2591
    %v2598 = vadd.f32 %v2570, %v2591
    %v2599 = vadd.f32 %v2571, %v2591
    %v2600 = vadd.f32 %v2572, %v2591
    %v2601 = vadd.f32 %v2573, %v2591
    %v2602 = vadd.f32 %v2574, %v2591
    %v2603 = vadd.f32 %v2575, %v2591
    %v2604 = vadd.f32 %v2576, %v2591
    %v2605 = vadd.f32 %v2577, %v2591
    %v2606 = vadd.f32 %v2578, %v2591
    %v2607 = vadd.f32 %v2579, %v2591
    %v2608 = vadd.f32 %v2580, %v2591
    %v2609 = vadd.f32 %v2581, %v2591
    %v2610 = vadd.f32 %v2582, %v2591
    %v2611 = vadd.f32 %v2583, %v2591
    %v2612 = vadd.f32 %v2584, %v2591
    %v2613 = vadd.f32 %v2585, %v2591
    %v2614 = vadd.f32 %v2586, %v2591
    %v2615 = vadd.f32 %v2587, %v2591
    %v2616 = vadd.f32 %v2588, %v2591
    %v2617 = vpack.c.bf16 %v2593, %v2593
    %v2618 = vpack.c.bf16 %v2594, %v2594
    %v2619 = vpack.c.bf16 %v2596, %v2596
    %v2620 = vpack.c.bf16 %v2597, %v2597
    %v2621 = vpack.c.bf16 %v2599, %v2599
    %v2622 = vpack.c.bf16 %v2600, %v2600
    %v2623 = vpack.c.bf16 %v2602, %v2602
    %v2624 = vpack.c.bf16 %v2603, %v2603
    %v2625 = vpack.c.bf16 %v2605, %v2605
    %v2626 = vpack.c.bf16 %v2606, %v2606
    %v2627 = vpack.c.bf16 %v2608, %v2608
    %v2628 = vpack.c.bf16 %v2609, %v2609
    %v2629 = vpack.c.bf16 %v2611, %v2611
    %v2630 = vpack.c.bf16 %v2612, %v2612
    %v2631 = vpack.c.bf16 %v2614, %v2614
    %v2632 = vpack.c.bf16 %v2615, %v2615
    %v2633 = vpack.c.bf16 %v2595, %v2595
    %v2634 = vpack.c.bf16 %v2598, %v2598
    %v2635 = vpack.c.bf16 %v2601, %v2601
    %v2636 = vpack.c.bf16 %v2604, %v2604
    %v2637 = vpack.c.bf16 %v2607, %v2607
    %v2638 = vpack.c.bf16 %v2610, %v2610
    %v2639 = vpack.c.bf16 %v2613, %v2613
    %v2640 = vpack.c.bf16 %v2616, %v2616
    %v2657 = vunpack.c.l.b16 %v2617
    %v2658 = vunpack.c.l.b16 %v2618
    %v2659 = vunpack.c.l.b16 %v2619
    %v2660 = vunpack.c.l.b16 %v2620
    %v2661 = vunpack.c.l.b16 %v2621
    %v2662 = vunpack.c.l.b16 %v2622
    %v2663 = vunpack.c.l.b16 %v2623
    %v2664 = vunpack.c.l.b16 %v2624
    %v2665 = vunpack.c.l.b16 %v2625
    %v2666 = vunpack.c.l.b16 %v2626
    %v2667 = vunpack.c.l.b16 %v2627
    %v2668 = vunpack.c.l.b16 %v2628
    %v2669 = vunpack.c.l.b16 %v2629
    %v2670 = vunpack.c.l.b16 %v2630
    %v2671 = vunpack.c.l.b16 %v2631
    %v2672 = vunpack.c.l.b16 %v2632
    %v2673 = vpack.c.b16 %v2658, %v2657
    %v2674 = vpack.c.b16 %v2660, %v2659
    %v2675 = vpack.c.b16 %v2662, %v2661
    %v2676 = vpack.c.b16 %v2664, %v2663
    %v2677 = vpack.c.b16 %v2666, %v2665
    %v2678 = vpack.c.b16 %v2668, %v2667
    %v2679 = vpack.c.b16 %v2670, %v2669
    %v2680 = vpack.c.b16 %v2672, %v2671
    %v2697 = vunpack.c.l.b16 %v2633
    %v2698 = vunpack.c.l.b16 %v2634
    %v2699 = vunpack.c.l.b16 %v2635
    %v2700 = vunpack.c.l.b16 %v2636
    %v2701 = vunpack.c.l.b16 %v2637
    %v2702 = vunpack.c.l.b16 %v2638
    %v2703 = vunpack.c.l.b16 %v2639
    %v2704 = vunpack.c.l.b16 %v2640
    %v2705 = vpack.c.b16 %v2697, %v2697
    %v2706 = vpack.c.b16 %v2698, %v2698
    %v2707 = vpack.c.b16 %v2699, %v2699
    %v2708 = vpack.c.b16 %v2700, %v2700
    %v2709 = vpack.c.b16 %v2701, %v2701
    %v2710 = vpack.c.b16 %v2702, %v2702
    %v2711 = vpack.c.b16 %v2703, %v2703
    %v2712 = vpack.c.b16 %v2704, %v2704
    %vm2713 = vcmask 1046528
    %v2714 = vrot.slane %v2673, 1
    %v2715 = vrot.slane %v2705, 1
    %v2716 = vsel %vm2713, %v2714, %v2715
    %v2717 = vrot.slane %v2674, 1
    %v2718 = vrot.slane %v2706, 1
    %v2719 = vsel %vm2713, %v2717, %v2718
    %v2720 = vrot.slane %v2675, 1
    %v2721 = vrot.slane %v2707, 1
    %v2722 = vsel %vm2713, %v2720, %v2721
    %v2723 = vrot.slane %v2676, 1
    %v2724 = vrot.slane %v2708, 1
    %v2725 = vsel %vm2713, %v2723, %v2724
    %v2726 = vrot.slane %v2677, 1
    %v2727 = vrot.slane %v2709, 1
    %v2728 = vsel %vm2713, %v2726, %v2727
    %v2729 = vrot.slane %v2678, 1
    %v2730 = vrot.slane %v2710, 1
    %v2731 = vsel %vm2713, %v2729, %v2730
    %v2732 = vrot.slane %v2679, 1
    %v2733 = vrot.slane %v2711, 1
    %v2734 = vsel %vm2713, %v2732, %v2733
    %v2735 = vrot.slane %v2680, 1
    %v2736 = vrot.slane %v2712, 1
    %v2737 = vsel %vm2713, %v2735, %v2736
    %vm2746 = vcmask 1045504
    %v2747 = vrot.slane %v2673, 2
    %v2748 = vrot.slane %v2705, 2
    %v2749 = vsel %vm2746, %v2747, %v2748
    %v2750 = vrot.slane %v2674, 2
    %v2751 = vrot.slane %v2706, 2
    %v2752 = vsel %vm2746, %v2750, %v2751
    %v2753 = vrot.slane %v2675, 2
    %v2754 = vrot.slane %v2707, 2
    %v2755 = vsel %vm2746, %v2753, %v2754
    %v2756 = vrot.slane %v2676, 2
    %v2757 = vrot.slane %v2708, 2
    %v2758 = vsel %vm2746, %v2756, %v2757
    %v2759 = vrot.slane %v2677, 2
    %v2760 = vrot.slane %v2709, 2
    %v2761 = vsel %vm2746, %v2759, %v2760
    %v2762 = vrot.slane %v2678, 2
    %v2763 = vrot.slane %v2710, 2
    %v2764 = vsel %vm2746, %v2762, %v2763
    %v2765 = vrot.slane %v2679, 2
    %v2766 = vrot.slane %v2711, 2
    %v2767 = vsel %vm2746, %v2765, %v2766
    %v2768 = vrot.slane %v2680, 2
    %v2769 = vrot.slane %v2712, 2
    %v2770 = vsel %vm2746, %v2768, %v2769
    %vm2779 = vcmask 1044480
    %v2780 = vrot.slane %v2673, 3
    %v2781 = vrot.slane %v2705, 3
    %v2782 = vsel %vm2779, %v2780, %v2781
    %v2783 = vrot.slane %v2674, 3
    %v2784 = vrot.slane %v2706, 3
    %v2785 = vsel %vm2779, %v2783, %v2784
    %v2786 = vrot.slane %v2675, 3
    %v2787 = vrot.slane %v2707, 3
    %v2788 = vsel %vm2779, %v2786, %v2787
    %v2789 = vrot.slane %v2676, 3
    %v2790 = vrot.slane %v2708, 3
    %v2791 = vsel %vm2779, %v2789, %v2790
    %v2792 = vrot.slane %v2677, 3
    %v2793 = vrot.slane %v2709, 3
    %v2794 = vsel %vm2779, %v2792, %v2793
    %v2795 = vrot.slane %v2678, 3
    %v2796 = vrot.slane %v2710, 3
    %v2797 = vsel %vm2779, %v2795, %v2796
    %v2798 = vrot.slane %v2679, 3
    %v2799 = vrot.slane %v2711, 3
    %v2800 = vsel %vm2779, %v2798, %v2799
    %v2801 = vrot.slane %v2680, 3
    %v2802 = vrot.slane %v2712, 3
    %v2803 = vsel %vm2779, %v2801, %v2802
    %v2812 = vpack.c.b16 %v2697, %v2658
    %v2813 = vpack.c.b16 %v2698, %v2660
    %v2814 = vpack.c.b16 %v2699, %v2662
    %v2815 = vpack.c.b16 %v2700, %v2664
    %v2816 = vpack.c.b16 %v2701, %v2666
    %v2817 = vpack.c.b16 %v2702, %v2668
    %v2818 = vpack.c.b16 %v2703, %v2670
    %v2819 = vpack.c.b16 %v2704, %v2672
    %v2828 = vld [vmem:[#allocation4] sm:$0xff]
    %v2829 = vld [vmem:[#allocation4 + $0x8] sm:$0xff]
    %v2830 = vld [vmem:[#allocation4 + $0x10] sm:$0xff]
    %v2831 = vld [vmem:[#allocation4 + $0x18] sm:$0xff]
    %v2832 = vld [vmem:[#allocation4 + $0x20] sm:$0xff]
    %v2833 = vld [vmem:[#allocation4 + $0x28] sm:$0xff]
    %v2834 = vld [vmem:[#allocation4 + $0x30] sm:$0xff]
    %v2835 = vld [vmem:[#allocation4 + $0x38] sm:$0xff]
    %v2836 = vld [vmem:[#allocation4 + $0x40] sm:$0xff]
    %v2837 = vld [vmem:[#allocation4 + $0x48] sm:$0xff]
    %v2838 = vld [vmem:[#allocation4 + $0x50] sm:$0xff]
    %v2839 = vld [vmem:[#allocation4 + $0x58] sm:$0xff]
    %v2840 = vld [vmem:[#allocation4 + $0x60] sm:$0xff]
    %v2841 = vld [vmem:[#allocation4 + $0x68] sm:$0xff]
    %v2842 = vld [vmem:[#allocation4 + $0x70] sm:$0xff]
    %v2843 = vld [vmem:[#allocation4 + $0x78] sm:$0xff]
    %v2844 = vld [vmem:[#allocation4 + $0x80] sm:$0xff]
    %v2845 = vld [vmem:[#allocation4 + $0x88] sm:$0xff]
    %v2846 = vld [vmem:[#allocation4 + $0x90] sm:$0xff]
    %v2847 = vld [vmem:[#allocation4 + $0x98] sm:$0xff]
    %v2848 = vld [vmem:[#allocation4 + $0xa0] sm:$0xff]
    %v2849 = vld [vmem:[#allocation4 + $0xa8] sm:$0xff]
    %v2850 = vld [vmem:[#allocation4 + $0xb0] sm:$0xff]
    %v2851 = vld [vmem:[#allocation4 + $0xb8] sm:$0xff]
    %v2852 = vld [vmem:[#allocation4 + $0xc0] sm:$0xff]
    %v2853 = vld [vmem:[#allocation4 + $0xc8] sm:$0xff]
    %v2854 = vld [vmem:[#allocation4 + $0xd0] sm:$0xff]
    %v2855 = vld [vmem:[#allocation4 + $0xd8] sm:$0xff]
    %v2856 = vld [vmem:[#allocation4 + $0xe0] sm:$0xff]
    %v2857 = vld [vmem:[#allocation4 + $0xe8] sm:$0xff]
    %v2858 = vld [vmem:[#allocation4 + $0xf0] sm:$0xff]
    %v2859 = vld [vmem:[#allocation4 + $0xf8] sm:$0xff]
    %v2860 = vld [vmem:[#allocation4 + $0x100] sm:$0xff]
    %v2861 = vld [vmem:[#allocation4 + $0x108] sm:$0xff]
    %v2862 = vld [vmem:[#allocation4 + $0x110] sm:$0xff]
    %v2863 = vld [vmem:[#allocation4 + $0x118] sm:$0xff]
    %v2864 = vld [vmem:[#allocation4 + $0x120] sm:$0xff]
    %v2865 = vld [vmem:[#allocation4 + $0x128] sm:$0xff]
    %v2866 = vld [vmem:[#allocation4 + $0x130] sm:$0xff]
    %v2867 = vld [vmem:[#allocation4 + $0x138] sm:$0xff]
    %v2868 = vld [vmem:[#allocation4 + $0x140] sm:$0xff]
    %v2869 = vld [vmem:[#allocation4 + $0x148] sm:$0xff]
    %v2870 = vld [vmem:[#allocation4 + $0x150] sm:$0xff]
    %v2871 = vld [vmem:[#allocation4 + $0x158] sm:$0xff]
    %v2872 = vld [vmem:[#allocation4 + $0x160] sm:$0xff]
    %v2873 = vld [vmem:[#allocation4 + $0x168] sm:$0xff]
    %v2874 = vld [vmem:[#allocation4 + $0x170] sm:$0xff]
    %v2875 = vld [vmem:[#allocation4 + $0x178] sm:$0xff]
    %v2876 = vld [vmem:[#allocation4 + $0x180] sm:$0xff]
    %v2877 = vld [vmem:[#allocation4 + $0x188] sm:$0xff]
    %v2878 = vld [vmem:[#allocation4 + $0x190] sm:$0xff]
    %v2879 = vld [vmem:[#allocation4 + $0x198] sm:$0xff]
    %v2880 = vld [vmem:[#allocation4 + $0x1a0] sm:$0xff]
    %v2881 = vld [vmem:[#allocation4 + $0x1a8] sm:$0xff]
    %v2882 = vld [vmem:[#allocation4 + $0x1b0] sm:$0xff]
    %v2883 = vld [vmem:[#allocation4 + $0x1b8] sm:$0xff]
    %v2884 = vld [vmem:[#allocation4 + $0x1c0] sm:$0xff]
    %v2885 = vld [vmem:[#allocation4 + $0x1c8] sm:$0xff]
    %v2886 = vld [vmem:[#allocation4 + $0x1d0] sm:$0xff]
    %v2887 = vld [vmem:[#allocation4 + $0x1d8] sm:$0xff]
    %v2888 = vld [vmem:[#allocation4 + $0x1e0] sm:$0xff]
    %v2889 = vld [vmem:[#allocation4 + $0x1e8] sm:$0xff]
    %v2890 = vld [vmem:[#allocation4 + $0x1f0] sm:$0xff]
    %v2891 = vld [vmem:[#allocation4 + $0x1f8] sm:$0xff]
    %v2892 = vld [vmem:[#allocation4 + $0x200] sm:$0xff]
    %v2893 = vld [vmem:[#allocation4 + $0x208] sm:$0xff]
    %v2894 = vld [vmem:[#allocation4 + $0x210] sm:$0xff]
    %v2895 = vld [vmem:[#allocation4 + $0x218] sm:$0xff]
    %v2896 = vld [vmem:[#allocation4 + $0x220] sm:$0xff]
    %v2897 = vld [vmem:[#allocation4 + $0x228] sm:$0xff]
    %v2898 = vld [vmem:[#allocation4 + $0x230] sm:$0xff]
    %v2899 = vld [vmem:[#allocation4 + $0x238] sm:$0xff]
    %v2900 = vld [vmem:[#allocation4 + $0x240] sm:$0xff]
    %v2901 = vld [vmem:[#allocation4 + $0x248] sm:$0xff]
    %v2902 = vld [vmem:[#allocation4 + $0x250] sm:$0xff]
    %v2903 = vld [vmem:[#allocation4 + $0x258] sm:$0xff]
    %v2904 = vld [vmem:[#allocation4 + $0x260] sm:$0xff]
    %v2905 = vld [vmem:[#allocation4 + $0x268] sm:$0xff]
    %v2906 = vld [vmem:[#allocation4 + $0x270] sm:$0xff]
    %v2907 = vld [vmem:[#allocation4 + $0x278] sm:$0xff]
    %v2988 = vunpack.c.l.b16 %v2828
    %v2989 = vunpack.c.h.b16 %v2828
    %v2990 = vunpack.c.l.b16 %v2829
    %v2991 = vunpack.c.h.b16 %v2829
    %v2992 = vunpack.c.l.b16 %v2830
    %v2993 = vunpack.c.h.b16 %v2830
    %v2994 = vunpack.c.l.b16 %v2831
    %v2995 = vunpack.c.h.b16 %v2831
    %v2996 = vunpack.c.l.b16 %v2832
    %v2997 = vunpack.c.h.b16 %v2832
    %v2998 = vunpack.c.l.b16 %v2833
    %v2999 = vunpack.c.h.b16 %v2833
    %v3000 = vunpack.c.l.b16 %v2834
    %v3001 = vunpack.c.h.b16 %v2834
    %v3002 = vunpack.c.l.b16 %v2835
    %v3003 = vunpack.c.h.b16 %v2835
    %v3004 = vunpack.c.l.b16 %v2836
    %v3005 = vunpack.c.h.b16 %v2836
    %v3006 = vunpack.c.l.b16 %v2837
    %v3007 = vunpack.c.h.b16 %v2837
    %v3008 = vunpack.c.l.b16 %v2838
    %v3009 = vunpack.c.h.b16 %v2838
    %v3010 = vunpack.c.l.b16 %v2839
    %v3011 = vunpack.c.h.b16 %v2839
    %v3012 = vunpack.c.l.b16 %v2840
    %v3013 = vunpack.c.h.b16 %v2840
    %v3014 = vunpack.c.l.b16 %v2841
    %v3015 = vunpack.c.h.b16 %v2841
    %v3016 = vunpack.c.l.b16 %v2842
    %v3017 = vunpack.c.h.b16 %v2842
    %v3018 = vunpack.c.l.b16 %v2843
    %v3019 = vunpack.c.h.b16 %v2843
    %v3020 = vunpack.c.l.b16 %v2844
    %v3021 = vunpack.c.h.b16 %v2844
    %v3022 = vunpack.c.l.b16 %v2845
    %v3023 = vunpack.c.h.b16 %v2845
    %v3024 = vunpack.c.l.b16 %v2846
    %v3025 = vunpack.c.h.b16 %v2846
    %v3026 = vunpack.c.l.b16 %v2847
    %v3027 = vunpack.c.h.b16 %v2847
    %v3028 = vunpack.c.l.b16 %v2848
    %v3029 = vunpack.c.h.b16 %v2848
    %v3030 = vunpack.c.l.b16 %v2849
    %v3031 = vunpack.c.h.b16 %v2849
    %v3032 = vunpack.c.l.b16 %v2850
    %v3033 = vunpack.c.h.b16 %v2850
    %v3034 = vunpack.c.l.b16 %v2851
    %v3035 = vunpack.c.h.b16 %v2851
    %v3036 = vunpack.c.l.b16 %v2852
    %v3037 = vunpack.c.h.b16 %v2852
    %v3038 = vunpack.c.l.b16 %v2853
    %v3039 = vunpack.c.h.b16 %v2853
    %v3040 = vunpack.c.l.b16 %v2854
    %v3041 = vunpack.c.h.b16 %v2854
    %v3042 = vunpack.c.l.b16 %v2855
    %v3043 = vunpack.c.h.b16 %v2855
    %v3044 = vunpack.c.l.b16 %v2856
    %v3045 = vunpack.c.h.b16 %v2856
    %v3046 = vunpack.c.l.b16 %v2857
    %v3047 = vunpack.c.h.b16 %v2857
    %v3048 = vunpack.c.l.b16 %v2858
    %v3049 = vunpack.c.h.b16 %v2858
    %v3050 = vunpack.c.l.b16 %v2859
    %v3051 = vunpack.c.h.b16 %v2859
    %v3052 = vunpack.c.l.b16 %v2860
    %v3053 = vunpack.c.h.b16 %v2860
    %v3054 = vunpack.c.l.b16 %v2861
    %v3055 = vunpack.c.h.b16 %v2861
    %v3056 = vunpack.c.l.b16 %v2862
    %v3057 = vunpack.c.h.b16 %v2862
    %v3058 = vunpack.c.l.b16 %v2863
    %v3059 = vunpack.c.h.b16 %v2863
    %v3060 = vunpack.c.l.b16 %v2864
    %v3061 = vunpack.c.h.b16 %v2864
    %v3062 = vunpack.c.l.b16 %v2865
    %v3063 = vunpack.c.h.b16 %v2865
    %v3064 = vunpack.c.l.b16 %v2866
    %v3065 = vunpack.c.h.b16 %v2866
    %v3066 = vunpack.c.l.b16 %v2867
    %v3067 = vunpack.c.h.b16 %v2867
    %v3068 = vunpack.c.l.b16 %v2868
    %v3069 = vunpack.c.h.b16 %v2868
    %v3070 = vunpack.c.l.b16 %v2869
    %v3071 = vunpack.c.h.b16 %v2869
    %v3072 = vunpack.c.l.b16 %v2870
    %v3073 = vunpack.c.h.b16 %v2870
    %v3074 = vunpack.c.l.b16 %v2871
    %v3075 = vunpack.c.h.b16 %v2871
    %v3076 = vunpack.c.l.b16 %v2872
    %v3077 = vunpack.c.h.b16 %v2872
    %v3078 = vunpack.c.l.b16 %v2873
    %v3079 = vunpack.c.h.b16 %v2873
    %v3080 = vunpack.c.l.b16 %v2874
    %v3081 = vunpack.c.h.b16 %v2874
    %v3082 = vunpack.c.l.b16 %v2875
    %v3083 = vunpack.c.h.b16 %v2875
    %v3084 = vunpack.c.l.b16 %v2876
    %v3085 = vunpack.c.h.b16 %v2876
    %v3086 = vunpack.c.l.b16 %v2877
    %v3087 = vunpack.c.h.b16 %v2877
    %v3088 = vunpack.c.l.b16 %v2878
    %v3089 = vunpack.c.h.b16 %v2878
    %v3090 = vunpack.c.l.b16 %v2879
    %v3091 = vunpack.c.h.b16 %v2879
    %v3092 = vunpack.c.l.b16 %v2880
    %v3093 = vunpack.c.h.b16 %v2880
    %v3094 = vunpack.c.l.b16 %v2881
    %v3095 = vunpack.c.h.b16 %v2881
    %v3096 = vunpack.c.l.b16 %v2882
    %v3097 = vunpack.c.h.b16 %v2882
    %v3098 = vunpack.c.l.b16 %v2883
    %v3099 = vunpack.c.h.b16 %v2883
    %v3100 = vunpack.c.l.b16 %v2884
    %v3101 = vunpack.c.h.b16 %v2884
    %v3102 = vunpack.c.l.b16 %v2885
    %v3103 = vunpack.c.h.b16 %v2885
    %v3104 = vunpack.c.l.b16 %v2886
    %v3105 = vunpack.c.h.b16 %v2886
    %v3106 = vunpack.c.l.b16 %v2887
    %v3107 = vunpack.c.h.b16 %v2887
    %v3108 = vunpack.c.l.b16 %v2888
    %v3109 = vunpack.c.h.b16 %v2888
    %v3110 = vunpack.c.l.b16 %v2889
    %v3111 = vunpack.c.h.b16 %v2889
    %v3112 = vunpack.c.l.b16 %v2890
    %v3113 = vunpack.c.h.b16 %v2890
    %v3114 = vunpack.c.l.b16 %v2891
    %v3115 = vunpack.c.h.b16 %v2891
    %v3116 = vunpack.c.l.b16 %v2892
    %v3117 = vunpack.c.h.b16 %v2892
    %v3118 = vunpack.c.l.b16 %v2893
    %v3119 = vunpack.c.h.b16 %v2893
    %v3120 = vunpack.c.l.b16 %v2894
    %v3121 = vunpack.c.h.b16 %v2894
    %v3122 = vunpack.c.l.b16 %v2895
    %v3123 = vunpack.c.h.b16 %v2895
    %v3124 = vunpack.c.l.b16 %v2896
    %v3125 = vunpack.c.h.b16 %v2896
    %v3126 = vunpack.c.l.b16 %v2897
    %v3127 = vunpack.c.h.b16 %v2897
    %v3128 = vunpack.c.l.b16 %v2898
    %v3129 = vunpack.c.h.b16 %v2898
    %v3130 = vunpack.c.l.b16 %v2899
    %v3131 = vunpack.c.h.b16 %v2899
    %v3132 = vunpack.c.l.b16 %v2900
    %v3133 = vunpack.c.h.b16 %v2900
    %v3134 = vunpack.c.l.b16 %v2901
    %v3135 = vunpack.c.h.b16 %v2901
    %v3136 = vunpack.c.l.b16 %v2902
    %v3137 = vunpack.c.h.b16 %v2902
    %v3138 = vunpack.c.l.b16 %v2903
    %v3139 = vunpack.c.h.b16 %v2903
    %v3140 = vunpack.c.l.b16 %v2904
    %v3141 = vunpack.c.h.b16 %v2904
    %v3142 = vunpack.c.l.b16 %v2905
    %v3143 = vunpack.c.h.b16 %v2905
    %v3144 = vunpack.c.l.b16 %v2906
    %v3145 = vunpack.c.h.b16 %v2906
    %v3146 = vunpack.c.l.b16 %v2907
    %v3147 = vunpack.c.h.b16 %v2907
    %v3148 = vpack.c.b16 %v2990, %v2988
    %v3149 = vpack.c.b16 %v2991, %v2989
    %v3150 = vpack.c.b16 %v2994, %v2992
    %v3151 = vpack.c.b16 %v2995, %v2993
    %v3152 = vpack.c.b16 %v2998, %v2996
    %v3153 = vpack.c.b16 %v2999, %v2997
    %v3154 = vpack.c.b16 %v3002, %v3000
    %v3155 = vpack.c.b16 %v3003, %v3001
    %v3156 = vpack.c.b16 %v3006, %v3004
    %v3157 = vpack.c.b16 %v3007, %v3005
    %v3158 = vpack.c.b16 %v3010, %v3008
    %v3159 = vpack.c.b16 %v3011, %v3009
    %v3160 = vpack.c.b16 %v3014, %v3012
    %v3161 = vpack.c.b16 %v3015, %v3013
    %v3162 = vpack.c.b16 %v3018, %v3016
    %v3163 = vpack.c.b16 %v3019, %v3017
    %v3164 = vpack.c.b16 %v3022, %v3020
    %v3165 = vpack.c.b16 %v3023, %v3021
    %v3166 = vpack.c.b16 %v3026, %v3024
    %v3167 = vpack.c.b16 %v3027, %v3025
    %v3168 = vpack.c.b16 %v3030, %v3028
    %v3169 = vpack.c.b16 %v3031, %v3029
    %v3170 = vpack.c.b16 %v3034, %v3032
    %v3171 = vpack.c.b16 %v3035, %v3033
    %v3172 = vpack.c.b16 %v3038, %v3036
    %v3173 = vpack.c.b16 %v3039, %v3037
    %v3174 = vpack.c.b16 %v3042, %v3040
    %v3175 = vpack.c.b16 %v3043, %v3041
    %v3176 = vpack.c.b16 %v3046, %v3044
    %v3177 = vpack.c.b16 %v3047, %v3045
    %v3178 = vpack.c.b16 %v3050, %v3048
    %v3179 = vpack.c.b16 %v3051, %v3049
    %v3180 = vpack.c.b16 %v3054, %v3052
    %v3181 = vpack.c.b16 %v3055, %v3053
    %v3182 = vpack.c.b16 %v3058, %v3056
    %v3183 = vpack.c.b16 %v3059, %v3057
    %v3184 = vpack.c.b16 %v3062, %v3060
    %v3185 = vpack.c.b16 %v3063, %v3061
    %v3186 = vpack.c.b16 %v3066, %v3064
    %v3187 = vpack.c.b16 %v3067, %v3065
    %v3188 = vpack.c.b16 %v3070, %v3068
    %v3189 = vpack.c.b16 %v3071, %v3069
    %v3190 = vpack.c.b16 %v3074, %v3072
    %v3191 = vpack.c.b16 %v3075, %v3073
    %v3192 = vpack.c.b16 %v3078, %v3076
    %v3193 = vpack.c.b16 %v3079, %v3077
    %v3194 = vpack.c.b16 %v3082, %v3080
    %v3195 = vpack.c.b16 %v3083, %v3081
    %v3196 = vpack.c.b16 %v3086, %v3084
    %v3197 = vpack.c.b16 %v3087, %v3085
    %v3198 = vpack.c.b16 %v3090, %v3088
    %v3199 = vpack.c.b16 %v3091, %v3089
    %v3200 = vpack.c.b16 %v3094, %v3092
    %v3201 = vpack.c.b16 %v3095, %v3093
    %v3202 = vpack.c.b16 %v3098, %v3096
    %v3203 = vpack.c.b16 %v3099, %v3097
    %v3204 = vpack.c.b16 %v3102, %v3100
    %v3205 = vpack.c.b16 %v3103, %v3101
    %v3206 = vpack.c.b16 %v3106, %v3104
    %v3207 = vpack.c.b16 %v3107, %v3105
    %v3208 = vpack.c.b16 %v3110, %v3108
    %v3209 = vpack.c.b16 %v3111, %v3109
    %v3210 = vpack.c.b16 %v3114, %v3112
    %v3211 = vpack.c.b16 %v3115, %v3113
    %v3212 = vpack.c.b16 %v3118, %v3116
    %v3213 = vpack.c.b16 %v3119, %v3117
    %v3214 = vpack.c.b16 %v3122, %v3120
    %v3215 = vpack.c.b16 %v3123, %v3121
    %v3216 = vpack.c.b16 %v3126, %v3124
    %v3217 = vpack.c.b16 %v3127, %v3125
    %v3218 = vpack.c.b16 %v3130, %v3128
    %v3219 = vpack.c.b16 %v3131, %v3129
    %v3220 = vpack.c.b16 %v3134, %v3132
    %v3221 = vpack.c.b16 %v3135, %v3133
    %v3222 = vpack.c.b16 %v3138, %v3136
    %v3223 = vpack.c.b16 %v3139, %v3137
    %v3224 = vpack.c.b16 %v3142, %v3140
    %v3225 = vpack.c.b16 %v3143, %v3141
    %v3226 = vpack.c.b16 %v3146, %v3144
    %v3227 = vpack.c.b16 %v3147, %v3145
    %3308 = vmatpush.bf16.msra.mxu0 %v3162
    %3309 = vmatpush.bf16.msra.mxu0 %v3160
    %3310 = vmatpush.bf16.msra.mxu0 %v3158
    %3311 = vmatpush.bf16.msra.mxu0 %v3156
    %3312 = vmatpush.bf16.msra.mxu0 %v3154
    %3313 = vmatpush.bf16.msra.mxu0 %v3152
    %3314 = vmatpush.bf16.msra.mxu0 %v3150
    %3315 = vmatpush.bf16.msra.mxu0 %v3148
    %3316 = vmatmul.bf16.gmra.mxu0 %v2673
    %v3317 = vpop.f32.mrf.mxu0
    %v3318 = vadd.f32 0.0, %v3317
    %v3319 = vpop.f32.mrf.mxu0
    %v3320 = vadd.f32 0.0, %v3319
    %3321 = vmatmul.bf16.gmra.mxu0 %v2674
    %v3322 = vpop.f32.mrf.mxu0
    %v3323 = vadd.f32 0.0, %v3322
    %v3324 = vpop.f32.mrf.mxu0
    %v3325 = vadd.f32 0.0, %v3324
    %3326 = vmatmul.bf16.gmra.mxu0 %v2675
    %v3327 = vpop.f32.mrf.mxu0
    %v3328 = vadd.f32 0.0, %v3327
    %v3329 = vpop.f32.mrf.mxu0
    %v3330 = vadd.f32 0.0, %v3329
    %3331 = vmatmul.bf16.gmra.mxu0 %v2676
    %v3332 = vpop.f32.mrf.mxu0
    %v3333 = vadd.f32 0.0, %v3332
    %v3334 = vpop.f32.mrf.mxu0
    %v3335 = vadd.f32 0.0, %v3334
    %3336 = vmatmul.bf16.gmra.mxu0 %v2677
    %v3337 = vpop.f32.mrf.mxu0
    %v3338 = vadd.f32 0.0, %v3337
    %v3339 = vpop.f32.mrf.mxu0
    %v3340 = vadd.f32 0.0, %v3339
    %3341 = vmatmul.bf16.gmra.mxu0 %v2678
    %v3342 = vpop.f32.mrf.mxu0
    %v3343 = vadd.f32 0.0, %v3342
    %v3344 = vpop.f32.mrf.mxu0
    %v3345 = vadd.f32 0.0, %v3344
    %3346 = vmatmul.bf16.gmra.mxu0 %v2679
    %v3347 = vpop.f32.mrf.mxu0
    %v3348 = vadd.f32 0.0, %v3347
    %v3349 = vpop.f32.mrf.mxu0
    %v3350 = vadd.f32 0.0, %v3349
    %3351 = vmatmul.bf16.gmra.mxu0 %v2680
    %v3352 = vpop.f32.mrf.mxu0
    %v3353 = vadd.f32 0.0, %v3352
    %v3354 = vpop.f32.mrf.mxu0
    %v3355 = vadd.f32 0.0, %v3354
    %3356 = vdwg.mxu0
    %3357 = vmatpush.bf16.msra.mxu0 %v3178
    %3358 = vmatpush.bf16.msra.mxu0 %v3176
    %3359 = vmatpush.bf16.msra.mxu0 %v3174
    %3360 = vmatpush.bf16.msra.mxu0 %v3172
    %3361 = vmatpush.bf16.msra.mxu0 %v3170
    %3362 = vmatpush.bf16.msra.mxu0 %v3168
    %3363 = vmatpush.bf16.msra.mxu0 %v3166
    %3364 = vmatpush.bf16.msra.mxu0 %v3164
    %3365 = vmatmul.bf16.gmra.mxu0 %v2716
    %v3366 = vpop.f32.mrf.mxu0
    %v3367 = vadd.f32 %v3318, %v3366
    %v3368 = vpop.f32.mrf.mxu0
    %v3369 = vadd.f32 %v3320, %v3368
    %3370 = vmatmul.bf16.gmra.mxu0 %v2719
    %v3371 = vpop.f32.mrf.mxu0
    %v3372 = vadd.f32 %v3323, %v3371
    %v3373 = vpop.f32.mrf.mxu0
    %v3374 = vadd.f32 %v3325, %v3373
    %3375 = vmatmul.bf16.gmra.mxu0 %v2722
    %v3376 = vpop.f32.mrf.mxu0
    %v3377 = vadd.f32 %v3328, %v3376
    %v3378 = vpop.f32.mrf.mxu0
    %v3379 = vadd.f32 %v3330, %v3378
    %3380 = vmatmul.bf16.gmra.mxu0 %v2725
    %v3381 = vpop.f32.mrf.mxu0
    %v3382 = vadd.f32 %v3333, %v3381
    %v3383 = vpop.f32.mrf.mxu0
    %v3384 = vadd.f32 %v3335, %v3383
    %3385 = vmatmul.bf16.gmra.mxu0 %v2728
    %v3386 = vpop.f32.mrf.mxu0
    %v3387 = vadd.f32 %v3338, %v3386
    %v3388 = vpop.f32.mrf.mxu0
    %v3389 = vadd.f32 %v3340, %v3388
    %3390 = vmatmul.bf16.gmra.mxu0 %v2731
    %v3391 = vpop.f32.mrf.mxu0
    %v3392 = vadd.f32 %v3343, %v3391
    %v3393 = vpop.f32.mrf.mxu0
    %v3394 = vadd.f32 %v3345, %v3393
    %3395 = vmatmul.bf16.gmra.mxu0 %v2734
    %v3396 = vpop.f32.mrf.mxu0
    %v3397 = vadd.f32 %v3348, %v3396
    %v3398 = vpop.f32.mrf.mxu0
    %v3399 = vadd.f32 %v3350, %v3398
    %3400 = vmatmul.bf16.gmra.mxu0 %v2737
    %v3401 = vpop.f32.mrf.mxu0
    %v3402 = vadd.f32 %v3353, %v3401
    %v3403 = vpop.f32.mrf.mxu0
    %v3404 = vadd.f32 %v3355, %v3403
    %3405 = vdwg.mxu0
    %3406 = vmatpush.bf16.msra.mxu0 %v3194
    %3407 = vmatpush.bf16.msra.mxu0 %v3192
    %3408 = vmatpush.bf16.msra.mxu0 %v3190
    %3409 = vmatpush.bf16.msra.mxu0 %v3188
    %3410 = vmatpush.bf16.msra.mxu0 %v3186
    %3411 = vmatpush.bf16.msra.mxu0 %v3184
    %3412 = vmatpush.bf16.msra.mxu0 %v3182
    %3413 = vmatpush.bf16.msra.mxu0 %v3180
    %3414 = vmatmul.bf16.gmra.mxu0 %v2749
    %v3415 = vpop.f32.mrf.mxu0
    %v3416 = vadd.f32 %v3367, %v3415
    %v3417 = vpop.f32.mrf.mxu0
    %v3418 = vadd.f32 %v3369, %v3417
    %3419 = vmatmul.bf16.gmra.mxu0 %v2752
    %v3420 = vpop.f32.mrf.mxu0
    %v3421 = vadd.f32 %v3372, %v3420
    %v3422 = vpop.f32.mrf.mxu0
    %v3423 = vadd.f32 %v3374, %v3422
    %3424 = vmatmul.bf16.gmra.mxu0 %v2755
    %v3425 = vpop.f32.mrf.mxu0
    %v3426 = vadd.f32 %v3377, %v3425
    %v3427 = vpop.f32.mrf.mxu0
    %v3428 = vadd.f32 %v3379, %v3427
    %3429 = vmatmul.bf16.gmra.mxu0 %v2758
    %v3430 = vpop.f32.mrf.mxu0
    %v3431 = vadd.f32 %v3382, %v3430
    %v3432 = vpop.f32.mrf.mxu0
    %v3433 = vadd.f32 %v3384, %v3432
    %3434 = vmatmul.bf16.gmra.mxu0 %v2761
    %v3435 = vpop.f32.mrf.mxu0
    %v3436 = vadd.f32 %v3387, %v3435
    %v3437 = vpop.f32.mrf.mxu0
    %v3438 = vadd.f32 %v3389, %v3437
    %3439 = vmatmul.bf16.gmra.mxu0 %v2764
    %v3440 = vpop.f32.mrf.mxu0
    %v3441 = vadd.f32 %v3392, %v3440
    %v3442 = vpop.f32.mrf.mxu0
    %v3443 = vadd.f32 %v3394, %v3442
    %3444 = vmatmul.bf16.gmra.mxu0 %v2767
    %v3445 = vpop.f32.mrf.mxu0
    %v3446 = vadd.f32 %v3397, %v3445
    %v3447 = vpop.f32.mrf.mxu0
    %v3448 = vadd.f32 %v3399, %v3447
    %3449 = vmatmul.bf16.gmra.mxu0 %v2770
    %v3450 = vpop.f32.mrf.mxu0
    %v3451 = vadd.f32 %v3402, %v3450
    %v3452 = vpop.f32.mrf.mxu0
    %v3453 = vadd.f32 %v3404, %v3452
    %3454 = vdwg.mxu0
    %3455 = vmatpush.bf16.msra.mxu0 %v3210
    %3456 = vmatpush.bf16.msra.mxu0 %v3208
    %3457 = vmatpush.bf16.msra.mxu0 %v3206
    %3458 = vmatpush.bf16.msra.mxu0 %v3204
    %3459 = vmatpush.bf16.msra.mxu0 %v3202
    %3460 = vmatpush.bf16.msra.mxu0 %v3200
    %3461 = vmatpush.bf16.msra.mxu0 %v3198
    %3462 = vmatpush.bf16.msra.mxu0 %v3196
    %3463 = vmatmul.bf16.gmra.mxu0 %v2782
    %v3464 = vpop.f32.mrf.mxu0
    %v3465 = vadd.f32 %v3416, %v3464
    %v3466 = vpop.f32.mrf.mxu0
    %v3467 = vadd.f32 %v3418, %v3466
    %3468 = vmatmul.bf16.gmra.mxu0 %v2785
    %v3469 = vpop.f32.mrf.mxu0
    %v3470 = vadd.f32 %v3421, %v3469
    %v3471 = vpop.f32.mrf.mxu0
    %v3472 = vadd.f32 %v3423, %v3471
    %3473 = vmatmul.bf16.gmra.mxu0 %v2788
    %v3474 = vpop.f32.mrf.mxu0
    %v3475 = vadd.f32 %v3426, %v3474
    %v3476 = vpop.f32.mrf.mxu0
    %v3477 = vadd.f32 %v3428, %v3476
    %3478 = vmatmul.bf16.gmra.mxu0 %v2791
    %v3479 = vpop.f32.mrf.mxu0
    %v3480 = vadd.f32 %v3431, %v3479
    %v3481 = vpop.f32.mrf.mxu0
    %v3482 = vadd.f32 %v3433, %v3481
    %3483 = vmatmul.bf16.gmra.mxu0 %v2794
    %v3484 = vpop.f32.mrf.mxu0
    %v3485 = vadd.f32 %v3436, %v3484
    %v3486 = vpop.f32.mrf.mxu0
    %v3487 = vadd.f32 %v3438, %v3486
    %3488 = vmatmul.bf16.gmra.mxu0 %v2797
    %v3489 = vpop.f32.mrf.mxu0
    %v3490 = vadd.f32 %v3441, %v3489
    %v3491 = vpop.f32.mrf.mxu0
    %v3492 = vadd.f32 %v3443, %v3491
    %3493 = vmatmul.bf16.gmra.mxu0 %v2800
    %v3494 = vpop.f32.mrf.mxu0
    %v3495 = vadd.f32 %v3446, %v3494
    %v3496 = vpop.f32.mrf.mxu0
    %v3497 = vadd.f32 %v3448, %v3496
    %3498 = vmatmul.bf16.gmra.mxu0 %v2803
    %v3499 = vpop.f32.mrf.mxu0
    %v3500 = vadd.f32 %v3451, %v3499
    %v3501 = vpop.f32.mrf.mxu0
    %v3502 = vadd.f32 %v3453, %v3501
    %3503 = vdwg.mxu0
    %3504 = vmatpush.bf16.msra.mxu0 %v3226
    %3505 = vmatpush.bf16.msra.mxu0 %v3224
    %3506 = vmatpush.bf16.msra.mxu0 %v3222
    %3507 = vmatpush.bf16.msra.mxu0 %v3220
    %3508 = vmatpush.bf16.msra.mxu0 %v3218
    %3509 = vmatpush.bf16.msra.mxu0 %v3216
    %3510 = vmatpush.bf16.msra.mxu0 %v3214
    %3511 = vmatpush.bf16.msra.mxu0 %v3212
    %3512 = vmatmul.bf16.gmra.mxu0 %v2812
    %v3513 = vpop.f32.mrf.mxu0
    %v3514 = vadd.f32 %v3465, %v3513
    %v3515 = vpop.f32.mrf.mxu0
    %v3516 = vadd.f32 %v3467, %v3515
    %3517 = vmatmul.bf16.gmra.mxu0 %v2813
    %v3518 = vpop.f32.mrf.mxu0
    %v3519 = vadd.f32 %v3470, %v3518
    %v3520 = vpop.f32.mrf.mxu0
    %v3521 = vadd.f32 %v3472, %v3520
    %3522 = vmatmul.bf16.gmra.mxu0 %v2814
    %v3523 = vpop.f32.mrf.mxu0
    %v3524 = vadd.f32 %v3475, %v3523
    %v3525 = vpop.f32.mrf.mxu0
    %v3526 = vadd.f32 %v3477, %v3525
    %3527 = vmatmul.bf16.gmra.mxu0 %v2815
    %v3528 = vpop.f32.mrf.mxu0
    %v3529 = vadd.f32 %v3480, %v3528
    %v3530 = vpop.f32.mrf.mxu0
    %v3531 = vadd.f32 %v3482, %v3530
    %3532 = vmatmul.bf16.gmra.mxu0 %v2816
    %v3533 = vpop.f32.mrf.mxu0
    %v3534 = vadd.f32 %v3485, %v3533
    %v3535 = vpop.f32.mrf.mxu0
    %v3536 = vadd.f32 %v3487, %v3535
    %3537 = vmatmul.bf16.gmra.mxu0 %v2817
    %v3538 = vpop.f32.mrf.mxu0
    %v3539 = vadd.f32 %v3490, %v3538
    %v3540 = vpop.f32.mrf.mxu0
    %v3541 = vadd.f32 %v3492, %v3540
    %3542 = vmatmul.bf16.gmra.mxu0 %v2818
    %v3543 = vpop.f32.mrf.mxu0
    %v3544 = vadd.f32 %v3495, %v3543
    %v3545 = vpop.f32.mrf.mxu0
    %v3546 = vadd.f32 %v3497, %v3545
    %3547 = vmatmul.bf16.gmra.mxu0 %v2819
    %v3548 = vpop.f32.mrf.mxu0
    %v3549 = vadd.f32 %v3500, %v3548
    %v3550 = vpop.f32.mrf.mxu0
    %v3551 = vadd.f32 %v3502, %v3550
    %3552 = vdwg.mxu0
    %3553 = vmatpush.bf16.msra.mxu0 %v3163
    %3554 = vmatpush.bf16.msra.mxu0 %v3161
    %3555 = vmatpush.bf16.msra.mxu0 %v3159
    %3556 = vmatpush.bf16.msra.mxu0 %v3157
    %3557 = vmatpush.bf16.msra.mxu0 %v3155
    %3558 = vmatpush.bf16.msra.mxu0 %v3153
    %3559 = vmatpush.bf16.msra.mxu0 %v3151
    %3560 = vmatpush.bf16.msra.mxu0 %v3149
    %3561 = vmatmul.bf16.gmra.mxu0 %v2673
    %v3562 = vpop.f32.mrf.mxu0
    %v3563 = vadd.f32 0.0, %v3562
    %v3564 = vpop.f32.mrf.mxu0
    %v3565 = vadd.f32 0.0, %v3564
    %3566 = vmatmul.bf16.gmra.mxu0 %v2674
    %v3567 = vpop.f32.mrf.mxu0
    %v3568 = vadd.f32 0.0, %v3567
    %v3569 = vpop.f32.mrf.mxu0
    %v3570 = vadd.f32 0.0, %v3569
    %3571 = vmatmul.bf16.gmra.mxu0 %v2675
    %v3572 = vpop.f32.mrf.mxu0
    %v3573 = vadd.f32 0.0, %v3572
    %v3574 = vpop.f32.mrf.mxu0
    %v3575 = vadd.f32 0.0, %v3574
    %3576 = vmatmul.bf16.gmra.mxu0 %v2676
    %v3577 = vpop.f32.mrf.mxu0
    %v3578 = vadd.f32 0.0, %v3577
    %v3579 = vpop.f32.mrf.mxu0
    %v3580 = vadd.f32 0.0, %v3579
    %3581 = vmatmul.bf16.gmra.mxu0 %v2677
    %v3582 = vpop.f32.mrf.mxu0
    %v3583 = vadd.f32 0.0, %v3582
    %v3584 = vpop.f32.mrf.mxu0
    %v3585 = vadd.f32 0.0, %v3584
    %3586 = vmatmul.bf16.gmra.mxu0 %v2678
    %v3587 = vpop.f32.mrf.mxu0
    %v3588 = vadd.f32 0.0, %v3587
    %v3589 = vpop.f32.mrf.mxu0
    %v3590 = vadd.f32 0.0, %v3589
    %3591 = vmatmul.bf16.gmra.mxu0 %v2679
    %v3592 = vpop.f32.mrf.mxu0
    %v3593 = vadd.f32 0.0, %v3592
    %v3594 = vpop.f32.mrf.mxu0
    %v3595 = vadd.f32 0.0, %v3594
    %3596 = vmatmul.bf16.gmra.mxu0 %v2680
    %v3597 = vpop.f32.mrf.mxu0
    %v3598 = vadd.f32 0.0, %v3597
    %v3599 = vpop.f32.mrf.mxu0
    %v3600 = vadd.f32 0.0, %v3599
    %3601 = vdwg.mxu0
    %3602 = vmatpush.bf16.msra.mxu0 %v3179
    %3603 = vmatpush.bf16.msra.mxu0 %v3177
    %3604 = vmatpush.bf16.msra.mxu0 %v3175
    %3605 = vmatpush.bf16.msra.mxu0 %v3173
    %3606 = vmatpush.bf16.msra.mxu0 %v3171
    %3607 = vmatpush.bf16.msra.mxu0 %v3169
    %3608 = vmatpush.bf16.msra.mxu0 %v3167
    %3609 = vmatpush.bf16.msra.mxu0 %v3165
    %3610 = vmatmul.bf16.gmra.mxu0 %v2716
    %v3611 = vpop.f32.mrf.mxu0
    %v3612 = vadd.f32 %v3563, %v3611
    %v3613 = vpop.f32.mrf.mxu0
    %v3614 = vadd.f32 %v3565, %v3613
    %3615 = vmatmul.bf16.gmra.mxu0 %v2719
    %v3616 = vpop.f32.mrf.mxu0
    %v3617 = vadd.f32 %v3568, %v3616
    %v3618 = vpop.f32.mrf.mxu0
    %v3619 = vadd.f32 %v3570, %v3618
    %3620 = vmatmul.bf16.gmra.mxu0 %v2722
    %v3621 = vpop.f32.mrf.mxu0
    %v3622 = vadd.f32 %v3573, %v3621
    %v3623 = vpop.f32.mrf.mxu0
    %v3624 = vadd.f32 %v3575, %v3623
    %3625 = vmatmul.bf16.gmra.mxu0 %v2725
    %v3626 = vpop.f32.mrf.mxu0
    %v3627 = vadd.f32 %v3578, %v3626
    %v3628 = vpop.f32.mrf.mxu0
    %v3629 = vadd.f32 %v3580, %v3628
    %3630 = vmatmul.bf16.gmra.mxu0 %v2728
    %v3631 = vpop.f32.mrf.mxu0
    %v3632 = vadd.f32 %v3583, %v3631
    %v3633 = vpop.f32.mrf.mxu0
    %v3634 = vadd.f32 %v3585, %v3633
    %3635 = vmatmul.bf16.gmra.mxu0 %v2731
    %v3636 = vpop.f32.mrf.mxu0
    %v3637 = vadd.f32 %v3588, %v3636
    %v3638 = vpop.f32.mrf.mxu0
    %v3639 = vadd.f32 %v3590, %v3638
    %3640 = vmatmul.bf16.gmra.mxu0 %v2734
    %v3641 = vpop.f32.mrf.mxu0
    %v3642 = vadd.f32 %v3593, %v3641
    %v3643 = vpop.f32.mrf.mxu0
    %v3644 = vadd.f32 %v3595, %v3643
    %3645 = vmatmul.bf16.gmra.mxu0 %v2737
    %v3646 = vpop.f32.mrf.mxu0
    %v3647 = vadd.f32 %v3598, %v3646
    %v3648 = vpop.f32.mrf.mxu0
    %v3649 = vadd.f32 %v3600, %v3648
    %3650 = vdwg.mxu0
    %3651 = vmatpush.bf16.msra.mxu0 %v3195
    %3652 = vmatpush.bf16.msra.mxu0 %v3193
    %3653 = vmatpush.bf16.msra.mxu0 %v3191
    %3654 = vmatpush.bf16.msra.mxu0 %v3189
    %3655 = vmatpush.bf16.msra.mxu0 %v3187
    %3656 = vmatpush.bf16.msra.mxu0 %v3185
    %3657 = vmatpush.bf16.msra.mxu0 %v3183
    %3658 = vmatpush.bf16.msra.mxu0 %v3181
    %3659 = vmatmul.bf16.gmra.mxu0 %v2749
    %v3660 = vpop.f32.mrf.mxu0
    %v3661 = vadd.f32 %v3612, %v3660
    %v3662 = vpop.f32.mrf.mxu0
    %v3663 = vadd.f32 %v3614, %v3662
    %3664 = vmatmul.bf16.gmra.mxu0 %v2752
    %v3665 = vpop.f32.mrf.mxu0
    %v3666 = vadd.f32 %v3617, %v3665
    %v3667 = vpop.f32.mrf.mxu0
    %v3668 = vadd.f32 %v3619, %v3667
    %3669 = vmatmul.bf16.gmra.mxu0 %v2755
    %v3670 = vpop.f32.mrf.mxu0
    %v3671 = vadd.f32 %v3622, %v3670
    %v3672 = vpop.f32.mrf.mxu0
    %v3673 = vadd.f32 %v3624, %v3672
    %3674 = vmatmul.bf16.gmra.mxu0 %v2758
    %v3675 = vpop.f32.mrf.mxu0
    %v3676 = vadd.f32 %v3627, %v3675
    %v3677 = vpop.f32.mrf.mxu0
    %v3678 = vadd.f32 %v3629, %v3677
    %3679 = vmatmul.bf16.gmra.mxu0 %v2761
    %v3680 = vpop.f32.mrf.mxu0
    %v3681 = vadd.f32 %v3632, %v3680
    %v3682 = vpop.f32.mrf.mxu0
    %v3683 = vadd.f32 %v3634, %v3682
    %3684 = vmatmul.bf16.gmra.mxu0 %v2764
    %v3685 = vpop.f32.mrf.mxu0
    %v3686 = vadd.f32 %v3637, %v3685
    %v3687 = vpop.f32.mrf.mxu0
    %v3688 = vadd.f32 %v3639, %v3687
    %3689 = vmatmul.bf16.gmra.mxu0 %v2767
    %v3690 = vpop.f32.mrf.mxu0
    %v3691 = vadd.f32 %v3642, %v3690
    %v3692 = vpop.f32.mrf.mxu0
    %v3693 = vadd.f32 %v3644, %v3692
    %3694 = vmatmul.bf16.gmra.mxu0 %v2770
    %v3695 = vpop.f32.mrf.mxu0
    %v3696 = vadd.f32 %v3647, %v3695
    %v3697 = vpop.f32.mrf.mxu0
    %v3698 = vadd.f32 %v3649, %v3697
    %3699 = vdwg.mxu0
    %3700 = vmatpush.bf16.msra.mxu0 %v3211
    %3701 = vmatpush.bf16.msra.mxu0 %v3209
    %3702 = vmatpush.bf16.msra.mxu0 %v3207
    %3703 = vmatpush.bf16.msra.mxu0 %v3205
    %3704 = vmatpush.bf16.msra.mxu0 %v3203
    %3705 = vmatpush.bf16.msra.mxu0 %v3201
    %3706 = vmatpush.bf16.msra.mxu0 %v3199
    %3707 = vmatpush.bf16.msra.mxu0 %v3197
    %3708 = vmatmul.bf16.gmra.mxu0 %v2782
    %v3709 = vpop.f32.mrf.mxu0
    %v3710 = vadd.f32 %v3661, %v3709
    %v3711 = vpop.f32.mrf.mxu0
    %v3712 = vadd.f32 %v3663, %v3711
    %3713 = vmatmul.bf16.gmra.mxu0 %v2785
    %v3714 = vpop.f32.mrf.mxu0
    %v3715 = vadd.f32 %v3666, %v3714
    %v3716 = vpop.f32.mrf.mxu0
    %v3717 = vadd.f32 %v3668, %v3716
    %3718 = vmatmul.bf16.gmra.mxu0 %v2788
    %v3719 = vpop.f32.mrf.mxu0
    %v3720 = vadd.f32 %v3671, %v3719
    %v3721 = vpop.f32.mrf.mxu0
    %v3722 = vadd.f32 %v3673, %v3721
    %3723 = vmatmul.bf16.gmra.mxu0 %v2791
    %v3724 = vpop.f32.mrf.mxu0
    %v3725 = vadd.f32 %v3676, %v3724
    %v3726 = vpop.f32.mrf.mxu0
    %v3727 = vadd.f32 %v3678, %v3726
    %3728 = vmatmul.bf16.gmra.mxu0 %v2794
    %v3729 = vpop.f32.mrf.mxu0
    %v3730 = vadd.f32 %v3681, %v3729
    %v3731 = vpop.f32.mrf.mxu0
    %v3732 = vadd.f32 %v3683, %v3731
    %3733 = vmatmul.bf16.gmra.mxu0 %v2797
    %v3734 = vpop.f32.mrf.mxu0
    %v3735 = vadd.f32 %v3686, %v3734
    %v3736 = vpop.f32.mrf.mxu0
    %v3737 = vadd.f32 %v3688, %v3736
    %3738 = vmatmul.bf16.gmra.mxu0 %v2800
    %v3739 = vpop.f32.mrf.mxu0
    %v3740 = vadd.f32 %v3691, %v3739
    %v3741 = vpop.f32.mrf.mxu0
    %v3742 = vadd.f32 %v3693, %v3741
    %3743 = vmatmul.bf16.gmra.mxu0 %v2803
    %v3744 = vpop.f32.mrf.mxu0
    %v3745 = vadd.f32 %v3696, %v3744
    %v3746 = vpop.f32.mrf.mxu0
    %v3747 = vadd.f32 %v3698, %v3746
    %3748 = vdwg.mxu0
    %3749 = vmatpush.bf16.msra.mxu0 %v3227
    %3750 = vmatpush.bf16.msra.mxu0 %v3225
    %3751 = vmatpush.bf16.msra.mxu0 %v3223
    %3752 = vmatpush.bf16.msra.mxu0 %v3221
    %3753 = vmatpush.bf16.msra.mxu0 %v3219
    %3754 = vmatpush.bf16.msra.mxu0 %v3217
    %3755 = vmatpush.bf16.msra.mxu0 %v3215
    %3756 = vmatpush.bf16.msra.mxu0 %v3213
    %3757 = vmatmul.bf16.gmra.mxu0 %v2812
    %v3758 = vpop.f32.mrf.mxu0
    %v3759 = vadd.f32 %v3710, %v3758
    %v3760 = vpop.f32.mrf.mxu0
    %v3761 = vadd.f32 %v3712, %v3760
    %3762 = vmatmul.bf16.gmra.mxu0 %v2813
    %v3763 = vpop.f32.mrf.mxu0
    %v3764 = vadd.f32 %v3715, %v3763
    %v3765 = vpop.f32.mrf.mxu0
    %v3766 = vadd.f32 %v3717, %v3765
    %3767 = vmatmul.bf16.gmra.mxu0 %v2814
    %v3768 = vpop.f32.mrf.mxu0
    %v3769 = vadd.f32 %v3720, %v3768
    %v3770 = vpop.f32.mrf.mxu0
    %v3771 = vadd.f32 %v3722, %v3770
    %3772 = vmatmul.bf16.gmra.mxu0 %v2815
    %v3773 = vpop.f32.mrf.mxu0
    %v3774 = vadd.f32 %v3725, %v3773
    %v3775 = vpop.f32.mrf.mxu0
    %v3776 = vadd.f32 %v3727, %v3775
    %3777 = vmatmul.bf16.gmra.mxu0 %v2816
    %v3778 = vpop.f32.mrf.mxu0
    %v3779 = vadd.f32 %v3730, %v3778
    %v3780 = vpop.f32.mrf.mxu0
    %v3781 = vadd.f32 %v3732, %v3780
    %3782 = vmatmul.bf16.gmra.mxu0 %v2817
    %v3783 = vpop.f32.mrf.mxu0
    %v3784 = vadd.f32 %v3735, %v3783
    %v3785 = vpop.f32.mrf.mxu0
    %v3786 = vadd.f32 %v3737, %v3785
    %3787 = vmatmul.bf16.gmra.mxu0 %v2818
    %v3788 = vpop.f32.mrf.mxu0
    %v3789 = vadd.f32 %v3740, %v3788
    %v3790 = vpop.f32.mrf.mxu0
    %v3791 = vadd.f32 %v3742, %v3790
    %3792 = vmatmul.bf16.gmra.mxu0 %v2819
    %v3793 = vpop.f32.mrf.mxu0
    %v3794 = vadd.f32 %v3745, %v3793
    %v3795 = vpop.f32.mrf.mxu0
    %v3796 = vadd.f32 %v3747, %v3795
    %3797 = vdwg.mxu0
    %vm3830 = vcmask 1045504
    %v3831 = vrot.slane %v3514, 2
    %v3832 = vrot.slane %v3516, 2
    %v3833 = vsel %vm3830, %v3831, %v3832
    %v3834 = vrot.slane %v3759, 2
    %v3835 = vrot.slane %v3761, 2
    %v3836 = vsel %vm3830, %v3834, %v3835
    %v3837 = vrot.slane %v3519, 2
    %v3838 = vrot.slane %v3521, 2
    %v3839 = vsel %vm3830, %v3837, %v3838
    %v3840 = vrot.slane %v3764, 2
    %v3841 = vrot.slane %v3766, 2
    %v3842 = vsel %vm3830, %v3840, %v3841
    %v3843 = vrot.slane %v3524, 2
    %v3844 = vrot.slane %v3526, 2
    %v3845 = vsel %vm3830, %v3843, %v3844
    %v3846 = vrot.slane %v3769, 2
    %v3847 = vrot.slane %v3771, 2
    %v3848 = vsel %vm3830, %v3846, %v3847
    %v3849 = vrot.slane %v3529, 2
    %v3850 = vrot.slane %v3531, 2
    %v3851 = vsel %vm3830, %v3849, %v3850
    %v3852 = vrot.slane %v3774, 2
    %v3853 = vrot.slane %v3776, 2
    %v3854 = vsel %vm3830, %v3852, %v3853
    %v3855 = vrot.slane %v3534, 2
    %v3856 = vrot.slane %v3536, 2
    %v3857 = vsel %vm3830, %v3855, %v3856
    %v3858 = vrot.slane %v3779, 2
    %v3859 = vrot.slane %v3781, 2
    %v3860 = vsel %vm3830, %v3858, %v3859
    %v3861 = vrot.slane %v3539, 2
    %v3862 = vrot.slane %v3541, 2
    %v3863 = vsel %vm3830, %v3861, %v3862
    %v3864 = vrot.slane %v3784, 2
    %v3865 = vrot.slane %v3786, 2
    %v3866 = vsel %vm3830, %v3864, %v3865
    %v3867 = vrot.slane %v3544, 2
    %v3868 = vrot.slane %v3546, 2
    %v3869 = vsel %vm3830, %v3867, %v3868
    %v3870 = vrot.slane %v3789, 2
    %v3871 = vrot.slane %v3791, 2
    %v3872 = vsel %vm3830, %v3870, %v3871
    %v3873 = vrot.slane %v3549, 2
    %v3874 = vrot.slane %v3551, 2
    %v3875 = vsel %vm3830, %v3873, %v3874
    %v3876 = vrot.slane %v3794, 2
    %v3877 = vrot.slane %v3796, 2
    %v3878 = vsel %vm3830, %v3876, %v3877
    %v3911 = vmax.f32 %v3514, %v3833
    %v3912 = vmax.f32 %v3759, %v3836
    %v3913 = vmax.f32 %v3516, %v3832
    %v3914 = vmax.f32 %v3761, %v3835
    %v3915 = vmax.f32 %v3519, %v3839
    %v3916 = vmax.f32 %v3764, %v3842
    %v3917 = vmax.f32 %v3521, %v3838
    %v3918 = vmax.f32 %v3766, %v3841
    %v3919 = vmax.f32 %v3524, %v3845
    %v3920 = vmax.f32 %v3769, %v3848
    %v3921 = vmax.f32 %v3526, %v3844
    %v3922 = vmax.f32 %v3771, %v3847
    %v3923 = vmax.f32 %v3529, %v3851
    %v3924 = vmax.f32 %v3774, %v3854
    %v3925 = vmax.f32 %v3531, %v3850
    %v3926 = vmax.f32 %v3776, %v3853
    %v3927 = vmax.f32 %v3534, %v3857
    %v3928 = vmax.f32 %v3779, %v3860
    %v3929 = vmax.f32 %v3536, %v3856
    %v3930 = vmax.f32 %v3781, %v3859
    %v3931 = vmax.f32 %v3539, %v3863
    %v3932 = vmax.f32 %v3784, %v3866
    %v3933 = vmax.f32 %v3541, %v3862
    %v3934 = vmax.f32 %v3786, %v3865
    %v3935 = vmax.f32 %v3544, %v3869
    %v3936 = vmax.f32 %v3789, %v3872
    %v3937 = vmax.f32 %v3546, %v3868
    %v3938 = vmax.f32 %v3791, %v3871
    %v3939 = vmax.f32 %v3549, %v3875
    %v3940 = vmax.f32 %v3794, %v3878
    %v3941 = vmax.f32 %v3551, %v3874
    %v3942 = vmax.f32 %v3796, %v3877
    %v3943 = vmax.f32 %v3911, %v3912
    %v3944 = vmax.f32 %v3913, %v3914
    %v3945 = vmax.f32 %v3915, %v3916
    %v3946 = vmax.f32 %v3917, %v3918
    %v3947 = vmax.f32 %v3919, %v3920
    %v3948 = vmax.f32 %v3921, %v3922
    %v3949 = vmax.f32 %v3923, %v3924
    %v3950 = vmax.f32 %v3925, %v3926
    %v3951 = vmax.f32 %v3927, %v3928
    %v3952 = vmax.f32 %v3929, %v3930
    %v3953 = vmax.f32 %v3931, %v3932
    %v3954 = vmax.f32 %v3933, %v3934
    %v3955 = vmax.f32 %v3935, %v3936
    %v3956 = vmax.f32 %v3937, %v3938
    %v3957 = vmax.f32 %v3939, %v3940
    %v3958 = vmax.f32 %v3941, %v3942
    %v3959 = vmax.f32 %v3943, 0.0
    %v3960 = vmax.f32 %v3944, 0.0
    %v3961 = vmax.f32 %v3945, 0.0
    %v3962 = vmax.f32 %v3946, 0.0
    %v3963 = vmax.f32 %v3947, 0.0
    %v3964 = vmax.f32 %v3948, 0.0
    %v3965 = vmax.f32 %v3949, 0.0
    %v3966 = vmax.f32 %v3950, 0.0
    %v3967 = vmax.f32 %v3951, 0.0
    %v3968 = vmax.f32 %v3952, 0.0
    %v3969 = vmax.f32 %v3953, 0.0
    %v3970 = vmax.f32 %v3954, 0.0
    %v3971 = vmax.f32 %v3955, 0.0
    %v3972 = vmax.f32 %v3956, 0.0
    %v3973 = vmax.f32 %v3957, 0.0
    %v3974 = vmax.f32 %v3958, 0.0
    %v3975 = vld [vmem:[%s5] sm:$0x1]
    %v3977 = vperm.slane %v3975, 0
    %v3979 = vmul.f32 %v3959, %v3977
    %v3980 = vmul.f32 %v3960, %v3977
    %v3981 = vmul.f32 %v3961, %v3977
    %v3982 = vmul.f32 %v3962, %v3977
    %v3983 = vmul.f32 %v3963, %v3977
    %v3984 = vmul.f32 %v3964, %v3977
    %v3985 = vmul.f32 %v3965, %v3977
    %v3986 = vmul.f32 %v3966, %v3977
    %v3987 = vmul.f32 %v3967, %v3977
    %v3988 = vmul.f32 %v3968, %v3977
    %v3989 = vmul.f32 %v3969, %v3977
    %v3990 = vmul.f32 %v3970, %v3977
    %v3991 = vmul.f32 %v3971, %v3977
    %v3992 = vmul.f32 %v3972, %v3977
    %v3993 = vmul.f32 %v3973, %v3977
    %v3994 = vmul.f32 %v3974, %v3977
    %v3995 = vld [vmem:[%s6] sm:$0x1]
    %v3997 = vperm.slane %v3995, 0
    %v3999 = vadd.f32 %v3979, %v3997
    %v4000 = vadd.f32 %v3980, %v3997
    %v4001 = vadd.f32 %v3981, %v3997
    %v4002 = vadd.f32 %v3982, %v3997
    %v4003 = vadd.f32 %v3983, %v3997
    %v4004 = vadd.f32 %v3984, %v3997
    %v4005 = vadd.f32 %v3985, %v3997
    %v4006 = vadd.f32 %v3986, %v3997
    %v4007 = vadd.f32 %v3987, %v3997
    %v4008 = vadd.f32 %v3988, %v3997
    %v4009 = vadd.f32 %v3989, %v3997
    %v4010 = vadd.f32 %v3990, %v3997
    %v4011 = vadd.f32 %v3991, %v3997
    %v4012 = vadd.f32 %v3992, %v3997
    %v4013 = vadd.f32 %v3993, %v3997
    %v4014 = vadd.f32 %v3994, %v3997
    %v4023 = vrot.slane %v4001, 7
    %vm4024 = vcmask 1041409
    %v4025 = vsel %vm4024, %v4023, %v3999
    %v4026 = vrot.slane %v4003, 6
    %vm4027 = vcmask 1042434
    %v4028 = vsel %vm4027, %v4026, %v4025
    %v4029 = vrot.slane %v4005, 5
    %vm4030 = vcmask 1043459
    %v4031 = vsel %vm4030, %v4029, %v4028
    %v4032 = vrot.slane %v4007, 4
    %vm4033 = vcmask 1044484
    %v4034 = vsel %vm4033, %v4032, %v4031
    %v4035 = vrot.slane %v4009, 3
    %vm4036 = vcmask 1045509
    %v4037 = vsel %vm4036, %v4035, %v4034
    %v4038 = vrot.slane %v4011, 2
    %vm4039 = vcmask 1046534
    %v4040 = vsel %vm4039, %v4038, %v4037
    %v4041 = vrot.slane %v4013, 1
    %vm4042 = vcmask 1047559
    %v4043 = vsel %vm4042, %v4041, %v4040
    %v4045 = vrot.slane %v3999, 4
    %v4046 = vrot.slane %v4001, 3
    %v4047 = vsel %vm4024, %v4046, %v4045
    %v4048 = vrot.slane %v4003, 2
    %v4049 = vsel %vm4027, %v4048, %v4047
    %v4050 = vrot.slane %v4005, 1
    %v4051 = vsel %vm4030, %v4050, %v4049
    %v4052 = vsel %vm4033, %v4007, %v4051
    %v4053 = vrot.slane %v4009, 7
    %v4054 = vsel %vm4036, %v4053, %v4052
    %v4055 = vrot.slane %v4011, 6
    %v4056 = vsel %vm4039, %v4055, %v4054
    %v4057 = vrot.slane %v4013, 5
    %v4058 = vsel %vm4042, %v4057, %v4056
    %v4068 = vrot.slane %v4002, 7
    %v4069 = vsel %vm4024, %v4068, %v4000
    %v4070 = vrot.slane %v4004, 6
    %v4071 = vsel %vm4027, %v4070, %v4069
    %v4072 = vrot.slane %v4006, 5
    %v4073 = vsel %vm4030, %v4072, %v4071
    %v4074 = vrot.slane %v4008, 4
    %v4075 = vsel %vm4033, %v4074, %v4073
    %v4076 = vrot.slane %v4010, 3
    %v4077 = vsel %vm4036, %v4076, %v4075
    %v4078 = vrot.slane %v4012, 2
    %v4079 = vsel %vm4039, %v4078, %v4077
    %v4080 = vrot.slane %v4014, 1
    %v4081 = vsel %vm4042, %v4080, %v4079
    %v4083 = vrot.slane %v4000, 4
    %v4084 = vrot.slane %v4002, 3
    %v4085 = vsel %vm4024, %v4084, %v4083
    %v4086 = vrot.slane %v4004, 2
    %v4087 = vsel %vm4027, %v4086, %v4085
    %v4088 = vrot.slane %v4006, 1
    %v4089 = vsel %vm4030, %v4088, %v4087
    %v4090 = vsel %vm4033, %v4008, %v4089
    %v4091 = vrot.slane %v4010, 7
    %v4092 = vsel %vm4036, %v4091, %v4090
    %v4093 = vrot.slane %v4012, 6
    %v4094 = vsel %vm4039, %v4093, %v4092
    %v4095 = vrot.slane %v4014, 5
    %v4096 = vsel %vm4042, %v4095, %v4094
    %v4098 = vpack.c.bf16 %v4043, %v4043
    %v4099 = vpack.c.bf16 %v4058, %v4058
    %v4100 = vpack.c.bf16 %v4081, %v4081
    %v4101 = vpack.c.bf16 %v4096, %v4096
    %v4102 = vld [vmem:[%s7] sm:$0xf]
    %v4103 = vld [vmem:[%s7 + $0x4] sm:$0xf]
    %v4104 = vld [vmem:[%s7 + $0x8] sm:$0xf]
    %v4105 = vld [vmem:[%s7 + $0xc] sm:$0xf]
    %v4106 = vld [vmem:[%s7 + $0x10] sm:$0xf]
    %v4107 = vld [vmem:[%s7 + $0x14] sm:$0xf]
    %v4108 = vld [vmem:[%s7 + $0x18] sm:$0xf]
    %v4109 = vld [vmem:[%s7 + $0x1c] sm:$0xf]
    %v4110 = vld [vmem:[%s7 + $0x20] sm:$0xf]
    %v4111 = vld [vmem:[%s7 + $0x24] sm:$0xf]
    %v4112 = vld [vmem:[%s7 + $0x28] sm:$0xf]
    %v4113 = vld [vmem:[%s7 + $0x2c] sm:$0xf]
    %v4114 = vld [vmem:[%s7 + $0x30] sm:$0xf]
    %v4115 = vld [vmem:[%s7 + $0x34] sm:$0xf]
    %v4116 = vld [vmem:[%s7 + $0x38] sm:$0xf]
    %v4117 = vld [vmem:[%s7 + $0x3c] sm:$0xf]
    %v4118 = vld [vmem:[%s7 + $0x40] sm:$0xf]
    %v4119 = vld [vmem:[%s7 + $0x44] sm:$0xf]
    %v4120 = vld [vmem:[%s7 + $0x48] sm:$0xf]
    %v4121 = vld [vmem:[%s7 + $0x4c] sm:$0xf]
    %v4122 = vld [vmem:[%s7 + $0x50] sm:$0xf]
    %v4123 = vld [vmem:[%s7 + $0x54] sm:$0xf]
    %v4124 = vld [vmem:[%s7 + $0x58] sm:$0xf]
    %v4125 = vld [vmem:[%s7 + $0x5c] sm:$0xf]
    %v4126 = vld [vmem:[%s7 + $0x60] sm:$0xf]
    %v4127 = vld [vmem:[%s7 + $0x64] sm:$0xf]
    %v4128 = vld [vmem:[%s7 + $0x68] sm:$0xf]
    %v4129 = vld [vmem:[%s7 + $0x6c] sm:$0xf]
    %v4130 = vld [vmem:[%s7 + $0x70] sm:$0xf]
    %v4131 = vld [vmem:[%s7 + $0x74] sm:$0xf]
    %v4132 = vld [vmem:[%s7 + $0x78] sm:$0xf]
    %v4133 = vld [vmem:[%s7 + $0x7c] sm:$0xf]
    %v4134 = vld [vmem:[%s7 + $0x80] sm:$0xf]
    %v4135 = vld [vmem:[%s7 + $0x84] sm:$0xf]
    %v4136 = vld [vmem:[%s7 + $0x88] sm:$0xf]
    %v4137 = vld [vmem:[%s7 + $0x8c] sm:$0xf]
    %v4138 = vld [vmem:[%s7 + $0x90] sm:$0xf]
    %v4139 = vld [vmem:[%s7 + $0x94] sm:$0xf]
    %v4140 = vld [vmem:[%s7 + $0x98] sm:$0xf]
    %v4141 = vld [vmem:[%s7 + $0x9c] sm:$0xf]
    %v4142 = vld [vmem:[%s7 + $0xa0] sm:$0xf]
    %v4143 = vld [vmem:[%s7 + $0xa4] sm:$0xf]
    %v4144 = vld [vmem:[%s7 + $0xa8] sm:$0xf]
    %v4145 = vld [vmem:[%s7 + $0xac] sm:$0xf]
    %v4146 = vld [vmem:[%s7 + $0xb0] sm:$0xf]
    %v4147 = vld [vmem:[%s7 + $0xb4] sm:$0xf]
    %v4148 = vld [vmem:[%s7 + $0xb8] sm:$0xf]
    %v4149 = vld [vmem:[%s7 + $0xbc] sm:$0xf]
    %v4150 = vld [vmem:[%s7 + $0xc0] sm:$0xf]
    %v4151 = vld [vmem:[%s7 + $0xc4] sm:$0xf]
    %v4152 = vld [vmem:[%s7 + $0xc8] sm:$0xf]
    %v4153 = vld [vmem:[%s7 + $0xcc] sm:$0xf]
    %v4154 = vld [vmem:[%s7 + $0xd0] sm:$0xf]
    %v4155 = vld [vmem:[%s7 + $0xd4] sm:$0xf]
    %v4156 = vld [vmem:[%s7 + $0xd8] sm:$0xf]
    %v4157 = vld [vmem:[%s7 + $0xdc] sm:$0xf]
    %v4158 = vld [vmem:[%s7 + $0xe0] sm:$0xf]
    %v4159 = vld [vmem:[%s7 + $0xe4] sm:$0xf]
    %v4160 = vld [vmem:[%s7 + $0xe8] sm:$0xf]
    %v4161 = vld [vmem:[%s7 + $0xec] sm:$0xf]
    %v4162 = vld [vmem:[%s7 + $0xf0] sm:$0xf]
    %v4163 = vld [vmem:[%s7 + $0xf4] sm:$0xf]
    %v4164 = vld [vmem:[%s7 + $0xf8] sm:$0xf]
    %v4165 = vld [vmem:[%s7 + $0xfc] sm:$0xf]
    %v4166 = vld [vmem:[%s8] sm:$0x1]
    %v4168 = vperm.slane %v4166, 0
    %v4234 = vunpack.c.l.b16 %v4102
    %v4235 = vunpack.c.l.b16 %v4103
    %v4236 = vunpack.c.l.b16 %v4104
    %v4237 = vunpack.c.l.b16 %v4105
    %v4238 = vunpack.c.l.b16 %v4106
    %v4239 = vunpack.c.l.b16 %v4107
    %v4240 = vunpack.c.l.b16 %v4108
    %v4241 = vunpack.c.l.b16 %v4109
    %v4242 = vunpack.c.l.b16 %v4110
    %v4243 = vunpack.c.l.b16 %v4111
    %v4244 = vunpack.c.l.b16 %v4112
    %v4245 = vunpack.c.l.b16 %v4113
    %v4246 = vunpack.c.l.b16 %v4114
    %v4247 = vunpack.c.l.b16 %v4115
    %v4248 = vunpack.c.l.b16 %v4116
    %v4249 = vunpack.c.l.b16 %v4117
    %v4250 = vunpack.c.l.b16 %v4118
    %v4251 = vunpack.c.l.b16 %v4119
    %v4252 = vunpack.c.l.b16 %v4120
    %v4253 = vunpack.c.l.b16 %v4121
    %v4254 = vunpack.c.l.b16 %v4122
    %v4255 = vunpack.c.l.b16 %v4123
    %v4256 = vunpack.c.l.b16 %v4124
    %v4257 = vunpack.c.l.b16 %v4125
    %v4258 = vunpack.c.l.b16 %v4126
    %v4259 = vunpack.c.l.b16 %v4127
    %v4260 = vunpack.c.l.b16 %v4128
    %v4261 = vunpack.c.l.b16 %v4129
    %v4262 = vunpack.c.l.b16 %v4130
    %v4263 = vunpack.c.l.b16 %v4131
    %v4264 = vunpack.c.l.b16 %v4132
    %v4265 = vunpack.c.l.b16 %v4133
    %v4266 = vunpack.c.l.b16 %v4134
    %v4267 = vunpack.c.l.b16 %v4135
    %v4268 = vunpack.c.l.b16 %v4136
    %v4269 = vunpack.c.l.b16 %v4137
    %v4270 = vunpack.c.l.b16 %v4138
    %v4271 = vunpack.c.l.b16 %v4139
    %v4272 = vunpack.c.l.b16 %v4140
    %v4273 = vunpack.c.l.b16 %v4141
    %v4274 = vunpack.c.l.b16 %v4142
    %v4275 = vunpack.c.l.b16 %v4143
    %v4276 = vunpack.c.l.b16 %v4144
    %v4277 = vunpack.c.l.b16 %v4145
    %v4278 = vunpack.c.l.b16 %v4146
    %v4279 = vunpack.c.l.b16 %v4147
    %v4280 = vunpack.c.l.b16 %v4148
    %v4281 = vunpack.c.l.b16 %v4149
    %v4282 = vunpack.c.l.b16 %v4150
    %v4283 = vunpack.c.l.b16 %v4151
    %v4284 = vunpack.c.l.b16 %v4152
    %v4285 = vunpack.c.l.b16 %v4153
    %v4286 = vunpack.c.l.b16 %v4154
    %v4287 = vunpack.c.l.b16 %v4155
    %v4288 = vunpack.c.l.b16 %v4156
    %v4289 = vunpack.c.l.b16 %v4157
    %v4290 = vunpack.c.l.b16 %v4158
    %v4291 = vunpack.c.l.b16 %v4159
    %v4292 = vunpack.c.l.b16 %v4160
    %v4293 = vunpack.c.l.b16 %v4161
    %v4294 = vunpack.c.l.b16 %v4162
    %v4295 = vunpack.c.l.b16 %v4163
    %v4296 = vunpack.c.l.b16 %v4164
    %v4297 = vunpack.c.l.b16 %v4165
    %v4298 = vpack.c.b16 %v4235, %v4234
    %v4299 = vpack.c.b16 %v4237, %v4236
    %v4300 = vpack.c.b16 %v4239, %v4238
    %v4301 = vpack.c.b16 %v4241, %v4240
    %v4302 = vpack.c.b16 %v4243, %v4242
    %v4303 = vpack.c.b16 %v4245, %v4244
    %v4304 = vpack.c.b16 %v4247, %v4246
    %v4305 = vpack.c.b16 %v4249, %v4248
    %v4306 = vpack.c.b16 %v4251, %v4250
    %v4307 = vpack.c.b16 %v4253, %v4252
    %v4308 = vpack.c.b16 %v4255, %v4254
    %v4309 = vpack.c.b16 %v4257, %v4256
    %v4310 = vpack.c.b16 %v4259, %v4258
    %v4311 = vpack.c.b16 %v4261, %v4260
    %v4312 = vpack.c.b16 %v4263, %v4262
    %v4313 = vpack.c.b16 %v4265, %v4264
    %v4314 = vpack.c.b16 %v4267, %v4266
    %v4315 = vpack.c.b16 %v4269, %v4268
    %v4316 = vpack.c.b16 %v4271, %v4270
    %v4317 = vpack.c.b16 %v4273, %v4272
    %v4318 = vpack.c.b16 %v4275, %v4274
    %v4319 = vpack.c.b16 %v4277, %v4276
    %v4320 = vpack.c.b16 %v4279, %v4278
    %v4321 = vpack.c.b16 %v4281, %v4280
    %v4322 = vpack.c.b16 %v4283, %v4282
    %v4323 = vpack.c.b16 %v4285, %v4284
    %v4324 = vpack.c.b16 %v4287, %v4286
    %v4325 = vpack.c.b16 %v4289, %v4288
    %v4326 = vpack.c.b16 %v4291, %v4290
    %v4327 = vpack.c.b16 %v4293, %v4292
    %v4328 = vpack.c.b16 %v4295, %v4294
    %v4329 = vpack.c.b16 %v4297, %v4296
    %4362 = vmatpush.bf16.msra.mxu0 %v4305
    %4363 = vmatpush.bf16.msra.mxu0 %v4304
    %4364 = vmatpush.bf16.msra.mxu0 %v4303
    %4365 = vmatpush.bf16.msra.mxu0 %v4302
    %4366 = vmatpush.bf16.msra.mxu0 %v4301
    %4367 = vmatpush.bf16.msra.mxu0 %v4300
    %4368 = vmatpush.bf16.msra.mxu0 %v4299
    %4369 = vmatpush.bf16.msra.mxu0 %v4298
    %4370 = vmatmul.bf16.gmra.mxu0 %v4098
    %v4371 = vpop.f32.mrf.mxu0
    %v4372 = vadd.f32 %v4168, %v4371
    %v4373 = vpop.f32.mrf.mxu0
    %4374 = vdwg.mxu0
    %4375 = vmatpush.bf16.msra.mxu0 %v4313
    %4376 = vmatpush.bf16.msra.mxu0 %v4312
    %4377 = vmatpush.bf16.msra.mxu0 %v4311
    %4378 = vmatpush.bf16.msra.mxu0 %v4310
    %4379 = vmatpush.bf16.msra.mxu0 %v4309
    %4380 = vmatpush.bf16.msra.mxu0 %v4308
    %4381 = vmatpush.bf16.msra.mxu0 %v4307
    %4382 = vmatpush.bf16.msra.mxu0 %v4306
    %4383 = vmatmul.bf16.gmra.mxu0 %v4099
    %v4384 = vpop.f32.mrf.mxu0
    %v4385 = vadd.f32 %v4372, %v4384
    %v4386 = vpop.f32.mrf.mxu0
    %4387 = vdwg.mxu0
    %4388 = vmatpush.bf16.msra.mxu0 %v4321
    %4389 = vmatpush.bf16.msra.mxu0 %v4320
    %4390 = vmatpush.bf16.msra.mxu0 %v4319
    %4391 = vmatpush.bf16.msra.mxu0 %v4318
    %4392 = vmatpush.bf16.msra.mxu0 %v4317
    %4393 = vmatpush.bf16.msra.mxu0 %v4316
    %4394 = vmatpush.bf16.msra.mxu0 %v4315
    %4395 = vmatpush.bf16.msra.mxu0 %v4314
    %4396 = vmatmul.bf16.gmra.mxu0 %v4100
    %v4397 = vpop.f32.mrf.mxu0
    %v4398 = vadd.f32 %v4385, %v4397
    %v4399 = vpop.f32.mrf.mxu0
    %4400 = vdwg.mxu0
    %4401 = vmatpush.bf16.msra.mxu0 %v4329
    %4402 = vmatpush.bf16.msra.mxu0 %v4328
    %4403 = vmatpush.bf16.msra.mxu0 %v4327
    %4404 = vmatpush.bf16.msra.mxu0 %v4326
    %4405 = vmatpush.bf16.msra.mxu0 %v4325
    %4406 = vmatpush.bf16.msra.mxu0 %v4324
    %4407 = vmatpush.bf16.msra.mxu0 %v4323
    %4408 = vmatpush.bf16.msra.mxu0 %v4322
    %4409 = vmatmul.bf16.gmra.mxu0 %v4101
    %v4410 = vpop.f32.mrf.mxu0
    %v4411 = vadd.f32 %v4398, %v4410
    %v4412 = vpop.f32.mrf.mxu0
    %4413 = vdwg.mxu0
    %v4414 = vmax.f32 %v4411, 0.0
    %v4415 = vpack.c.bf16 %v4414, %v4414
    %v4416 = vld [vmem:[%s9] sm:$0xf]
    %v4417 = vld [vmem:[%s9 + $0x4] sm:$0xf]
    %v4418 = vld [vmem:[%s9 + $0x8] sm:$0xf]
    %v4419 = vld [vmem:[%s9 + $0xc] sm:$0xf]
    %v4420 = vld [vmem:[%s9 + $0x10] sm:$0xf]
    %v4421 = vld [vmem:[%s9 + $0x14] sm:$0xf]
    %v4422 = vld [vmem:[%s9 + $0x18] sm:$0xf]
    %v4423 = vld [vmem:[%s9 + $0x1c] sm:$0xf]
    %v4424 = vld [vmem:[%s9 + $0x20] sm:$0xf]
    %v4425 = vld [vmem:[%s9 + $0x24] sm:$0xf]
    %v4426 = vld [vmem:[%s9 + $0x28] sm:$0xf]
    %v4427 = vld [vmem:[%s9 + $0x2c] sm:$0xf]
    %v4428 = vld [vmem:[%s9 + $0x30] sm:$0xf]
    %v4429 = vld [vmem:[%s9 + $0x34] sm:$0xf]
    %v4430 = vld [vmem:[%s9 + $0x38] sm:$0xf]
    %v4431 = vld [vmem:[%s9 + $0x3c] sm:$0xf]
    %v4432 = vld [vmem:[%s10] sm:$0x1]
    %v4434 = vperm.slane %v4432, 0
    %v4452 = vunpack.c.l.b16 %v4416
    %v4453 = vunpack.c.l.b16 %v4417
    %v4454 = vunpack.c.l.b16 %v4418
    %v4455 = vunpack.c.l.b16 %v4419
    %v4456 = vunpack.c.l.b16 %v4420
    %v4457 = vunpack.c.l.b16 %v4421
    %v4458 = vunpack.c.l.b16 %v4422
    %v4459 = vunpack.c.l.b16 %v4423
    %v4460 = vunpack.c.l.b16 %v4424
    %v4461 = vunpack.c.l.b16 %v4425
    %v4462 = vunpack.c.l.b16 %v4426
    %v4463 = vunpack.c.l.b16 %v4427
    %v4464 = vunpack.c.l.b16 %v4428
    %v4465 = vunpack.c.l.b16 %v4429
    %v4466 = vunpack.c.l.b16 %v4430
    %v4467 = vunpack.c.l.b16 %v4431
    %v4468 = vpack.c.b16 %v4453, %v4452
    %v4469 = vpack.c.b16 %v4455, %v4454
    %v4470 = vpack.c.b16 %v4457, %v4456
    %v4471 = vpack.c.b16 %v4459, %v4458
    %v4472 = vpack.c.b16 %v4461, %v4460
    %v4473 = vpack.c.b16 %v4463, %v4462
    %v4474 = vpack.c.b16 %v4465, %v4464
    %v4475 = vpack.c.b16 %v4467, %v4466
    %4484 = vmatpush.bf16.msra.mxu0 %v4475
    %4485 = vmatpush.bf16.msra.mxu0 %v4474
    %4486 = vmatpush.bf16.msra.mxu0 %v4473
    %4487 = vmatpush.bf16.msra.mxu0 %v4472
    %4488 = vmatpush.bf16.msra.mxu0 %v4471
    %4489 = vmatpush.bf16.msra.mxu0 %v4470
    %4490 = vmatpush.bf16.msra.mxu0 %v4469
    %4491 = vmatpush.bf16.msra.mxu0 %v4468
    %4492 = vmatmul.bf16.gmra.mxu0 %v4415
    %v4493 = vpop.f32.mrf.mxu0
    %v4494 = vadd.f32 %v4434, %v4493
    %v4495 = vpop.f32.mrf.mxu0
    %4496 = vdwg.mxu0
    %v4497 = vmax.f32 %v4494, 0.0
    %4498 = vmax.xlane.f32.xlu0 %v4497
    %v4499 = vpop.xlane.xlu0 %4498
    %v4500 = vsub.f32 %v4497, %v4499
    %v4501 = vmul.f32 %v4500, 1.442695
    %v4502 = vpow.pop %v4501
    %4503 = vadd.xlane.f32.xlu0 %v4502
    %v4504 = vpop.xlane.xlu0 %4503
    %v4505 = vsub.f32 0.0, %v4499
    %v4506 = vmul.f32 %v4505, 1.442695
    %v4507 = vpow.pop %v4506
    %v4508 = vmul.f32 %v4507, 118.0
    %v4509 = vsub.f32 %v4504, %v4508
    %v4510 = vlog2.pop %v4509
    %v4511 = vmul.f32 %v4510, 0.6931472
    %v4512 = vsub.f32 %v4500, %v4511
    %4513 = vst [vmem:[%s11] sm:$0xff] %v4512
    // Predicated region
    $region54: #{lenet_forward.1} parent=1 // pred_check
      _
    $region55: #{lenet_forward.1} parent=1 // pred_check_branch
      %4515 = sbr.rel (0) target = $region57
    $region56: #{lenet_forward.1} parent=1 // pred_region
      _
    $region57: #{lenet_forward.1} parent=1 // pred_fallthru
      _
    // Predicated region
    $region58: #{lenet_forward.1} parent=1 // pred_check
      _
    $region59: #{lenet_forward.1} parent=1 // pred_check_branch
      %4517 = sbr.rel (0) target = $region61
    $region60: #{lenet_forward.1} parent=1 // pred_region
      _
    $region61: #{lenet_forward.1} parent=1 // pred_fallthru
      _
    %4518 = vsyncpa [#allocation3], 1
    %4519 = vsyncpa [#allocation5], 1

</llo_original>
